<compile_context>
chip_gen: v7x
topology: tpu7x:2x2x1
jax: 0.10.0
libtpu: 0.0.40
codegen_flags: <defaults>
</compile_context>

<pallas_src>
import functools
from typing import NamedTuple

import numpy as np
import jax
import jax.numpy as jnp
from jax.experimental import pallas as pl
from jax.experimental.pallas import tpu as pltpu

# ---------------- small synthetic config (mirrors RVQVAE.__init__ shapes) ----
INPUT_DIM = 16          # feature dim of the motion input
OUTPUT_DIM = 12         # decoded motion feature dim
NB_CODE = 64            # codebook size
CODE_DIM = 32           # latent / codebook dim
DOWN_T = 2              # number of temporal down/up-sampling stages
STRIDE_T = 2
WIDTH = 32              # conv width
DEPTH = 2               # resnet blocks per stage
DILATION_GROWTH_RATE = 3
NUM_QUANTIZERS = 2

SLAB_W = 32             # max Cout over all convs (weight / bias slab lane width)
AUX_T = 16              # max temporal extent (aux selection-matrix slab (n,16,16))


class VQVAEOutput(NamedTuple):
    decoded_motion: jax.Array
    indices: jax.Array
    commit_loss: jax.Array
    perplexity: jax.Array


class ConvSpec(NamedTuple):
    """Static per-conv config: slab offsets + conv geometry (Python ints only)."""
    K: int
    cin: int
    cout: int
    dilation: int
    pad: int
    w_off: int               # row offset of (K*cin, cout) weight in the weight slab
    b_row: int               # row of this conv's bias in the bias slab
    pre_relu: bool = False
    post_relu: bool = False
    push_skip: bool = False  # remember conv input (res-block entry)
    pop_skip: bool = False   # add remembered skip after this conv
    sel_idx: int = -1        # aux index of stride row-selection matrix (-1: none)
    sel_rows: int = 0
    sel_cols: int = 0
    up_idx: int = -1         # aux index of nearest-2x upsample matrix (-1: none)
    up_rows: int = 0
    up_cols: int = 0


# ============================ in-kernel helpers ==============================
def _shift_rows(x, off):
    """Zero-padded temporal shift of a (T, C) tile: out[t] = x[t+off], 0 outside."""
    T, C = x.shape
    if off == 0:
        return x
    if abs(off) >= T:
        return jnp.zeros_like(x)
    pad = jnp.zeros((abs(off), C), x.dtype)
    if off > 0:
        return jnp.concatenate([x[off:, :], pad], axis=0)
    return jnp.concatenate([pad, x[:T + off, :]], axis=0)


def _apply_conv(h, w_ref, b_ref, aux_ref, c: ConvSpec):
    """1-D conv as a single MXU matmul via in-register im2col.
    h: (T, cin) f32 -> (T_out, cout) f32. bf16 MXU operands, f32 accumulate."""
    if c.up_idx >= 0:  # nearest-2x upsample folded in (precomputed 0/1 matrix)
        up = aux_ref[c.up_idx][0:c.up_rows, 0:c.up_cols]            # bf16
        h = jnp.dot(up, h.astype(jnp.bfloat16),
                    preferred_element_type=jnp.float32)             # (2T, cin)
    if c.pre_relu:
        h = jnp.maximum(h, 0.0)
    if c.K == 1:
        xi = h                                                      # (T, cin)
    else:
        xi = jnp.concatenate(
            [_shift_rows(h, k * c.dilation - c.pad) for k in range(c.K)],
            axis=-1)                                                # (T, K*cin)
    xi = xi.astype(jnp.bfloat16)
    if c.sel_idx >= 0:  # stride handled by precomputed 0/1 row selection
        sel = aux_ref[c.sel_idx][0:c.sel_rows, 0:c.sel_cols]        # bf16
        xi = jnp.dot(sel, xi, preferred_element_type=jnp.float32
                     ).astype(jnp.bfloat16)                         # (T_out, K*cin)
    w = w_ref[c.w_off:c.w_off + c.K * c.cin, 0:c.cout]              # (K*cin, cout)
    b = b_ref[c.b_row:c.b_row + 1, 0:c.cout]                        # (1, cout)
    y = jnp.dot(xi, w, preferred_element_type=jnp.float32) + b
    if c.post_relu:
        y = jnp.maximum(y, 0.0)
    return y


def _run_plan(h, w_ref, b_ref, aux_ref, plan):
    skip = None
    for c in plan:
        if c.push_skip:
            skip = h
        h = _apply_conv(h, w_ref, b_ref, aux_ref, c)
        if c.pop_skip:
            h = h + skip
    return h


def _fused_kernel(x_ref, w_ref, b_ref, aux_ref, cb_ref, c2_ref,
                  dec_ref, idx_ref, err_ref, cnt_ref, *,
                  enc_plan, dec_plan, nb_code, num_q):
    """Full forward for one batch element: encoder -> residual VQ -> decoder.
    All intermediate activations stay in VMEM/registers (no HBM round trips)."""
    # ---------------- fused encoder ----------------
    h = _run_plan(x_ref[...], w_ref, b_ref, aux_ref, enc_plan)   # (T_enc, code_dim)

    # ---------------- fused residual VQ -------------
    t_enc = h.shape[0]
    lane_iota = jax.lax.broadcasted_iota(jnp.int32, (t_enc, nb_code), 1)  # hoisted
    residual = h
    quant = jnp.zeros_like(h)
    for q in range(num_q):
        cb = cb_ref[q]                                            # (nb, code_dim) f32
        xc = jax.lax.dot_general(residual, cb, (((1,), (1,)), ((), ())),
                                 preferred_element_type=jnp.float32)   # (t_enc, nb)
        dpart = c2_ref[q] - 2.0 * xc                              # ||c||^2 - 2<x,c>
        min_dp = jnp.min(dpart, axis=-1, keepdims=True)
        # first index attaining the minimum (matches torch argmin tie-breaking)
        idx = jnp.min(jnp.where(dpart <= min_dp, lane_iota, nb_code), axis=-1)
        onehot = (lane_iota == idx[:, None]).astype(jnp.float32)
        x_d = jnp.dot(onehot, cb, preferred_element_type=jnp.float32)
        # commit error straight from the distance (clamped: cancellation may
        # make it slightly negative) — no diff^2 recompute.
        err = jnp.maximum(jnp.sum(residual * residual, axis=-1)
                          + jnp.min(dpart, axis=-1), 0.0)         # (t_enc,)

        idx_ref[q:q + 1, :] = idx[None, :]
        err_ref[q:q + 1, :] = err[None, :]
        cnt_ref[q:q + 1, :] = jnp.sum(onehot, axis=0)[None, :]

        quant = quant + x_d
        residual = residual - x_d

    # ---------------- fused decoder ----------------
    dec_ref[...] = _run_plan(quant, w_ref, b_ref, aux_ref, dec_plan)


# ============================ host-side packing ==============================
def _make_stride_sel(t_in, t_out, stride):
    m = np.zeros((t_out, t_in), np.float32)
    m[np.arange(t_out), np.arange(t_out) * stride] = 1.0
    return m


def _make_upsample(t_in):
    m = np.zeros((2 * t_in, t_in), np.float32)
    m[np.arange(2 * t_in), np.arange(2 * t_in) // 2] = 1.0
    return m


class _Packer:
    """Packs conv weights/biases/aux constants into slabs and records the static
    ConvSpec (slab offsets + geometry) used inside the kernel."""

    def __init__(self):
        self.w_blocks, self.b_rows, self.aux = [], [], []
        self.w_off = 0
        self.flops = 0

    def _add_aux(self, m):
        idx = len(self.aux)
        r, c = m.shape
        padded = np.zeros((AUX_T, AUX_T), np.float32)
        padded[:r, :c] = m
        self.aux.append(padded)
        return idx, r, c

    def add_conv(self, cp, t_in, *, dilation=1, pad=0, stride=1,
                 pre_relu=False, post_relu=False,
                 push_skip=False, pop_skip=False, upsample_before=False):
        w = cp["w"]
        K, cin, cout = w.shape
        up_idx, ur, uc = -1, 0, 0
        if upsample_before:
            up_idx, ur, uc = self._add_aux(_make_upsample(t_in))
            self.flops += 2 * ur * uc * cin
            t_in = 2 * t_in
        t_out = (t_in + 2 * pad - dilation * (K - 1) - 1) // stride + 1
        sel_idx, sr, sc = -1, 0, 0
        if stride > 1:
            sel_idx, sr, sc = self._add_aux(_make_stride_sel(t_in, t_out, stride))
            self.flops += 2 * t_out * t_in * K * cin
        self.flops += 2 * t_out * K * cin * cout

        w2d = jnp.pad(w.reshape(K * cin, cout), ((0, 0), (0, SLAB_W - cout)))
        b2d = jnp.pad(cp["b"], (0, SLAB_W - cout))[None, :]
        self.w_blocks.append(w2d.astype(jnp.bfloat16))
        self.b_rows.append(b2d.astype(jnp.float32))
        spec = ConvSpec(K=K, cin=cin, cout=cout, dilation=dilation, pad=pad,
                        w_off=self.w_off, b_row=len(self.b_rows) - 1,
                        pre_relu=pre_relu, post_relu=post_relu,
                        push_skip=push_skip, pop_skip=pop_skip,
                        sel_idx=sel_idx, sel_rows=sr, sel_cols=sc,
                        up_idx=up_idx, up_rows=ur, up_cols=uc)
        self.w_off += K * cin
        return spec, t_out


def _build_plans(p, T):
    pk = _Packer()
    t = T
    enc = []
    s, t = pk.add_conv(p["enc_in"], t, pad=1, post_relu=True); enc.append(s)
    for blk in p["enc_down"]:
        s, t = pk.add_conv(blk["down"], t, pad=STRIDE_T // 2, stride=STRIDE_T)
        enc.append(s)
        for d in reversed(range(DEPTH)):          # Resnet1D reversed dilation order
            dil = DILATION_GROWTH_RATE ** d
            bp = blk["res"][d]
            s, t = pk.add_conv(bp["conv1"], t, pad=dil, dilation=dil,
                               pre_relu=True, push_skip=True); enc.append(s)
            s, t = pk.add_conv(bp["conv2"], t, pre_relu=True, pop_skip=True)
            enc.append(s)
    s, t = pk.add_conv(p["enc_out"], t, pad=1); enc.append(s)
    t_enc = t

    dec = []
    s, t = pk.add_conv(p["dec_in"], t, pad=1, post_relu=True); dec.append(s)
    for blk in p["dec_up"]:
        for d in reversed(range(DEPTH)):
            dil = DILATION_GROWTH_RATE ** d
            bp = blk["res"][d]
            s, t = pk.add_conv(bp["conv1"], t, pad=dil, dilation=dil,
                               pre_relu=True, push_skip=True); dec.append(s)
            s, t = pk.add_conv(bp["conv2"], t, pre_relu=True, pop_skip=True)
            dec.append(s)
        # nn.Upsample(scale_factor=2, nearest) folded in front of the conv
        s, t = pk.add_conv(blk["up"], t, pad=1, upsample_before=True); dec.append(s)
    s, t = pk.add_conv(p["dec_mid"], t, pad=1, post_relu=True); dec.append(s)
    s, t = pk.add_conv(p["dec_out"], t, pad=1); dec.append(s)
    t_dec = t

    w_slab = jnp.concatenate(pk.w_blocks, axis=0)            # (sum K*cin, 32) bf16
    b_slab = jnp.concatenate(pk.b_rows, axis=0)              # (n_convs, 32)  f32
    aux_np = (np.stack(pk.aux, axis=0) if pk.aux
              else np.zeros((1, AUX_T, AUX_T), np.float32))
    aux_slab = jnp.asarray(aux_np, jnp.bfloat16)              # (n_aux, 16, 16) bf16
    return tuple(enc), tuple(dec), w_slab, b_slab, aux_slab, t_enc, t_dec, pk.flops


# ============================ forward wrapper ================================
def rvqvae_forward(p, x, sample_codebook_temp=0.5):
    """Eval-mode RVQVAE forward.  x: (N, T, INPUT_DIM) channels-last (the
    PyTorch preprocess/postprocess permutes are layout no-ops here)."""
    # TODO(synk): quantize-dropout and gumbel sampling (sample_codebook_temp)
    # are training-time stochastic paths; eval mode uses deterministic argmin.
    N, T, _ = x.shape
    (enc_plan, dec_plan, w_slab, b_slab, aux_slab,
     t_enc, t_dec, conv_flops) = _build_plans(p, T)

    cb = jnp.stack(p["codebooks"]).astype(jnp.float32)        # (num_q, nb, cd)
    c2 = jnp.sum(cb * cb, axis=-1)[:, None, :]                # (num_q, 1, nb)

    flops = N * (conv_flops + NUM_QUANTIZERS * 4 * t_enc * NB_CODE * CODE_DIM)
    bytes_acc = (x.size * 4 + w_slab.size * 2 + b_slab.size * 4
                 + aux_slab.size * 2 + cb.size * 4 + c2.size * 4
                 + N * (t_dec * OUTPUT_DIM * 4
                        + NUM_QUANTIZERS * (2 * t_enc * 4 + NB_CODE * 4)))

    kernel = functools.partial(_fused_kernel, enc_plan=enc_plan,
                               dec_plan=dec_plan, nb_code=NB_CODE,
                               num_q=NUM_QUANTIZERS)
    const2 = lambda n: (0, 0)
    const3 = lambda n: (0, 0, 0)

    dec, idx, err, cnt = pl.pallas_call(
        kernel,
        out_shape=(
            jax.ShapeDtypeStruct((N, t_dec, OUTPUT_DIM), jnp.float32),
            jax.ShapeDtypeStruct((N, NUM_QUANTIZERS, t_enc), jnp.int32),
            jax.ShapeDtypeStruct((N, NUM_QUANTIZERS, t_enc), jnp.float32),
            jax.ShapeDtypeStruct((N, NUM_QUANTIZERS, NB_CODE), jnp.float32),
        ),
        grid=(N,),
        in_specs=[
            pl.BlockSpec((None, T, INPUT_DIM), lambda n: (n, 0, 0)),
            pl.BlockSpec(w_slab.shape, const2),     # weights stay VMEM-resident
            pl.BlockSpec(b_slab.shape, const2),
            pl.BlockSpec(aux_slab.shape, const3),
            pl.BlockSpec(cb.shape, const3),
            pl.BlockSpec(c2.shape, const3),
        ],
        out_specs=[
            pl.BlockSpec((None, t_dec, OUTPUT_DIM), lambda n: (n, 0, 0)),
            pl.BlockSpec((None, NUM_QUANTIZERS, t_enc), lambda n: (n, 0, 0)),
            pl.BlockSpec((None, NUM_QUANTIZERS, t_enc), lambda n: (n, 0, 0)),
            pl.BlockSpec((None, NUM_QUANTIZERS, NB_CODE), lambda n: (n, 0, 0)),
        ],
        compiler_params=pltpu.CompilerParams(
            dimension_semantics=("parallel",)),
        cost_estimate=pl.CostEstimate(flops=int(flops), transcendentals=0,
                                      bytes_accessed=int(bytes_acc)),
    )(x, w_slab, b_slab, aux_slab, cb, c2)

    # Tiny scalar epilogue in XLA (commit loss + perplexity from in-kernel stats).
    M = N * t_enc
    commit_losses = jnp.sum(err, axis=(0, 2)) / (M * CODE_DIM)        # (num_q,)
    counts = jnp.sum(cnt, axis=0)                                     # (num_q, nb)
    prob = counts / jnp.sum(counts, axis=-1, keepdims=True)
    perps = jnp.exp(-jnp.sum(prob * jnp.log(prob + 1e-7), axis=-1))   # (num_q,)
    code_idx = jnp.transpose(idx, (0, 2, 1))                          # (N, T_enc, num_q)
    return VQVAEOutput(decoded_motion=dec,
                       indices=code_idx,
                       commit_loss=jnp.sum(commit_losses),            # .sum()
                       perplexity=jnp.mean(perps))


# ============================ parameter init =================================
def _init_conv(key, K, cin, cout):
    kw, kb = jax.random.split(key)
    s = 1.0 / (K * cin) ** 0.5
    return {"w": jax.random.uniform(kw, (K, cin, cout), jnp.float32, -s, s),
            "b": jax.random.uniform(kb, (cout,), jnp.float32, -s, s)}


def init_params(key):
    keys = iter(jax.random.split(key, 128))
    p = {}
    p["enc_in"] = _init_conv(next(keys), 3, INPUT_DIM, WIDTH)
    p["enc_down"] = []
    for _ in range(DOWN_T):
        p["enc_down"].append({
            "down": _init_conv(next(keys), 2 * STRIDE_T, WIDTH, WIDTH),
            "res": [{"conv1": _init_conv(next(keys), 3, WIDTH, WIDTH),
                     "conv2": _init_conv(next(keys), 1, WIDTH, WIDTH)}
                    for _ in range(DEPTH)],
        })
    p["enc_out"] = _init_conv(next(keys), 3, WIDTH, CODE_DIM)

    p["dec_in"] = _init_conv(next(keys), 3, CODE_DIM, WIDTH)
    p["dec_up"] = []
    for _ in range(DOWN_T):
        p["dec_up"].append({
            "res": [{"conv1": _init_conv(next(keys), 3, WIDTH, WIDTH),
                     "conv2": _init_conv(next(keys), 1, WIDTH, WIDTH)}
                    for _ in range(DEPTH)],
            "up": _init_conv(next(keys), 3, WIDTH, WIDTH),
        })
    p["dec_mid"] = _init_conv(next(keys), 3, WIDTH, WIDTH)
    p["dec_out"] = _init_conv(next(keys), 3, WIDTH, OUTPUT_DIM)

    p["codebooks"] = [jax.random.normal(next(keys), (NB_CODE, CODE_DIM),
                                        jnp.float32)
                      for _ in range(NUM_QUANTIZERS)]
    return p


# ============================ main ===========================================
if __name__ == "__main__":
    key = jax.random.PRNGKey(0)
    kp, kx = jax.random.split(key)
    params = init_params(kp)
    x = jax.random.normal(kx, (2, 16, INPUT_DIM), jnp.float32)

    fwd = jax.jit(rvqvae_forward)
    out = fwd(params, x)
    jax.block_until_ready(out)

    T_enc = 16 // (STRIDE_T ** DOWN_T)
    assert out.decoded_motion.shape == (2, 16, OUTPUT_DIM)
    assert out.indices.shape == (2, T_enc, NUM_QUANTIZERS)
    assert out.commit_loss.shape == ()
    assert out.perplexity.shape == ()
    print("KERNEL_OK")
</pallas_src>

<mosaic_0001>
module attributes {stable_mosaic.version = 11 : i64} {
  func.func @_fused_kernel(%arg0: i32, %arg1: memref<1x16x16xf32, #tpu.memory_space<vmem>>, %arg2: memref<1904x32xbf16, #tpu.memory_space<vmem>>, %arg3: memref<25x32xf32, #tpu.memory_space<vmem>>, %arg4: memref<4x16x16xbf16, #tpu.memory_space<vmem>>, %arg5: memref<2x64x32xf32, #tpu.memory_space<vmem>>, %arg6: memref<2x1x64xf32, #tpu.memory_space<vmem>>, %arg7: memref<1x16x12xf32, #tpu.memory_space<vmem>>, %arg8: memref<1x2x4xi32, #tpu.memory_space<vmem>>, %arg9: memref<1x2x4xf32, #tpu.memory_space<vmem>>, %arg10: memref<1x2x64xf32, #tpu.memory_space<vmem>>) attributes {dimension_semantics = [#tpu.dimension_semantics<parallel>], iteration_bounds = array<i64: 2>, scalar_prefetch = 0 : i64, scratch_operands = 0 : i64, tpu.core_type = #tpu.core_type<tc>, window_params = [{transform_indices = @transform_0, window_bounds = array<i64: 1, 16, 16>}, {pipeline_mode = #tpu.pipeline_mode<synchronous>, transform_indices = @transform_1, window_bounds = array<i64: 1904, 32>}, {pipeline_mode = #tpu.pipeline_mode<synchronous>, transform_indices = @transform_2, window_bounds = array<i64: 25, 32>}, {pipeline_mode = #tpu.pipeline_mode<synchronous>, transform_indices = @transform_3, window_bounds = array<i64: 4, 16, 16>}, {pipeline_mode = #tpu.pipeline_mode<synchronous>, transform_indices = @transform_4, window_bounds = array<i64: 2, 64, 32>}, {pipeline_mode = #tpu.pipeline_mode<synchronous>, transform_indices = @transform_5, window_bounds = array<i64: 2, 1, 64>}, {transform_indices = @transform_6, window_bounds = array<i64: 1, 16, 12>}, {transform_indices = @transform_7, window_bounds = array<i64: 1, 2, 4>}, {transform_indices = @transform_8, window_bounds = array<i64: 1, 2, 4>}, {transform_indices = @transform_9, window_bounds = array<i64: 1, 2, 64>}]} {
    %c0 = arith.constant 0 : index
    %c0_0 = arith.constant 0 : index
    %c0_1 = arith.constant 0 : index
    %0 = vector.load %arg1[%c0, %c0_0, %c0_1] : memref<1x16x16xf32, #tpu.memory_space<vmem>>, vector<1x16x16xf32>
    %1 = vector.shape_cast %0 : vector<1x16x16xf32> to vector<16x16xf32>
    %cst = arith.constant 0.000000e+00 : f32
    %2 = vector.broadcast %cst : f32 to vector<1x16xf32>
    %3 = vector.extract_strided_slice %1 {offsets = [0, 0], sizes = [15, 16], strides = [1, 1]} : vector<16x16xf32> to vector<15x16xf32>
    %4 = tpu.concatenate %2, %3 in 0 : vector<1x16xf32>, vector<15x16xf32> -> vector<16x16xf32>
    %cst_2 = arith.constant 0.000000e+00 : f32
    %5 = vector.broadcast %cst_2 : f32 to vector<1x16xf32>
    %6 = vector.extract_strided_slice %1 {offsets = [1, 0], sizes = [15, 16], strides = [1, 1]} : vector<16x16xf32> to vector<15x16xf32>
    %7 = tpu.concatenate %6, %5 in 0 : vector<15x16xf32>, vector<1x16xf32> -> vector<16x16xf32>
    %8 = tpu.concatenate %4, %1, %7 in 1 : vector<16x16xf32>, vector<16x16xf32>, vector<16x16xf32> -> vector<16x48xf32>
    %9 = arith.truncf %8 : vector<16x48xf32> to vector<16x48xbf16>
    %c0_3 = arith.constant 0 : index
    %c0_4 = arith.constant 0 : index
    %10 = vector.load %arg2[%c0_3, %c0_4] : memref<1904x32xbf16, #tpu.memory_space<vmem>>, vector<48x32xbf16>
    %c0_5 = arith.constant 0 : index
    %c0_6 = arith.constant 0 : index
    %11 = vector.load %arg3[%c0_5, %c0_6] : memref<25x32xf32, #tpu.memory_space<vmem>>, vector<1x32xf32>
    %cst_7 = arith.constant dense<0.000000e+00> : vector<16x32xf32>
    %12 = tpu.matmul %9, %10, %cst_7 {dimension_numbers = #tpu.dot_dimension_numbers<[1], [0], [0], [1], [0, 0, 1, 1], [], []>} : vector<16x48xbf16>, vector<48x32xbf16>, vector<16x32xf32> -> vector<16x32xf32>
    %13 = vector.broadcast %11 : vector<1x32xf32> to vector<16x32xf32>
    %14 = arith.addf %12, %13 : vector<16x32xf32>
    %cst_8 = arith.constant 0.000000e+00 : f32
    %15 = vector.broadcast %cst_8 : f32 to vector<16x32xf32>
    %16 = arith.maximumf %14, %15 : vector<16x32xf32>
    %cst_9 = arith.constant 0.000000e+00 : f32
    %17 = vector.broadcast %cst_9 : f32 to vector<1x32xf32>
    %18 = vector.extract_strided_slice %16 {offsets = [0, 0], sizes = [15, 32], strides = [1, 1]} : vector<16x32xf32> to vector<15x32xf32>
    %19 = tpu.concatenate %17, %18 in 0 : vector<1x32xf32>, vector<15x32xf32> -> vector<16x32xf32>
    %cst_10 = arith.constant 0.000000e+00 : f32
    %20 = vector.broadcast %cst_10 : f32 to vector<1x32xf32>
    %21 = vector.extract_strided_slice %16 {offsets = [1, 0], sizes = [15, 32], strides = [1, 1]} : vector<16x32xf32> to vector<15x32xf32>
    %22 = tpu.concatenate %21, %20 in 0 : vector<15x32xf32>, vector<1x32xf32> -> vector<16x32xf32>
    %cst_11 = arith.constant 0.000000e+00 : f32
    %23 = vector.broadcast %cst_11 : f32 to vector<2x32xf32>
    %24 = vector.extract_strided_slice %16 {offsets = [2, 0], sizes = [14, 32], strides = [1, 1]} : vector<16x32xf32> to vector<14x32xf32>
    %25 = tpu.concatenate %24, %23 in 0 : vector<14x32xf32>, vector<2x32xf32> -> vector<16x32xf32>
    %26 = tpu.concatenate %19, %16, %22, %25 in 1 : vector<16x32xf32>, vector<16x32xf32>, vector<16x32xf32>, vector<16x32xf32> -> vector<16x128xf32>
    %27 = arith.truncf %26 : vector<16x128xf32> to vector<16x128xbf16>
    %c0_12 = arith.constant 0 : index
    %c0_13 = arith.constant 0 : index
    %c0_14 = arith.constant 0 : index
    %28 = vector.load %arg4[%c0_12, %c0_13, %c0_14] : memref<4x16x16xbf16, #tpu.memory_space<vmem>>, vector<1x16x16xbf16>
    %29 = vector.shape_cast %28 : vector<1x16x16xbf16> to vector<16x16xbf16>
    %30 = vector.extract_strided_slice %29 {offsets = [0, 0], sizes = [8, 16], strides = [1, 1]} : vector<16x16xbf16> to vector<8x16xbf16>
    %cst_15 = arith.constant dense<0.000000e+00> : vector<8x128xf32>
    %31 = tpu.matmul %30, %27, %cst_15 {dimension_numbers = #tpu.dot_dimension_numbers<[1], [0], [0], [1], [0, 0, 1, 1], [], []>} : vector<8x16xbf16>, vector<16x128xbf16>, vector<8x128xf32> -> vector<8x128xf32>
    %32 = arith.truncf %31 : vector<8x128xf32> to vector<8x128xbf16>
    %c48 = arith.constant 48 : index
    %c0_16 = arith.constant 0 : index
    %33 = vector.load %arg2[%c48, %c0_16] : memref<1904x32xbf16, #tpu.memory_space<vmem>>, vector<128x32xbf16>
    %c1 = arith.constant 1 : index
    %c0_17 = arith.constant 0 : index
    %34 = vector.load %arg3[%c1, %c0_17] : memref<25x32xf32, #tpu.memory_space<vmem>>, vector<1x32xf32>
    %cst_18 = arith.constant dense<0.000000e+00> : vector<8x32xf32>
    %35 = tpu.matmul %32, %33, %cst_18 {dimension_numbers = #tpu.dot_dimension_numbers<[1], [0], [0], [1], [0, 0, 1, 1], [], []>} : vector<8x128xbf16>, vector<128x32xbf16>, vector<8x32xf32> -> vector<8x32xf32>
    %36 = vector.broadcast %34 : vector<1x32xf32> to vector<8x32xf32>
    %37 = arith.addf %35, %36 : vector<8x32xf32>
    %cst_19 = arith.constant 0.000000e+00 : f32
    %38 = vector.broadcast %cst_19 : f32 to vector<8x32xf32>
    %39 = arith.maximumf %37, %38 : vector<8x32xf32>
    %cst_20 = arith.constant 0.000000e+00 : f32
    %40 = vector.broadcast %cst_20 : f32 to vector<3x32xf32>
    %41 = vector.extract_strided_slice %39 {offsets = [0, 0], sizes = [5, 32], strides = [1, 1]} : vector<8x32xf32> to vector<5x32xf32>
    %42 = tpu.concatenate %40, %41 in 0 : vector<3x32xf32>, vector<5x32xf32> -> vector<8x32xf32>
    %cst_21 = arith.constant 0.000000e+00 : f32
    %43 = vector.broadcast %cst_21 : f32 to vector<3x32xf32>
    %44 = vector.extract_strided_slice %39 {offsets = [3, 0], sizes = [5, 32], strides = [1, 1]} : vector<8x32xf32> to vector<5x32xf32>
    %45 = tpu.concatenate %44, %43 in 0 : vector<5x32xf32>, vector<3x32xf32> -> vector<8x32xf32>
    %46 = tpu.concatenate %42, %39, %45 in 1 : vector<8x32xf32>, vector<8x32xf32>, vector<8x32xf32> -> vector<8x96xf32>
    %47 = arith.truncf %46 : vector<8x96xf32> to vector<8x96xbf16>
    %c176 = arith.constant 176 : index
    %c0_22 = arith.constant 0 : index
    %48 = vector.load %arg2[%c176, %c0_22] : memref<1904x32xbf16, #tpu.memory_space<vmem>>, vector<96x32xbf16>
    %c2 = arith.constant 2 : index
    %c0_23 = arith.constant 0 : index
    %49 = vector.load %arg3[%c2, %c0_23] : memref<25x32xf32, #tpu.memory_space<vmem>>, vector<1x32xf32>
    %cst_24 = arith.constant dense<0.000000e+00> : vector<8x32xf32>
    %50 = tpu.matmul %47, %48, %cst_24 {dimension_numbers = #tpu.dot_dimension_numbers<[1], [0], [0], [1], [0, 0, 1, 1], [], []>} : vector<8x96xbf16>, vector<96x32xbf16>, vector<8x32xf32> -> vector<8x32xf32>
    %51 = vector.broadcast %49 : vector<1x32xf32> to vector<8x32xf32>
    %52 = arith.addf %50, %51 : vector<8x32xf32>
    %cst_25 = arith.constant 0.000000e+00 : f32
    %53 = vector.broadcast %cst_25 : f32 to vector<8x32xf32>
    %54 = arith.maximumf %52, %53 : vector<8x32xf32>
    %55 = arith.truncf %54 : vector<8x32xf32> to vector<8x32xbf16>
    %c272 = arith.constant 272 : index
    %c0_26 = arith.constant 0 : index
    %56 = vector.load %arg2[%c272, %c0_26] : memref<1904x32xbf16, #tpu.memory_space<vmem>>, vector<32x32xbf16>
    %c3 = arith.constant 3 : index
    %c0_27 = arith.constant 0 : index
    %57 = vector.load %arg3[%c3, %c0_27] : memref<25x32xf32, #tpu.memory_space<vmem>>, vector<1x32xf32>
    %cst_28 = arith.constant dense<0.000000e+00> : vector<8x32xf32>
    %58 = tpu.matmul %55, %56, %cst_28 {dimension_numbers = #tpu.dot_dimension_numbers<[1], [0], [0], [1], [0, 0, 1, 1], [], []>} : vector<8x32xbf16>, vector<32x32xbf16>, vector<8x32xf32> -> vector<8x32xf32>
    %59 = vector.broadcast %57 : vector<1x32xf32> to vector<8x32xf32>
    %60 = arith.addf %58, %59 : vector<8x32xf32>
    %61 = arith.addf %60, %37 : vector<8x32xf32>
    %cst_29 = arith.constant 0.000000e+00 : f32
    %62 = vector.broadcast %cst_29 : f32 to vector<8x32xf32>
    %63 = arith.maximumf %61, %62 : vector<8x32xf32>
    %cst_30 = arith.constant 0.000000e+00 : f32
    %64 = vector.broadcast %cst_30 : f32 to vector<1x32xf32>
    %65 = vector.extract_strided_slice %63 {offsets = [0, 0], sizes = [7, 32], strides = [1, 1]} : vector<8x32xf32> to vector<7x32xf32>
    %66 = tpu.concatenate %64, %65 in 0 : vector<1x32xf32>, vector<7x32xf32> -> vector<8x32xf32>
    %cst_31 = arith.constant 0.000000e+00 : f32
    %67 = vector.broadcast %cst_31 : f32 to vector<1x32xf32>
    %68 = vector.extract_strided_slice %63 {offsets = [1, 0], sizes = [7, 32], strides = [1, 1]} : vector<8x32xf32> to vector<7x32xf32>
    %69 = tpu.concatenate %68, %67 in 0 : vector<7x32xf32>, vector<1x32xf32> -> vector<8x32xf32>
    %70 = tpu.concatenate %66, %63, %69 in 1 : vector<8x32xf32>, vector<8x32xf32>, vector<8x32xf32> -> vector<8x96xf32>
    %71 = arith.truncf %70 : vector<8x96xf32> to vector<8x96xbf16>
    %c304 = arith.constant 304 : index
    %c0_32 = arith.constant 0 : index
    %72 = vector.load %arg2[%c304, %c0_32] : memref<1904x32xbf16, #tpu.memory_space<vmem>>, vector<96x32xbf16>
    %c4 = arith.constant 4 : index
    %c0_33 = arith.constant 0 : index
    %73 = vector.load %arg3[%c4, %c0_33] : memref<25x32xf32, #tpu.memory_space<vmem>>, vector<1x32xf32>
    %cst_34 = arith.constant dense<0.000000e+00> : vector<8x32xf32>
    %74 = tpu.matmul %71, %72, %cst_34 {dimension_numbers = #tpu.dot_dimension_numbers<[1], [0], [0], [1], [0, 0, 1, 1], [], []>} : vector<8x96xbf16>, vector<96x32xbf16>, vector<8x32xf32> -> vector<8x32xf32>
    %75 = vector.broadcast %73 : vector<1x32xf32> to vector<8x32xf32>
    %76 = arith.addf %74, %75 : vector<8x32xf32>
    %cst_35 = arith.constant 0.000000e+00 : f32
    %77 = vector.broadcast %cst_35 : f32 to vector<8x32xf32>
    %78 = arith.maximumf %76, %77 : vector<8x32xf32>
    %79 = arith.truncf %78 : vector<8x32xf32> to vector<8x32xbf16>
    %c400 = arith.constant 400 : index
    %c0_36 = arith.constant 0 : index
    %80 = vector.load %arg2[%c400, %c0_36] : memref<1904x32xbf16, #tpu.memory_space<vmem>>, vector<32x32xbf16>
    %c5 = arith.constant 5 : index
    %c0_37 = arith.constant 0 : index
    %81 = vector.load %arg3[%c5, %c0_37] : memref<25x32xf32, #tpu.memory_space<vmem>>, vector<1x32xf32>
    %cst_38 = arith.constant dense<0.000000e+00> : vector<8x32xf32>
    %82 = tpu.matmul %79, %80, %cst_38 {dimension_numbers = #tpu.dot_dimension_numbers<[1], [0], [0], [1], [0, 0, 1, 1], [], []>} : vector<8x32xbf16>, vector<32x32xbf16>, vector<8x32xf32> -> vector<8x32xf32>
    %83 = vector.broadcast %81 : vector<1x32xf32> to vector<8x32xf32>
    %84 = arith.addf %82, %83 : vector<8x32xf32>
    %85 = arith.addf %84, %61 : vector<8x32xf32>
    %cst_39 = arith.constant 0.000000e+00 : f32
    %86 = vector.broadcast %cst_39 : f32 to vector<1x32xf32>
    %87 = vector.extract_strided_slice %85 {offsets = [0, 0], sizes = [7, 32], strides = [1, 1]} : vector<8x32xf32> to vector<7x32xf32>
    %88 = tpu.concatenate %86, %87 in 0 : vector<1x32xf32>, vector<7x32xf32> -> vector<8x32xf32>
    %cst_40 = arith.constant 0.000000e+00 : f32
    %89 = vector.broadcast %cst_40 : f32 to vector<1x32xf32>
    %90 = vector.extract_strided_slice %85 {offsets = [1, 0], sizes = [7, 32], strides = [1, 1]} : vector<8x32xf32> to vector<7x32xf32>
    %91 = tpu.concatenate %90, %89 in 0 : vector<7x32xf32>, vector<1x32xf32> -> vector<8x32xf32>
    %cst_41 = arith.constant 0.000000e+00 : f32
    %92 = vector.broadcast %cst_41 : f32 to vector<2x32xf32>
    %93 = vector.extract_strided_slice %85 {offsets = [2, 0], sizes = [6, 32], strides = [1, 1]} : vector<8x32xf32> to vector<6x32xf32>
    %94 = tpu.concatenate %93, %92 in 0 : vector<6x32xf32>, vector<2x32xf32> -> vector<8x32xf32>
    %95 = tpu.concatenate %88, %85, %91, %94 in 1 : vector<8x32xf32>, vector<8x32xf32>, vector<8x32xf32>, vector<8x32xf32> -> vector<8x128xf32>
    %96 = arith.truncf %95 : vector<8x128xf32> to vector<8x128xbf16>
    %c1_42 = arith.constant 1 : index
    %c0_43 = arith.constant 0 : index
    %c0_44 = arith.constant 0 : index
    %97 = vector.load %arg4[%c1_42, %c0_43, %c0_44] : memref<4x16x16xbf16, #tpu.memory_space<vmem>>, vector<1x16x16xbf16>
    %98 = vector.shape_cast %97 : vector<1x16x16xbf16> to vector<16x16xbf16>
    %99 = vector.extract_strided_slice %98 {offsets = [0, 0], sizes = [4, 8], strides = [1, 1]} : vector<16x16xbf16> to vector<4x8xbf16>
    %cst_45 = arith.constant dense<0.000000e+00> : vector<4x128xf32>
    %100 = tpu.matmul %99, %96, %cst_45 {dimension_numbers = #tpu.dot_dimension_numbers<[1], [0], [0], [1], [0, 0, 1, 1], [], []>} : vector<4x8xbf16>, vector<8x128xbf16>, vector<4x128xf32> -> vector<4x128xf32>
    %101 = arith.truncf %100 : vector<4x128xf32> to vector<4x128xbf16>
    %c432 = arith.constant 432 : index
    %c0_46 = arith.constant 0 : index
    %102 = vector.load %arg2[%c432, %c0_46] : memref<1904x32xbf16, #tpu.memory_space<vmem>>, vector<128x32xbf16>
    %c6 = arith.constant 6 : index
    %c0_47 = arith.constant 0 : index
    %103 = vector.load %arg3[%c6, %c0_47] : memref<25x32xf32, #tpu.memory_space<vmem>>, vector<1x32xf32>
    %cst_48 = arith.constant dense<0.000000e+00> : vector<4x32xf32>
    %104 = tpu.matmul %101, %102, %cst_48 {dimension_numbers = #tpu.dot_dimension_numbers<[1], [0], [0], [1], [0, 0, 1, 1], [], []>} : vector<4x128xbf16>, vector<128x32xbf16>, vector<4x32xf32> -> vector<4x32xf32>
    %105 = vector.broadcast %103 : vector<1x32xf32> to vector<4x32xf32>
    %106 = arith.addf %104, %105 : vector<4x32xf32>
    %cst_49 = arith.constant 0.000000e+00 : f32
    %107 = vector.broadcast %cst_49 : f32 to vector<4x32xf32>
    %108 = arith.maximumf %106, %107 : vector<4x32xf32>
    %cst_50 = arith.constant 0.000000e+00 : f32
    %109 = vector.broadcast %cst_50 : f32 to vector<3x32xf32>
    %110 = vector.extract_strided_slice %108 {offsets = [0, 0], sizes = [1, 32], strides = [1, 1]} : vector<4x32xf32> to vector<1x32xf32>
    %111 = tpu.concatenate %109, %110 in 0 : vector<3x32xf32>, vector<1x32xf32> -> vector<4x32xf32>
    %cst_51 = arith.constant 0.000000e+00 : f32
    %112 = vector.broadcast %cst_51 : f32 to vector<3x32xf32>
    %113 = vector.extract_strided_slice %108 {offsets = [3, 0], sizes = [1, 32], strides = [1, 1]} : vector<4x32xf32> to vector<1x32xf32>
    %114 = tpu.concatenate %113, %112 in 0 : vector<1x32xf32>, vector<3x32xf32> -> vector<4x32xf32>
    %115 = tpu.concatenate %111, %108, %114 in 1 : vector<4x32xf32>, vector<4x32xf32>, vector<4x32xf32> -> vector<4x96xf32>
    %116 = arith.truncf %115 : vector<4x96xf32> to vector<4x96xbf16>
    %c560 = arith.constant 560 : index
    %c0_52 = arith.constant 0 : index
    %117 = vector.load %arg2[%c560, %c0_52] : memref<1904x32xbf16, #tpu.memory_space<vmem>>, vector<96x32xbf16>
    %c7 = arith.constant 7 : index
    %c0_53 = arith.constant 0 : index
    %118 = vector.load %arg3[%c7, %c0_53] : memref<25x32xf32, #tpu.memory_space<vmem>>, vector<1x32xf32>
    %cst_54 = arith.constant dense<0.000000e+00> : vector<4x32xf32>
    %119 = tpu.matmul %116, %117, %cst_54 {dimension_numbers = #tpu.dot_dimension_numbers<[1], [0], [0], [1], [0, 0, 1, 1], [], []>} : vector<4x96xbf16>, vector<96x32xbf16>, vector<4x32xf32> -> vector<4x32xf32>
    %120 = vector.broadcast %118 : vector<1x32xf32> to vector<4x32xf32>
    %121 = arith.addf %119, %120 : vector<4x32xf32>
    %cst_55 = arith.constant 0.000000e+00 : f32
    %122 = vector.broadcast %cst_55 : f32 to vector<4x32xf32>
    %123 = arith.maximumf %121, %122 : vector<4x32xf32>
    %124 = arith.truncf %123 : vector<4x32xf32> to vector<4x32xbf16>
    %c656 = arith.constant 656 : index
    %c0_56 = arith.constant 0 : index
    %125 = vector.load %arg2[%c656, %c0_56] : memref<1904x32xbf16, #tpu.memory_space<vmem>>, vector<32x32xbf16>
    %c8 = arith.constant 8 : index
    %c0_57 = arith.constant 0 : index
    %126 = vector.load %arg3[%c8, %c0_57] : memref<25x32xf32, #tpu.memory_space<vmem>>, vector<1x32xf32>
    %cst_58 = arith.constant dense<0.000000e+00> : vector<4x32xf32>
    %127 = tpu.matmul %124, %125, %cst_58 {dimension_numbers = #tpu.dot_dimension_numbers<[1], [0], [0], [1], [0, 0, 1, 1], [], []>} : vector<4x32xbf16>, vector<32x32xbf16>, vector<4x32xf32> -> vector<4x32xf32>
    %128 = vector.broadcast %126 : vector<1x32xf32> to vector<4x32xf32>
    %129 = arith.addf %127, %128 : vector<4x32xf32>
    %130 = arith.addf %129, %106 : vector<4x32xf32>
    %cst_59 = arith.constant 0.000000e+00 : f32
    %131 = vector.broadcast %cst_59 : f32 to vector<4x32xf32>
    %132 = arith.maximumf %130, %131 : vector<4x32xf32>
    %cst_60 = arith.constant 0.000000e+00 : f32
    %133 = vector.broadcast %cst_60 : f32 to vector<1x32xf32>
    %134 = vector.extract_strided_slice %132 {offsets = [0, 0], sizes = [3, 32], strides = [1, 1]} : vector<4x32xf32> to vector<3x32xf32>
    %135 = tpu.concatenate %133, %134 in 0 : vector<1x32xf32>, vector<3x32xf32> -> vector<4x32xf32>
    %cst_61 = arith.constant 0.000000e+00 : f32
    %136 = vector.broadcast %cst_61 : f32 to vector<1x32xf32>
    %137 = vector.extract_strided_slice %132 {offsets = [1, 0], sizes = [3, 32], strides = [1, 1]} : vector<4x32xf32> to vector<3x32xf32>
    %138 = tpu.concatenate %137, %136 in 0 : vector<3x32xf32>, vector<1x32xf32> -> vector<4x32xf32>
    %139 = tpu.concatenate %135, %132, %138 in 1 : vector<4x32xf32>, vector<4x32xf32>, vector<4x32xf32> -> vector<4x96xf32>
    %140 = arith.truncf %139 : vector<4x96xf32> to vector<4x96xbf16>
    %c688 = arith.constant 688 : index
    %c0_62 = arith.constant 0 : index
    %141 = vector.load %arg2[%c688, %c0_62] : memref<1904x32xbf16, #tpu.memory_space<vmem>>, vector<96x32xbf16>
    %c9 = arith.constant 9 : index
    %c0_63 = arith.constant 0 : index
    %142 = vector.load %arg3[%c9, %c0_63] : memref<25x32xf32, #tpu.memory_space<vmem>>, vector<1x32xf32>
    %cst_64 = arith.constant dense<0.000000e+00> : vector<4x32xf32>
    %143 = tpu.matmul %140, %141, %cst_64 {dimension_numbers = #tpu.dot_dimension_numbers<[1], [0], [0], [1], [0, 0, 1, 1], [], []>} : vector<4x96xbf16>, vector<96x32xbf16>, vector<4x32xf32> -> vector<4x32xf32>
    %144 = vector.broadcast %142 : vector<1x32xf32> to vector<4x32xf32>
    %145 = arith.addf %143, %144 : vector<4x32xf32>
    %cst_65 = arith.constant 0.000000e+00 : f32
    %146 = vector.broadcast %cst_65 : f32 to vector<4x32xf32>
    %147 = arith.maximumf %145, %146 : vector<4x32xf32>
    %148 = arith.truncf %147 : vector<4x32xf32> to vector<4x32xbf16>
    %c784 = arith.constant 784 : index
    %c0_66 = arith.constant 0 : index
    %149 = vector.load %arg2[%c784, %c0_66] : memref<1904x32xbf16, #tpu.memory_space<vmem>>, vector<32x32xbf16>
    %c10 = arith.constant 10 : index
    %c0_67 = arith.constant 0 : index
    %150 = vector.load %arg3[%c10, %c0_67] : memref<25x32xf32, #tpu.memory_space<vmem>>, vector<1x32xf32>
    %cst_68 = arith.constant dense<0.000000e+00> : vector<4x32xf32>
    %151 = tpu.matmul %148, %149, %cst_68 {dimension_numbers = #tpu.dot_dimension_numbers<[1], [0], [0], [1], [0, 0, 1, 1], [], []>} : vector<4x32xbf16>, vector<32x32xbf16>, vector<4x32xf32> -> vector<4x32xf32>
    %152 = vector.broadcast %150 : vector<1x32xf32> to vector<4x32xf32>
    %153 = arith.addf %151, %152 : vector<4x32xf32>
    %154 = arith.addf %153, %130 : vector<4x32xf32>
    %cst_69 = arith.constant 0.000000e+00 : f32
    %155 = vector.broadcast %cst_69 : f32 to vector<1x32xf32>
    %156 = vector.extract_strided_slice %154 {offsets = [0, 0], sizes = [3, 32], strides = [1, 1]} : vector<4x32xf32> to vector<3x32xf32>
    %157 = tpu.concatenate %155, %156 in 0 : vector<1x32xf32>, vector<3x32xf32> -> vector<4x32xf32>
    %cst_70 = arith.constant 0.000000e+00 : f32
    %158 = vector.broadcast %cst_70 : f32 to vector<1x32xf32>
    %159 = vector.extract_strided_slice %154 {offsets = [1, 0], sizes = [3, 32], strides = [1, 1]} : vector<4x32xf32> to vector<3x32xf32>
    %160 = tpu.concatenate %159, %158 in 0 : vector<3x32xf32>, vector<1x32xf32> -> vector<4x32xf32>
    %161 = tpu.concatenate %157, %154, %160 in 1 : vector<4x32xf32>, vector<4x32xf32>, vector<4x32xf32> -> vector<4x96xf32>
    %162 = arith.truncf %161 : vector<4x96xf32> to vector<4x96xbf16>
    %c816 = arith.constant 816 : index
    %c0_71 = arith.constant 0 : index
    %163 = vector.load %arg2[%c816, %c0_71] : memref<1904x32xbf16, #tpu.memory_space<vmem>>, vector<96x32xbf16>
    %c11 = arith.constant 11 : index
    %c0_72 = arith.constant 0 : index
    %164 = vector.load %arg3[%c11, %c0_72] : memref<25x32xf32, #tpu.memory_space<vmem>>, vector<1x32xf32>
    %cst_73 = arith.constant dense<0.000000e+00> : vector<4x32xf32>
    %165 = tpu.matmul %162, %163, %cst_73 {dimension_numbers = #tpu.dot_dimension_numbers<[1], [0], [0], [1], [0, 0, 1, 1], [], []>} : vector<4x96xbf16>, vector<96x32xbf16>, vector<4x32xf32> -> vector<4x32xf32>
    %166 = vector.broadcast %164 : vector<1x32xf32> to vector<4x32xf32>
    %167 = arith.addf %165, %166 : vector<4x32xf32>
    %168 = tpu.iota {dimensions = array<i32: 1>} : vector<4x64xi32>
    %cst_74 = arith.constant 0.000000e+00 : f32
    %169 = vector.broadcast %cst_74 : f32 to vector<4x32xf32>
    %c0_75 = arith.constant 0 : index
    %c0_76 = arith.constant 0 : index
    %c0_77 = arith.constant 0 : index
    %170 = vector.load %arg5[%c0_75, %c0_76, %c0_77] : memref<2x64x32xf32, #tpu.memory_space<vmem>>, vector<1x64x32xf32>
    %171 = vector.shape_cast %170 : vector<1x64x32xf32> to vector<64x32xf32>
    %cst_78 = arith.constant dense<0.000000e+00> : vector<4x64xf32>
    %172 = tpu.matmul %167, %171, %cst_78 {dimension_numbers = #tpu.dot_dimension_numbers<[1], [1], [0], [0], [0, 0, 1, 0], [], []>} : vector<4x32xf32>, vector<64x32xf32>, vector<4x64xf32> -> vector<4x64xf32>
    %c0_79 = arith.constant 0 : index
    %c0_80 = arith.constant 0 : index
    %c0_81 = arith.constant 0 : index
    %173 = vector.load %arg6[%c0_79, %c0_80, %c0_81] : memref<2x1x64xf32, #tpu.memory_space<vmem>>, vector<1x1x64xf32>
    %174 = vector.shape_cast %173 : vector<1x1x64xf32> to vector<1x64xf32>
    %cst_82 = arith.constant 2.000000e+00 : f32
    %175 = vector.broadcast %cst_82 : f32 to vector<4x64xf32>
    %176 = arith.mulf %175, %172 : vector<4x64xf32>
    %177 = vector.broadcast %174 : vector<1x64xf32> to vector<4x64xf32>
    %178 = arith.subf %177, %176 : vector<4x64xf32>
    %cst_83 = arith.constant dense<0x7F800000> : vector<4xf32>
    %179 = vector.multi_reduction <minimumf>, %178, %cst_83 [1] : vector<4x64xf32> to vector<4xf32>
    %180 = vector.shape_cast %179 : vector<4xf32> to vector<4x1xf32>
    %181 = vector.broadcast %180 : vector<4x1xf32> to vector<4x64xf32>
    %182 = arith.cmpf ole, %178, %181 : vector<4x64xf32>
    %c64_i32 = arith.constant 64 : i32
    %183 = vector.broadcast %c64_i32 : i32 to vector<4x64xi32>
    %184 = arith.select %182, %168, %183 : vector<4x64xi1>, vector<4x64xi32>
    %cst_84 = arith.constant dense<2147483647> : vector<4xi32>
    %185 = vector.multi_reduction <minsi>, %184, %cst_84 [1] : vector<4x64xi32> to vector<4xi32>
    %186 = vector.shape_cast %185 : vector<4xi32> to vector<4x1xi32>
    %187 = vector.broadcast %186 : vector<4x1xi32> to vector<4x64xi32>
    %188 = arith.cmpi eq, %168, %187 : vector<4x64xi32>
    %189 = arith.extui %188 : vector<4x64xi1> to vector<4x64xi32>
    %190 = arith.sitofp %189 : vector<4x64xi32> to vector<4x64xf32>
    %cst_85 = arith.constant dense<0.000000e+00> : vector<4x32xf32>
    %191 = tpu.matmul %190, %171, %cst_85 {dimension_numbers = #tpu.dot_dimension_numbers<[1], [0], [0], [1], [0, 0, 1, 1], [], []>} : vector<4x64xf32>, vector<64x32xf32>, vector<4x32xf32> -> vector<4x32xf32>
    %192 = arith.mulf %167, %167 : vector<4x32xf32>
    %cst_86 = arith.constant dense<0.000000e+00> : vector<4xf32>
    %193 = vector.multi_reduction <add>, %192, %cst_86 [1] : vector<4x32xf32> to vector<4xf32>
    %cst_87 = arith.constant dense<0x7F800000> : vector<4xf32>
    %194 = vector.multi_reduction <minimumf>, %178, %cst_87 [1] : vector<4x64xf32> to vector<4xf32>
    %195 = arith.addf %193, %194 : vector<4xf32>
    %cst_88 = arith.constant 0.000000e+00 : f32
    %196 = vector.broadcast %cst_88 : f32 to vector<4xf32>
    %197 = arith.maximumf %195, %196 : vector<4xf32>
    %198 = vector.shape_cast %185 : vector<4xi32> to vector<1x4xi32>
    %c0_89 = arith.constant 0 : index
    %c0_90 = arith.constant 0 : index
    %c0_91 = arith.constant 0 : index
    %199 = vector.load %arg8[%c0_89, %c0_90, %c0_91] : memref<1x2x4xi32, #tpu.memory_space<vmem>>, vector<1x1x4xi32>
    %200 = vector.shape_cast %199 : vector<1x1x4xi32> to vector<1x4xi32>
    %201 = vector.shape_cast %198 : vector<1x4xi32> to vector<1x1x4xi32>
    tpu.vector_store %arg8[%c0_89, %c0_90, %c0_91], %201 {strides = array<i32>} : memref<1x2x4xi32, #tpu.memory_space<vmem>>, vector<1x1x4xi32>,
    %202 = vector.shape_cast %197 : vector<4xf32> to vector<1x4xf32>
    %c0_92 = arith.constant 0 : index
    %c0_93 = arith.constant 0 : index
    %c0_94 = arith.constant 0 : index
    %203 = vector.load %arg9[%c0_92, %c0_93, %c0_94] : memref<1x2x4xf32, #tpu.memory_space<vmem>>, vector<1x1x4xf32>
    %204 = vector.shape_cast %203 : vector<1x1x4xf32> to vector<1x4xf32>
    %205 = vector.shape_cast %202 : vector<1x4xf32> to vector<1x1x4xf32>
    tpu.vector_store %arg9[%c0_92, %c0_93, %c0_94], %205 {strides = array<i32>} : memref<1x2x4xf32, #tpu.memory_space<vmem>>, vector<1x1x4xf32>,
    %cst_95 = arith.constant dense<0.000000e+00> : vector<64xf32>
    %206 = vector.multi_reduction <add>, %190, %cst_95 [0] : vector<4x64xf32> to vector<64xf32>
    %207 = vector.shape_cast %206 : vector<64xf32> to vector<1x64xf32>
    %c0_96 = arith.constant 0 : index
    %c0_97 = arith.constant 0 : index
    %c0_98 = arith.constant 0 : index
    %208 = vector.load %arg10[%c0_96, %c0_97, %c0_98] : memref<1x2x64xf32, #tpu.memory_space<vmem>>, vector<1x1x64xf32>
    %209 = vector.shape_cast %208 : vector<1x1x64xf32> to vector<1x64xf32>
    %210 = vector.shape_cast %207 : vector<1x64xf32> to vector<1x1x64xf32>
    tpu.vector_store %arg10[%c0_96, %c0_97, %c0_98], %210 {strides = array<i32>} : memref<1x2x64xf32, #tpu.memory_space<vmem>>, vector<1x1x64xf32>,
    %211 = arith.addf %169, %191 : vector<4x32xf32>
    %212 = arith.subf %167, %191 : vector<4x32xf32>
    %c1_99 = arith.constant 1 : index
    %c0_100 = arith.constant 0 : index
    %c0_101 = arith.constant 0 : index
    %213 = vector.load %arg5[%c1_99, %c0_100, %c0_101] : memref<2x64x32xf32, #tpu.memory_space<vmem>>, vector<1x64x32xf32>
    %214 = vector.shape_cast %213 : vector<1x64x32xf32> to vector<64x32xf32>
    %cst_102 = arith.constant dense<0.000000e+00> : vector<4x64xf32>
    %215 = tpu.matmul %212, %214, %cst_102 {dimension_numbers = #tpu.dot_dimension_numbers<[1], [1], [0], [0], [0, 0, 1, 0], [], []>} : vector<4x32xf32>, vector<64x32xf32>, vector<4x64xf32> -> vector<4x64xf32>
    %c1_103 = arith.constant 1 : index
    %c0_104 = arith.constant 0 : index
    %c0_105 = arith.constant 0 : index
    %216 = vector.load %arg6[%c1_103, %c0_104, %c0_105] : memref<2x1x64xf32, #tpu.memory_space<vmem>>, vector<1x1x64xf32>
    %217 = vector.shape_cast %216 : vector<1x1x64xf32> to vector<1x64xf32>
    %cst_106 = arith.constant 2.000000e+00 : f32
    %218 = vector.broadcast %cst_106 : f32 to vector<4x64xf32>
    %219 = arith.mulf %218, %215 : vector<4x64xf32>
    %220 = vector.broadcast %217 : vector<1x64xf32> to vector<4x64xf32>
    %221 = arith.subf %220, %219 : vector<4x64xf32>
    %cst_107 = arith.constant dense<0x7F800000> : vector<4xf32>
    %222 = vector.multi_reduction <minimumf>, %221, %cst_107 [1] : vector<4x64xf32> to vector<4xf32>
    %223 = vector.shape_cast %222 : vector<4xf32> to vector<4x1xf32>
    %224 = vector.broadcast %223 : vector<4x1xf32> to vector<4x64xf32>
    %225 = arith.cmpf ole, %221, %224 : vector<4x64xf32>
    %c64_i32_108 = arith.constant 64 : i32
    %226 = vector.broadcast %c64_i32_108 : i32 to vector<4x64xi32>
    %227 = arith.select %225, %168, %226 : vector<4x64xi1>, vector<4x64xi32>
    %cst_109 = arith.constant dense<2147483647> : vector<4xi32>
    %228 = vector.multi_reduction <minsi>, %227, %cst_109 [1] : vector<4x64xi32> to vector<4xi32>
    %229 = vector.shape_cast %228 : vector<4xi32> to vector<4x1xi32>
    %230 = vector.broadcast %229 : vector<4x1xi32> to vector<4x64xi32>
    %231 = arith.cmpi eq, %168, %230 : vector<4x64xi32>
    %232 = arith.extui %231 : vector<4x64xi1> to vector<4x64xi32>
    %233 = arith.sitofp %232 : vector<4x64xi32> to vector<4x64xf32>
    %cst_110 = arith.constant dense<0.000000e+00> : vector<4x32xf32>
    %234 = tpu.matmul %233, %214, %cst_110 {dimension_numbers = #tpu.dot_dimension_numbers<[1], [0], [0], [1], [0, 0, 1, 1], [], []>} : vector<4x64xf32>, vector<64x32xf32>, vector<4x32xf32> -> vector<4x32xf32>
    %235 = arith.mulf %212, %212 : vector<4x32xf32>
    %cst_111 = arith.constant dense<0.000000e+00> : vector<4xf32>
    %236 = vector.multi_reduction <add>, %235, %cst_111 [1] : vector<4x32xf32> to vector<4xf32>
    %cst_112 = arith.constant dense<0x7F800000> : vector<4xf32>
    %237 = vector.multi_reduction <minimumf>, %221, %cst_112 [1] : vector<4x64xf32> to vector<4xf32>
    %238 = arith.addf %236, %237 : vector<4xf32>
    %cst_113 = arith.constant 0.000000e+00 : f32
    %239 = vector.broadcast %cst_113 : f32 to vector<4xf32>
    %240 = arith.maximumf %238, %239 : vector<4xf32>
    %241 = vector.shape_cast %228 : vector<4xi32> to vector<1x4xi32>
    %c0_114 = arith.constant 0 : index
    %c1_115 = arith.constant 1 : index
    %c0_116 = arith.constant 0 : index
    %242 = vector.load %arg8[%c0_114, %c1_115, %c0_116] : memref<1x2x4xi32, #tpu.memory_space<vmem>>, vector<1x1x4xi32>
    %243 = vector.shape_cast %242 : vector<1x1x4xi32> to vector<1x4xi32>
    %244 = vector.shape_cast %241 : vector<1x4xi32> to vector<1x1x4xi32>
    tpu.vector_store %arg8[%c0_114, %c1_115, %c0_116], %244 {strides = array<i32>} : memref<1x2x4xi32, #tpu.memory_space<vmem>>, vector<1x1x4xi32>,
    %245 = vector.shape_cast %240 : vector<4xf32> to vector<1x4xf32>
    %c0_117 = arith.constant 0 : index
    %c1_118 = arith.constant 1 : index
    %c0_119 = arith.constant 0 : index
    %246 = vector.load %arg9[%c0_117, %c1_118, %c0_119] : memref<1x2x4xf32, #tpu.memory_space<vmem>>, vector<1x1x4xf32>
    %247 = vector.shape_cast %246 : vector<1x1x4xf32> to vector<1x4xf32>
    %248 = vector.shape_cast %245 : vector<1x4xf32> to vector<1x1x4xf32>
    tpu.vector_store %arg9[%c0_117, %c1_118, %c0_119], %248 {strides = array<i32>} : memref<1x2x4xf32, #tpu.memory_space<vmem>>, vector<1x1x4xf32>,
    %cst_120 = arith.constant dense<0.000000e+00> : vector<64xf32>
    %249 = vector.multi_reduction <add>, %233, %cst_120 [0] : vector<4x64xf32> to vector<64xf32>
    %250 = vector.shape_cast %249 : vector<64xf32> to vector<1x64xf32>
    %c0_121 = arith.constant 0 : index
    %c1_122 = arith.constant 1 : index
    %c0_123 = arith.constant 0 : index
    %251 = vector.load %arg10[%c0_121, %c1_122, %c0_123] : memref<1x2x64xf32, #tpu.memory_space<vmem>>, vector<1x1x64xf32>
    %252 = vector.shape_cast %251 : vector<1x1x64xf32> to vector<1x64xf32>
    %253 = vector.shape_cast %250 : vector<1x64xf32> to vector<1x1x64xf32>
    tpu.vector_store %arg10[%c0_121, %c1_122, %c0_123], %253 {strides = array<i32>} : memref<1x2x64xf32, #tpu.memory_space<vmem>>, vector<1x1x64xf32>,
    %254 = arith.addf %211, %234 : vector<4x32xf32>
    %cst_124 = arith.constant 0.000000e+00 : f32
    %255 = vector.broadcast %cst_124 : f32 to vector<1x32xf32>
    %256 = vector.extract_strided_slice %254 {offsets = [0, 0], sizes = [3, 32], strides = [1, 1]} : vector<4x32xf32> to vector<3x32xf32>
    %257 = tpu.concatenate %255, %256 in 0 : vector<1x32xf32>, vector<3x32xf32> -> vector<4x32xf32>
    %cst_125 = arith.constant 0.000000e+00 : f32
    %258 = vector.broadcast %cst_125 : f32 to vector<1x32xf32>
    %259 = vector.extract_strided_slice %254 {offsets = [1, 0], sizes = [3, 32], strides = [1, 1]} : vector<4x32xf32> to vector<3x32xf32>
    %260 = tpu.concatenate %259, %258 in 0 : vector<3x32xf32>, vector<1x32xf32> -> vector<4x32xf32>
    %261 = tpu.concatenate %257, %254, %260 in 1 : vector<4x32xf32>, vector<4x32xf32>, vector<4x32xf32> -> vector<4x96xf32>
    %262 = arith.truncf %261 : vector<4x96xf32> to vector<4x96xbf16>
    %c912 = arith.constant 912 : index
    %c0_126 = arith.constant 0 : index
    %263 = vector.load %arg2[%c912, %c0_126] : memref<1904x32xbf16, #tpu.memory_space<vmem>>, vector<96x32xbf16>
    %c12 = arith.constant 12 : index
    %c0_127 = arith.constant 0 : index
    %264 = vector.load %arg3[%c12, %c0_127] : memref<25x32xf32, #tpu.memory_space<vmem>>, vector<1x32xf32>
    %cst_128 = arith.constant dense<0.000000e+00> : vector<4x32xf32>
    %265 = tpu.matmul %262, %263, %cst_128 {dimension_numbers = #tpu.dot_dimension_numbers<[1], [0], [0], [1], [0, 0, 1, 1], [], []>} : vector<4x96xbf16>, vector<96x32xbf16>, vector<4x32xf32> -> vector<4x32xf32>
    %266 = vector.broadcast %264 : vector<1x32xf32> to vector<4x32xf32>
    %267 = arith.addf %265, %266 : vector<4x32xf32>
    %cst_129 = arith.constant 0.000000e+00 : f32
    %268 = vector.broadcast %cst_129 : f32 to vector<4x32xf32>
    %269 = arith.maximumf %267, %268 : vector<4x32xf32>
    %cst_130 = arith.constant 0.000000e+00 : f32
    %270 = vector.broadcast %cst_130 : f32 to vector<4x32xf32>
    %271 = arith.maximumf %269, %270 : vector<4x32xf32>
    %cst_131 = arith.constant 0.000000e+00 : f32
    %272 = vector.broadcast %cst_131 : f32 to vector<3x32xf32>
    %273 = vector.extract_strided_slice %271 {offsets = [0, 0], sizes = [1, 32], strides = [1, 1]} : vector<4x32xf32> to vector<1x32xf32>
    %274 = tpu.concatenate %272, %273 in 0 : vector<3x32xf32>, vector<1x32xf32> -> vector<4x32xf32>
    %cst_132 = arith.constant 0.000000e+00 : f32
    %275 = vector.broadcast %cst_132 : f32 to vector<3x32xf32>
    %276 = vector.extract_strided_slice %271 {offsets = [3, 0], sizes = [1, 32], strides = [1, 1]} : vector<4x32xf32> to vector<1x32xf32>
    %277 = tpu.concatenate %276, %275 in 0 : vector<1x32xf32>, vector<3x32xf32> -> vector<4x32xf32>
    %278 = tpu.concatenate %274, %271, %277 in 1 : vector<4x32xf32>, vector<4x32xf32>, vector<4x32xf32> -> vector<4x96xf32>
    %279 = arith.truncf %278 : vector<4x96xf32> to vector<4x96xbf16>
    %c1008 = arith.constant 1008 : index
    %c0_133 = arith.constant 0 : index
    %280 = vector.load %arg2[%c1008, %c0_133] : memref<1904x32xbf16, #tpu.memory_space<vmem>>, vector<96x32xbf16>
    %c13 = arith.constant 13 : index
    %c0_134 = arith.constant 0 : index
    %281 = vector.load %arg3[%c13, %c0_134] : memref<25x32xf32, #tpu.memory_space<vmem>>, vector<1x32xf32>
    %cst_135 = arith.constant dense<0.000000e+00> : vector<4x32xf32>
    %282 = tpu.matmul %279, %280, %cst_135 {dimension_numbers = #tpu.dot_dimension_numbers<[1], [0], [0], [1], [0, 0, 1, 1], [], []>} : vector<4x96xbf16>, vector<96x32xbf16>, vector<4x32xf32> -> vector<4x32xf32>
    %283 = vector.broadcast %281 : vector<1x32xf32> to vector<4x32xf32>
    %284 = arith.addf %282, %283 : vector<4x32xf32>
    %cst_136 = arith.constant 0.000000e+00 : f32
    %285 = vector.broadcast %cst_136 : f32 to vector<4x32xf32>
    %286 = arith.maximumf %284, %285 : vector<4x32xf32>
    %287 = arith.truncf %286 : vector<4x32xf32> to vector<4x32xbf16>
    %c1104 = arith.constant 1104 : index
    %c0_137 = arith.constant 0 : index
    %288 = vector.load %arg2[%c1104, %c0_137] : memref<1904x32xbf16, #tpu.memory_space<vmem>>, vector<32x32xbf16>
    %c14 = arith.constant 14 : index
    %c0_138 = arith.constant 0 : index
    %289 = vector.load %arg3[%c14, %c0_138] : memref<25x32xf32, #tpu.memory_space<vmem>>, vector<1x32xf32>
    %cst_139 = arith.constant dense<0.000000e+00> : vector<4x32xf32>
    %290 = tpu.matmul %287, %288, %cst_139 {dimension_numbers = #tpu.dot_dimension_numbers<[1], [0], [0], [1], [0, 0, 1, 1], [], []>} : vector<4x32xbf16>, vector<32x32xbf16>, vector<4x32xf32> -> vector<4x32xf32>
    %291 = vector.broadcast %289 : vector<1x32xf32> to vector<4x32xf32>
    %292 = arith.addf %290, %291 : vector<4x32xf32>
    %293 = arith.addf %292, %269 : vector<4x32xf32>
    %cst_140 = arith.constant 0.000000e+00 : f32
    %294 = vector.broadcast %cst_140 : f32 to vector<4x32xf32>
    %295 = arith.maximumf %293, %294 : vector<4x32xf32>
    %cst_141 = arith.constant 0.000000e+00 : f32
    %296 = vector.broadcast %cst_141 : f32 to vector<1x32xf32>
    %297 = vector.extract_strided_slice %295 {offsets = [0, 0], sizes = [3, 32], strides = [1, 1]} : vector<4x32xf32> to vector<3x32xf32>
    %298 = tpu.concatenate %296, %297 in 0 : vector<1x32xf32>, vector<3x32xf32> -> vector<4x32xf32>
    %cst_142 = arith.constant 0.000000e+00 : f32
    %299 = vector.broadcast %cst_142 : f32 to vector<1x32xf32>
    %300 = vector.extract_strided_slice %295 {offsets = [1, 0], sizes = [3, 32], strides = [1, 1]} : vector<4x32xf32> to vector<3x32xf32>
    %301 = tpu.concatenate %300, %299 in 0 : vector<3x32xf32>, vector<1x32xf32> -> vector<4x32xf32>
    %302 = tpu.concatenate %298, %295, %301 in 1 : vector<4x32xf32>, vector<4x32xf32>, vector<4x32xf32> -> vector<4x96xf32>
    %303 = arith.truncf %302 : vector<4x96xf32> to vector<4x96xbf16>
    %c1136 = arith.constant 1136 : index
    %c0_143 = arith.constant 0 : index
    %304 = vector.load %arg2[%c1136, %c0_143] : memref<1904x32xbf16, #tpu.memory_space<vmem>>, vector<96x32xbf16>
    %c15 = arith.constant 15 : index
    %c0_144 = arith.constant 0 : index
    %305 = vector.load %arg3[%c15, %c0_144] : memref<25x32xf32, #tpu.memory_space<vmem>>, vector<1x32xf32>
    %cst_145 = arith.constant dense<0.000000e+00> : vector<4x32xf32>
    %306 = tpu.matmul %303, %304, %cst_145 {dimension_numbers = #tpu.dot_dimension_numbers<[1], [0], [0], [1], [0, 0, 1, 1], [], []>} : vector<4x96xbf16>, vector<96x32xbf16>, vector<4x32xf32> -> vector<4x32xf32>
    %307 = vector.broadcast %305 : vector<1x32xf32> to vector<4x32xf32>
    %308 = arith.addf %306, %307 : vector<4x32xf32>
    %cst_146 = arith.constant 0.000000e+00 : f32
    %309 = vector.broadcast %cst_146 : f32 to vector<4x32xf32>
    %310 = arith.maximumf %308, %309 : vector<4x32xf32>
    %311 = arith.truncf %310 : vector<4x32xf32> to vector<4x32xbf16>
    %c1232 = arith.constant 1232 : index
    %c0_147 = arith.constant 0 : index
    %312 = vector.load %arg2[%c1232, %c0_147] : memref<1904x32xbf16, #tpu.memory_space<vmem>>, vector<32x32xbf16>
    %c16 = arith.constant 16 : index
    %c0_148 = arith.constant 0 : index
    %313 = vector.load %arg3[%c16, %c0_148] : memref<25x32xf32, #tpu.memory_space<vmem>>, vector<1x32xf32>
    %cst_149 = arith.constant dense<0.000000e+00> : vector<4x32xf32>
    %314 = tpu.matmul %311, %312, %cst_149 {dimension_numbers = #tpu.dot_dimension_numbers<[1], [0], [0], [1], [0, 0, 1, 1], [], []>} : vector<4x32xbf16>, vector<32x32xbf16>, vector<4x32xf32> -> vector<4x32xf32>
    %315 = vector.broadcast %313 : vector<1x32xf32> to vector<4x32xf32>
    %316 = arith.addf %314, %315 : vector<4x32xf32>
    %317 = arith.addf %316, %293 : vector<4x32xf32>
    %c2_150 = arith.constant 2 : index
    %c0_151 = arith.constant 0 : index
    %c0_152 = arith.constant 0 : index
    %318 = vector.load %arg4[%c2_150, %c0_151, %c0_152] : memref<4x16x16xbf16, #tpu.memory_space<vmem>>, vector<1x16x16xbf16>
    %319 = vector.shape_cast %318 : vector<1x16x16xbf16> to vector<16x16xbf16>
    %320 = vector.extract_strided_slice %319 {offsets = [0, 0], sizes = [8, 4], strides = [1, 1]} : vector<16x16xbf16> to vector<8x4xbf16>
    %321 = arith.truncf %317 : vector<4x32xf32> to vector<4x32xbf16>
    %cst_153 = arith.constant dense<0.000000e+00> : vector<8x32xf32>
    %322 = tpu.matmul %320, %321, %cst_153 {dimension_numbers = #tpu.dot_dimension_numbers<[1], [0], [0], [1], [0, 0, 1, 1], [], []>} : vector<8x4xbf16>, vector<4x32xbf16>, vector<8x32xf32> -> vector<8x32xf32>
    %cst_154 = arith.constant 0.000000e+00 : f32
    %323 = vector.broadcast %cst_154 : f32 to vector<1x32xf32>
    %324 = vector.extract_strided_slice %322 {offsets = [0, 0], sizes = [7, 32], strides = [1, 1]} : vector<8x32xf32> to vector<7x32xf32>
    %325 = tpu.concatenate %323, %324 in 0 : vector<1x32xf32>, vector<7x32xf32> -> vector<8x32xf32>
    %cst_155 = arith.constant 0.000000e+00 : f32
    %326 = vector.broadcast %cst_155 : f32 to vector<1x32xf32>
    %327 = vector.extract_strided_slice %322 {offsets = [1, 0], sizes = [7, 32], strides = [1, 1]} : vector<8x32xf32> to vector<7x32xf32>
    %328 = tpu.concatenate %327, %326 in 0 : vector<7x32xf32>, vector<1x32xf32> -> vector<8x32xf32>
    %329 = tpu.concatenate %325, %322, %328 in 1 : vector<8x32xf32>, vector<8x32xf32>, vector<8x32xf32> -> vector<8x96xf32>
    %330 = arith.truncf %329 : vector<8x96xf32> to vector<8x96xbf16>
    %c1264 = arith.constant 1264 : index
    %c0_156 = arith.constant 0 : index
    %331 = vector.load %arg2[%c1264, %c0_156] : memref<1904x32xbf16, #tpu.memory_space<vmem>>, vector<96x32xbf16>
    %c17 = arith.constant 17 : index
    %c0_157 = arith.constant 0 : index
    %332 = vector.load %arg3[%c17, %c0_157] : memref<25x32xf32, #tpu.memory_space<vmem>>, vector<1x32xf32>
    %cst_158 = arith.constant dense<0.000000e+00> : vector<8x32xf32>
    %333 = tpu.matmul %330, %331, %cst_158 {dimension_numbers = #tpu.dot_dimension_numbers<[1], [0], [0], [1], [0, 0, 1, 1], [], []>} : vector<8x96xbf16>, vector<96x32xbf16>, vector<8x32xf32> -> vector<8x32xf32>
    %334 = vector.broadcast %332 : vector<1x32xf32> to vector<8x32xf32>
    %335 = arith.addf %333, %334 : vector<8x32xf32>
    %cst_159 = arith.constant 0.000000e+00 : f32
    %336 = vector.broadcast %cst_159 : f32 to vector<8x32xf32>
    %337 = arith.maximumf %335, %336 : vector<8x32xf32>
    %cst_160 = arith.constant 0.000000e+00 : f32
    %338 = vector.broadcast %cst_160 : f32 to vector<3x32xf32>
    %339 = vector.extract_strided_slice %337 {offsets = [0, 0], sizes = [5, 32], strides = [1, 1]} : vector<8x32xf32> to vector<5x32xf32>
    %340 = tpu.concatenate %338, %339 in 0 : vector<3x32xf32>, vector<5x32xf32> -> vector<8x32xf32>
    %cst_161 = arith.constant 0.000000e+00 : f32
    %341 = vector.broadcast %cst_161 : f32 to vector<3x32xf32>
    %342 = vector.extract_strided_slice %337 {offsets = [3, 0], sizes = [5, 32], strides = [1, 1]} : vector<8x32xf32> to vector<5x32xf32>
    %343 = tpu.concatenate %342, %341 in 0 : vector<5x32xf32>, vector<3x32xf32> -> vector<8x32xf32>
    %344 = tpu.concatenate %340, %337, %343 in 1 : vector<8x32xf32>, vector<8x32xf32>, vector<8x32xf32> -> vector<8x96xf32>
    %345 = arith.truncf %344 : vector<8x96xf32> to vector<8x96xbf16>
    %c1360 = arith.constant 1360 : index
    %c0_162 = arith.constant 0 : index
    %346 = vector.load %arg2[%c1360, %c0_162] : memref<1904x32xbf16, #tpu.memory_space<vmem>>, vector<96x32xbf16>
    %c18 = arith.constant 18 : index
    %c0_163 = arith.constant 0 : index
    %347 = vector.load %arg3[%c18, %c0_163] : memref<25x32xf32, #tpu.memory_space<vmem>>, vector<1x32xf32>
    %cst_164 = arith.constant dense<0.000000e+00> : vector<8x32xf32>
    %348 = tpu.matmul %345, %346, %cst_164 {dimension_numbers = #tpu.dot_dimension_numbers<[1], [0], [0], [1], [0, 0, 1, 1], [], []>} : vector<8x96xbf16>, vector<96x32xbf16>, vector<8x32xf32> -> vector<8x32xf32>
    %349 = vector.broadcast %347 : vector<1x32xf32> to vector<8x32xf32>
    %350 = arith.addf %348, %349 : vector<8x32xf32>
    %cst_165 = arith.constant 0.000000e+00 : f32
    %351 = vector.broadcast %cst_165 : f32 to vector<8x32xf32>
    %352 = arith.maximumf %350, %351 : vector<8x32xf32>
    %353 = arith.truncf %352 : vector<8x32xf32> to vector<8x32xbf16>
    %c1456 = arith.constant 1456 : index
    %c0_166 = arith.constant 0 : index
    %354 = vector.load %arg2[%c1456, %c0_166] : memref<1904x32xbf16, #tpu.memory_space<vmem>>, vector<32x32xbf16>
    %c19 = arith.constant 19 : index
    %c0_167 = arith.constant 0 : index
    %355 = vector.load %arg3[%c19, %c0_167] : memref<25x32xf32, #tpu.memory_space<vmem>>, vector<1x32xf32>
    %cst_168 = arith.constant dense<0.000000e+00> : vector<8x32xf32>
    %356 = tpu.matmul %353, %354, %cst_168 {dimension_numbers = #tpu.dot_dimension_numbers<[1], [0], [0], [1], [0, 0, 1, 1], [], []>} : vector<8x32xbf16>, vector<32x32xbf16>, vector<8x32xf32> -> vector<8x32xf32>
    %357 = vector.broadcast %355 : vector<1x32xf32> to vector<8x32xf32>
    %358 = arith.addf %356, %357 : vector<8x32xf32>
    %359 = arith.addf %358, %335 : vector<8x32xf32>
    %cst_169 = arith.constant 0.000000e+00 : f32
    %360 = vector.broadcast %cst_169 : f32 to vector<8x32xf32>
    %361 = arith.maximumf %359, %360 : vector<8x32xf32>
    %cst_170 = arith.constant 0.000000e+00 : f32
    %362 = vector.broadcast %cst_170 : f32 to vector<1x32xf32>
    %363 = vector.extract_strided_slice %361 {offsets = [0, 0], sizes = [7, 32], strides = [1, 1]} : vector<8x32xf32> to vector<7x32xf32>
    %364 = tpu.concatenate %362, %363 in 0 : vector<1x32xf32>, vector<7x32xf32> -> vector<8x32xf32>
    %cst_171 = arith.constant 0.000000e+00 : f32
    %365 = vector.broadcast %cst_171 : f32 to vector<1x32xf32>
    %366 = vector.extract_strided_slice %361 {offsets = [1, 0], sizes = [7, 32], strides = [1, 1]} : vector<8x32xf32> to vector<7x32xf32>
    %367 = tpu.concatenate %366, %365 in 0 : vector<7x32xf32>, vector<1x32xf32> -> vector<8x32xf32>
    %368 = tpu.concatenate %364, %361, %367 in 1 : vector<8x32xf32>, vector<8x32xf32>, vector<8x32xf32> -> vector<8x96xf32>
    %369 = arith.truncf %368 : vector<8x96xf32> to vector<8x96xbf16>
    %c1488 = arith.constant 1488 : index
    %c0_172 = arith.constant 0 : index
    %370 = vector.load %arg2[%c1488, %c0_172] : memref<1904x32xbf16, #tpu.memory_space<vmem>>, vector<96x32xbf16>
    %c20 = arith.constant 20 : index
    %c0_173 = arith.constant 0 : index
    %371 = vector.load %arg3[%c20, %c0_173] : memref<25x32xf32, #tpu.memory_space<vmem>>, vector<1x32xf32>
    %cst_174 = arith.constant dense<0.000000e+00> : vector<8x32xf32>
    %372 = tpu.matmul %369, %370, %cst_174 {dimension_numbers = #tpu.dot_dimension_numbers<[1], [0], [0], [1], [0, 0, 1, 1], [], []>} : vector<8x96xbf16>, vector<96x32xbf16>, vector<8x32xf32> -> vector<8x32xf32>
    %373 = vector.broadcast %371 : vector<1x32xf32> to vector<8x32xf32>
    %374 = arith.addf %372, %373 : vector<8x32xf32>
    %cst_175 = arith.constant 0.000000e+00 : f32
    %375 = vector.broadcast %cst_175 : f32 to vector<8x32xf32>
    %376 = arith.maximumf %374, %375 : vector<8x32xf32>
    %377 = arith.truncf %376 : vector<8x32xf32> to vector<8x32xbf16>
    %c1584 = arith.constant 1584 : index
    %c0_176 = arith.constant 0 : index
    %378 = vector.load %arg2[%c1584, %c0_176] : memref<1904x32xbf16, #tpu.memory_space<vmem>>, vector<32x32xbf16>
    %c21 = arith.constant 21 : index
    %c0_177 = arith.constant 0 : index
    %379 = vector.load %arg3[%c21, %c0_177] : memref<25x32xf32, #tpu.memory_space<vmem>>, vector<1x32xf32>
    %cst_178 = arith.constant dense<0.000000e+00> : vector<8x32xf32>
    %380 = tpu.matmul %377, %378, %cst_178 {dimension_numbers = #tpu.dot_dimension_numbers<[1], [0], [0], [1], [0, 0, 1, 1], [], []>} : vector<8x32xbf16>, vector<32x32xbf16>, vector<8x32xf32> -> vector<8x32xf32>
    %381 = vector.broadcast %379 : vector<1x32xf32> to vector<8x32xf32>
    %382 = arith.addf %380, %381 : vector<8x32xf32>
    %383 = arith.addf %382, %359 : vector<8x32xf32>
    %c3_179 = arith.constant 3 : index
    %c0_180 = arith.constant 0 : index
    %c0_181 = arith.constant 0 : index
    %384 = vector.load %arg4[%c3_179, %c0_180, %c0_181] : memref<4x16x16xbf16, #tpu.memory_space<vmem>>, vector<1x16x16xbf16>
    %385 = vector.shape_cast %384 : vector<1x16x16xbf16> to vector<16x16xbf16>
    %386 = vector.extract_strided_slice %385 {offsets = [0, 0], sizes = [16, 8], strides = [1, 1]} : vector<16x16xbf16> to vector<16x8xbf16>
    %387 = arith.truncf %383 : vector<8x32xf32> to vector<8x32xbf16>
    %cst_182 = arith.constant dense<0.000000e+00> : vector<16x32xf32>
    %388 = tpu.matmul %386, %387, %cst_182 {dimension_numbers = #tpu.dot_dimension_numbers<[1], [0], [0], [1], [0, 0, 1, 1], [], []>} : vector<16x8xbf16>, vector<8x32xbf16>, vector<16x32xf32> -> vector<16x32xf32>
    %cst_183 = arith.constant 0.000000e+00 : f32
    %389 = vector.broadcast %cst_183 : f32 to vector<1x32xf32>
    %390 = vector.extract_strided_slice %388 {offsets = [0, 0], sizes = [15, 32], strides = [1, 1]} : vector<16x32xf32> to vector<15x32xf32>
    %391 = tpu.concatenate %389, %390 in 0 : vector<1x32xf32>, vector<15x32xf32> -> vector<16x32xf32>
    %cst_184 = arith.constant 0.000000e+00 : f32
    %392 = vector.broadcast %cst_184 : f32 to vector<1x32xf32>
    %393 = vector.extract_strided_slice %388 {offsets = [1, 0], sizes = [15, 32], strides = [1, 1]} : vector<16x32xf32> to vector<15x32xf32>
    %394 = tpu.concatenate %393, %392 in 0 : vector<15x32xf32>, vector<1x32xf32> -> vector<16x32xf32>
    %395 = tpu.concatenate %391, %388, %394 in 1 : vector<16x32xf32>, vector<16x32xf32>, vector<16x32xf32> -> vector<16x96xf32>
    %396 = arith.truncf %395 : vector<16x96xf32> to vector<16x96xbf16>
    %c1616 = arith.constant 1616 : index
    %c0_185 = arith.constant 0 : index
    %397 = vector.load %arg2[%c1616, %c0_185] : memref<1904x32xbf16, #tpu.memory_space<vmem>>, vector<96x32xbf16>
    %c22 = arith.constant 22 : index
    %c0_186 = arith.constant 0 : index
    %398 = vector.load %arg3[%c22, %c0_186] : memref<25x32xf32, #tpu.memory_space<vmem>>, vector<1x32xf32>
    %cst_187 = arith.constant dense<0.000000e+00> : vector<16x32xf32>
    %399 = tpu.matmul %396, %397, %cst_187 {dimension_numbers = #tpu.dot_dimension_numbers<[1], [0], [0], [1], [0, 0, 1, 1], [], []>} : vector<16x96xbf16>, vector<96x32xbf16>, vector<16x32xf32> -> vector<16x32xf32>
    %400 = vector.broadcast %398 : vector<1x32xf32> to vector<16x32xf32>
    %401 = arith.addf %399, %400 : vector<16x32xf32>
    %cst_188 = arith.constant 0.000000e+00 : f32
    %402 = vector.broadcast %cst_188 : f32 to vector<1x32xf32>
    %403 = vector.extract_strided_slice %401 {offsets = [0, 0], sizes = [15, 32], strides = [1, 1]} : vector<16x32xf32> to vector<15x32xf32>
    %404 = tpu.concatenate %402, %403 in 0 : vector<1x32xf32>, vector<15x32xf32> -> vector<16x32xf32>
    %cst_189 = arith.constant 0.000000e+00 : f32
    %405 = vector.broadcast %cst_189 : f32 to vector<1x32xf32>
    %406 = vector.extract_strided_slice %401 {offsets = [1, 0], sizes = [15, 32], strides = [1, 1]} : vector<16x32xf32> to vector<15x32xf32>
    %407 = tpu.concatenate %406, %405 in 0 : vector<15x32xf32>, vector<1x32xf32> -> vector<16x32xf32>
    %408 = tpu.concatenate %404, %401, %407 in 1 : vector<16x32xf32>, vector<16x32xf32>, vector<16x32xf32> -> vector<16x96xf32>
    %409 = arith.truncf %408 : vector<16x96xf32> to vector<16x96xbf16>
    %c1712 = arith.constant 1712 : index
    %c0_190 = arith.constant 0 : index
    %410 = vector.load %arg2[%c1712, %c0_190] : memref<1904x32xbf16, #tpu.memory_space<vmem>>, vector<96x32xbf16>
    %c23 = arith.constant 23 : index
    %c0_191 = arith.constant 0 : index
    %411 = vector.load %arg3[%c23, %c0_191] : memref<25x32xf32, #tpu.memory_space<vmem>>, vector<1x32xf32>
    %cst_192 = arith.constant dense<0.000000e+00> : vector<16x32xf32>
    %412 = tpu.matmul %409, %410, %cst_192 {dimension_numbers = #tpu.dot_dimension_numbers<[1], [0], [0], [1], [0, 0, 1, 1], [], []>} : vector<16x96xbf16>, vector<96x32xbf16>, vector<16x32xf32> -> vector<16x32xf32>
    %413 = vector.broadcast %411 : vector<1x32xf32> to vector<16x32xf32>
    %414 = arith.addf %412, %413 : vector<16x32xf32>
    %cst_193 = arith.constant 0.000000e+00 : f32
    %415 = vector.broadcast %cst_193 : f32 to vector<16x32xf32>
    %416 = arith.maximumf %414, %415 : vector<16x32xf32>
    %cst_194 = arith.constant 0.000000e+00 : f32
    %417 = vector.broadcast %cst_194 : f32 to vector<1x32xf32>
    %418 = vector.extract_strided_slice %416 {offsets = [0, 0], sizes = [15, 32], strides = [1, 1]} : vector<16x32xf32> to vector<15x32xf32>
    %419 = tpu.concatenate %417, %418 in 0 : vector<1x32xf32>, vector<15x32xf32> -> vector<16x32xf32>
    %cst_195 = arith.constant 0.000000e+00 : f32
    %420 = vector.broadcast %cst_195 : f32 to vector<1x32xf32>
    %421 = vector.extract_strided_slice %416 {offsets = [1, 0], sizes = [15, 32], strides = [1, 1]} : vector<16x32xf32> to vector<15x32xf32>
    %422 = tpu.concatenate %421, %420 in 0 : vector<15x32xf32>, vector<1x32xf32> -> vector<16x32xf32>
    %423 = tpu.concatenate %419, %416, %422 in 1 : vector<16x32xf32>, vector<16x32xf32>, vector<16x32xf32> -> vector<16x96xf32>
    %424 = arith.truncf %423 : vector<16x96xf32> to vector<16x96xbf16>
    %c1808 = arith.constant 1808 : index
    %c0_196 = arith.constant 0 : index
    %425 = vector.load %arg2[%c1808, %c0_196] : memref<1904x32xbf16, #tpu.memory_space<vmem>>, vector<96x12xbf16>
    %c24 = arith.constant 24 : index
    %c0_197 = arith.constant 0 : index
    %426 = vector.load %arg3[%c24, %c0_197] : memref<25x32xf32, #tpu.memory_space<vmem>>, vector<1x12xf32>
    %cst_198 = arith.constant dense<0.000000e+00> : vector<16x12xf32>
    %427 = tpu.matmul %424, %425, %cst_198 {dimension_numbers = #tpu.dot_dimension_numbers<[1], [0], [0], [1], [0, 0, 1, 1], [], []>} : vector<16x96xbf16>, vector<96x12xbf16>, vector<16x12xf32> -> vector<16x12xf32>
    %428 = vector.broadcast %426 : vector<1x12xf32> to vector<16x12xf32>
    %429 = arith.addf %427, %428 : vector<16x12xf32>
    %c0_199 = arith.constant 0 : index
    %c0_200 = arith.constant 0 : index
    %c0_201 = arith.constant 0 : index
    %430 = vector.load %arg7[%c0_199, %c0_200, %c0_201] : memref<1x16x12xf32, #tpu.memory_space<vmem>>, vector<1x16x12xf32>
    %431 = vector.shape_cast %430 : vector<1x16x12xf32> to vector<16x12xf32>
    %432 = vector.shape_cast %429 : vector<16x12xf32> to vector<1x16x12xf32>
    tpu.vector_store %arg7[%c0_199, %c0_200, %c0_201], %432 {strides = array<i32>} : memref<1x16x12xf32, #tpu.memory_space<vmem>>, vector<1x16x12xf32>,
    return
  }
  func.func @transform_0(%arg0: i32) -> (i32, i32, i32) {
    %c0_i32 = arith.constant 0 : i32
    %c0_i32_0 = arith.constant 0 : i32
    %c0_i32_1 = arith.constant 0 : i32
    return %arg0, %c0_i32, %c0_i32_0 : i32, i32, i32
  }
  func.func @transform_1(%arg0: i32) -> (i32, i32) {
    %c0_i32 = arith.constant 0 : i32
    %c0_i32_0 = arith.constant 0 : i32
    %c0_i32_1 = arith.constant 0 : i32
    return %c0_i32, %c0_i32_0 : i32, i32
  }
  func.func @transform_2(%arg0: i32) -> (i32, i32) {
    %c0_i32 = arith.constant 0 : i32
    %c0_i32_0 = arith.constant 0 : i32
    %c0_i32_1 = arith.constant 0 : i32
    return %c0_i32, %c0_i32_0 : i32, i32
  }
  func.func @transform_3(%arg0: i32) -> (i32, i32, i32) {
    %c0_i32 = arith.constant 0 : i32
    %c0_i32_0 = arith.constant 0 : i32
    %c0_i32_1 = arith.constant 0 : i32
    %c0_i32_2 = arith.constant 0 : i32
    return %c0_i32, %c0_i32_0, %c0_i32_1 : i32, i32, i32
  }
  func.func @transform_4(%arg0: i32) -> (i32, i32, i32) {
    %c0_i32 = arith.constant 0 : i32
    %c0_i32_0 = arith.constant 0 : i32
    %c0_i32_1 = arith.constant 0 : i32
    %c0_i32_2 = arith.constant 0 : i32
    return %c0_i32, %c0_i32_0, %c0_i32_1 : i32, i32, i32
  }
  func.func @transform_5(%arg0: i32) -> (i32, i32, i32) {
    %c0_i32 = arith.constant 0 : i32
    %c0_i32_0 = arith.constant 0 : i32
    %c0_i32_1 = arith.constant 0 : i32
    %c0_i32_2 = arith.constant 0 : i32
    return %c0_i32, %c0_i32_0, %c0_i32_1 : i32, i32, i32
  }
  func.func @transform_6(%arg0: i32) -> (i32, i32, i32) {
    %c0_i32 = arith.constant 0 : i32
    %c0_i32_0 = arith.constant 0 : i32
    %c0_i32_1 = arith.constant 0 : i32
    return %arg0, %c0_i32, %c0_i32_0 : i32, i32, i32
  }
  func.func @transform_7(%arg0: i32) -> (i32, i32, i32) {
    %c0_i32 = arith.constant 0 : i32
    %c0_i32_0 = arith.constant 0 : i32
    %c0_i32_1 = arith.constant 0 : i32
    return %arg0, %c0_i32, %c0_i32_0 : i32, i32, i32
  }
  func.func @transform_8(%arg0: i32) -> (i32, i32, i32) {
    %c0_i32 = arith.constant 0 : i32
    %c0_i32_0 = arith.constant 0 : i32
    %c0_i32_1 = arith.constant 0 : i32
    return %arg0, %c0_i32, %c0_i32_0 : i32, i32, i32
  }
  func.func @transform_9(%arg0: i32) -> (i32, i32, i32) {
    %c0_i32 = arith.constant 0 : i32
    %c0_i32_0 = arith.constant 0 : i32
    %c0_i32_1 = arith.constant 0 : i32
    return %arg0, %c0_i32, %c0_i32_0 : i32, i32, i32
  }
}

</mosaic_0001>

<llo_original>
// kernel: rvqvae_forward.1
$region0: #{rvqvae_forward.1}
  #allocation0 [shape = 'u32[]', space=smem, size = 0x4, offset = 0x4, fixed_abs, tag = 'smem constant byte address 0x4 - core index']
  #allocation1 [shape = 'u32[144,128]{1,0:T(1,128)}', space=vmem, size = 0x12000, scoped, tag = 'internal scratch']
  %s0 = inlined_call_operand.vmem [shape: f32[2,16,16], index: 0, kind: input, shape index: {}]
  %s1 = inlined_call_operand.vmem [shape: bf16[1904,32], index: 1, kind: input, shape index: {}]
  %s2 = inlined_call_operand.vmem [shape: f32[25,32], index: 2, kind: input, shape index: {}]
  %s3 = inlined_call_operand.vmem [shape: bf16[4,16,16], index: 3, kind: input, shape index: {}]
  %s4 = inlined_call_operand.vmem [shape: f32[2,64,32], index: 4, kind: input, shape index: {}]
  %s5 = inlined_call_operand.vmem [shape: f32[2,1,64], index: 5, kind: input, shape index: {}]
  %s6 = inlined_call_operand.vmem [shape: f32[2,16,12], index: 6, kind: output, shape index: {0}]
  %s7 = inlined_call_operand.hbm [shape: s32[2,2,4], index: 7, kind: output, shape index: {1}]
  %s8 = inlined_call_operand.vmem [shape: f32[2,2,4], index: 8, kind: output, shape index: {2}]
  %s9 = inlined_call_operand.vmem [shape: f32[2,2,64], index: 9, kind: output, shape index: {3}]
  %10 = xla_tuple %s6, %s7, %s8, %s9
  %s11 = sld [smem:[#allocation0]]
  $region81: #{rvqvae_forward.1} parent=0
    _
  %s13 = ssub.s32 1, %s11
  %s14 = scalar_select 0, %s13, %s11
  $region1: #{rvqvae_forward.1} parent=0
    #allocation2 [shape = 'u8[2048]{0}', space=vmem, size = 0x800, scoped, tag = 'output window, operand 1']
    #allocation3 [shape = 's32[2]{0}', space=sflag, size = 0x8, scoped, tag = 'scoped memory for rvqvae_forward.1']
    %15 = vsyncpa [#allocation3], 0
    %s16 = scalar_lea.sflag [#allocation3], 1
    %17 = vsyncpa %s16, 0
    loop: start=0, step=1, limit=4
    $region2: #{rvqvae_forward.1} parent=1 // loop_pre_header
      _
    $region3: #{rvqvae_forward.1} parent=1 // loop_header
      %s19 = sphi 0, %s23
      %p20 = scmp.ge.s32.totalorder %s19, 4
      %s29 = sphi 0, %s31
      %s32 = sphi 0, %s29
      %s33 = sphi 0, %s32
      %s49 = sphi 0, %s33
      %s53 = sphi 0, %s53
      %s55 = sphi 0, %s53
      %s56 = sphi 0, %s55
      %s70 = sphi 0, %s56
      %s74 = sphi 0, %s74
      %s76 = sphi 0, %s74
      %s77 = sphi 0, %s76
      %s91 = sphi 0, %s77
      %s95 = sphi 0, %s95
      %s97 = sphi 0, %s95
      %s98 = sphi 0, %s97
      %s112 = sphi 0, %s98
      %s116 = sphi 0, %s116
      %s118 = sphi 0, %s116
      %s119 = sphi 0, %s118
      %s133 = sphi 0, %s119
      %s137 = sphi 0, %s137
      %s139 = sphi 0, %s137
      %s140 = sphi 0, %s139
      %s154 = sphi 0, %s140
      %s160 = sphi 0, %s162
      %s163 = sphi 0, %s160
      %s164 = sphi 0, %s163
      %s180 = sphi 0, %s164
      %s186 = sphi 0, %s188
      %s189 = sphi 0, %s186
      %s190 = sphi 0, %s189
      %s206 = sphi 0, %s190
      %s212 = sphi 0, %s214
      %s215 = sphi 0, %s212
      %s216 = sphi 0, %s215
      %s232 = sphi 0, %s216
      %s238 = sphi 0, %s240
      %s241 = sphi 0, %s238
      %s242 = sphi 0, %s241
      %s258 = sphi 0, %s242
    $region4: #{rvqvae_forward.1} parent=1 // loop_header_branch
      %22 = sbr.rel (%p20) target = $region8
    $region5: #{rvqvae_forward.1} parent=1 // loop_body
      %s24 = ssub.s32 %s19, 1
      %s25 = ssub.s32 %s19, 2
      %s26 = sadd.s32 %s19, 1
      %s27 = ssub.s32 %s19, %s26
      %p28 = scmp.eq.s32.totalorder %s27, 0
      %s30 = sadd.s32 %s29, 1
      %s31 = scalar_select %p28, %s29, %s30
      %p34 = pneg %p28
      %p35 = scmp.eq.s32.totalorder %s19, 1
      %p36 = por %p34, %p35
      %p37 = scmp.ne.s32.totalorder %s29, %s32
      %p38 = scmp.eq.s32.totalorder %s19, 0
      %p39 = por %p37, %p38
      %p40 = scmp.ne.s32.totalorder %s29, %s32
      %p41 = scmp.eq.s32.totalorder %s24, 1
      %p42 = por %p40, %p41
      %p43 = scmp.ne.s32.totalorder %s32, %s33
      %p44 = scmp.eq.s32.totalorder %s24, 0
      %p45 = por %p43, %p44
      %p46 = scmp.ne.s32.totalorder %s32, %s33
      %p47 = scmp.eq.s32.totalorder %s25, 1
      %p48 = por %p46, %p47
      %p50 = scmp.ne.s32.totalorder %s33, %s49
      %p51 = scmp.eq.s32.totalorder %s25, 0
      %p52 = por %p50, %p51
      %s54 = sadd.s32 %s53, 1
      %p57 = scmp.eq.s32.totalorder %s19, 1
      %p58 = scmp.ne.s32.totalorder %s53, %s55
      %p59 = scmp.eq.s32.totalorder %s19, 0
      %p60 = por %p58, %p59
      %p61 = scmp.ne.s32.totalorder %s53, %s55
      %p62 = scmp.eq.s32.totalorder %s24, 1
      %p63 = por %p61, %p62
      %p64 = scmp.ne.s32.totalorder %s55, %s56
      %p65 = scmp.eq.s32.totalorder %s24, 0
      %p66 = por %p64, %p65
      %p67 = scmp.ne.s32.totalorder %s55, %s56
      %p68 = scmp.eq.s32.totalorder %s25, 1
      %p69 = por %p67, %p68
      %p71 = scmp.ne.s32.totalorder %s56, %s70
      %p72 = scmp.eq.s32.totalorder %s25, 0
      %p73 = por %p71, %p72
      %s75 = sadd.s32 %s74, 1
      %p78 = scmp.eq.s32.totalorder %s19, 1
      %p79 = scmp.ne.s32.totalorder %s74, %s76
      %p80 = scmp.eq.s32.totalorder %s19, 0
      %p81 = por %p79, %p80
      %p82 = scmp.ne.s32.totalorder %s74, %s76
      %p83 = scmp.eq.s32.totalorder %s24, 1
      %p84 = por %p82, %p83
      %p85 = scmp.ne.s32.totalorder %s76, %s77
      %p86 = scmp.eq.s32.totalorder %s24, 0
      %p87 = por %p85, %p86
      %p88 = scmp.ne.s32.totalorder %s76, %s77
      %p89 = scmp.eq.s32.totalorder %s25, 1
      %p90 = por %p88, %p89
      %p92 = scmp.ne.s32.totalorder %s77, %s91
      %p93 = scmp.eq.s32.totalorder %s25, 0
      %p94 = por %p92, %p93
      %s96 = sadd.s32 %s95, 1
      %p99 = scmp.eq.s32.totalorder %s19, 1
      %p100 = scmp.ne.s32.totalorder %s95, %s97
      %p101 = scmp.eq.s32.totalorder %s19, 0
      %p102 = por %p100, %p101
      %p103 = scmp.ne.s32.totalorder %s95, %s97
      %p104 = scmp.eq.s32.totalorder %s24, 1
      %p105 = por %p103, %p104
      %p106 = scmp.ne.s32.totalorder %s97, %s98
      %p107 = scmp.eq.s32.totalorder %s24, 0
      %p108 = por %p106, %p107
      %p109 = scmp.ne.s32.totalorder %s97, %s98
      %p110 = scmp.eq.s32.totalorder %s25, 1
      %p111 = por %p109, %p110
      %p113 = scmp.ne.s32.totalorder %s98, %s112
      %p114 = scmp.eq.s32.totalorder %s25, 0
      %p115 = por %p113, %p114
      %s117 = sadd.s32 %s116, 1
      %p120 = scmp.eq.s32.totalorder %s19, 1
      %p121 = scmp.ne.s32.totalorder %s116, %s118
      %p122 = scmp.eq.s32.totalorder %s19, 0
      %p123 = por %p121, %p122
      %p124 = scmp.ne.s32.totalorder %s116, %s118
      %p125 = scmp.eq.s32.totalorder %s24, 1
      %p126 = por %p124, %p125
      %p127 = scmp.ne.s32.totalorder %s118, %s119
      %p128 = scmp.eq.s32.totalorder %s24, 0
      %p129 = por %p127, %p128
      %p130 = scmp.ne.s32.totalorder %s118, %s119
      %p131 = scmp.eq.s32.totalorder %s25, 1
      %p132 = por %p130, %p131
      %p134 = scmp.ne.s32.totalorder %s119, %s133
      %p135 = scmp.eq.s32.totalorder %s25, 0
      %p136 = por %p134, %p135
      %s138 = sadd.s32 %s137, 1
      %p141 = scmp.eq.s32.totalorder %s19, 1
      %p142 = scmp.ne.s32.totalorder %s137, %s139
      %p143 = scmp.eq.s32.totalorder %s19, 0
      %p144 = por %p142, %p143
      %p145 = scmp.ne.s32.totalorder %s137, %s139
      %p146 = scmp.eq.s32.totalorder %s24, 1
      %p147 = por %p145, %p146
      %p148 = scmp.ne.s32.totalorder %s139, %s140
      %p149 = scmp.eq.s32.totalorder %s24, 0
      %p150 = por %p148, %p149
      %p151 = scmp.ne.s32.totalorder %s139, %s140
      %p152 = scmp.eq.s32.totalorder %s25, 1
      %p153 = por %p151, %p152
      %p155 = scmp.ne.s32.totalorder %s140, %s154
      %p156 = scmp.eq.s32.totalorder %s25, 0
      %p157 = por %p155, %p156
      %s158 = ssub.s32 %s19, %s26
      %p159 = scmp.eq.s32.totalorder %s158, 0
      %s161 = sadd.s32 %s160, 1
      %s162 = scalar_select %p159, %s160, %s161
      %p165 = pneg %p159
      %p166 = scmp.eq.s32.totalorder %s19, 1
      %p167 = por %p165, %p166
      %p168 = scmp.ne.s32.totalorder %s160, %s163
      %p169 = scmp.eq.s32.totalorder %s19, 0
      %p170 = por %p168, %p169
      %p171 = scmp.ne.s32.totalorder %s160, %s163
      %p172 = scmp.eq.s32.totalorder %s24, 1
      %p173 = por %p171, %p172
      %p174 = scmp.ne.s32.totalorder %s163, %s164
      %p175 = scmp.eq.s32.totalorder %s24, 0
      %p176 = por %p174, %p175
      %p177 = scmp.ne.s32.totalorder %s163, %s164
      %p178 = scmp.eq.s32.totalorder %s25, 1
      %p179 = por %p177, %p178
      %p181 = scmp.ne.s32.totalorder %s164, %s180
      %p182 = scmp.eq.s32.totalorder %s25, 0
      %p183 = por %p181, %p182
      %s184 = ssub.s32 %s19, %s26
      %p185 = scmp.eq.s32.totalorder %s184, 0
      %s187 = sadd.s32 %s186, 1
      %s188 = scalar_select %p185, %s186, %s187
      %p191 = pneg %p185
      %p192 = scmp.eq.s32.totalorder %s19, 1
      %p193 = por %p191, %p192
      %p194 = scmp.ne.s32.totalorder %s186, %s189
      %p195 = scmp.eq.s32.totalorder %s19, 0
      %p196 = por %p194, %p195
      %p197 = scmp.ne.s32.totalorder %s186, %s189
      %p198 = scmp.eq.s32.totalorder %s24, 1
      %p199 = por %p197, %p198
      %p200 = scmp.ne.s32.totalorder %s189, %s190
      %p201 = scmp.eq.s32.totalorder %s24, 0
      %p202 = por %p200, %p201
      %p203 = scmp.ne.s32.totalorder %s189, %s190
      %p204 = scmp.eq.s32.totalorder %s25, 1
      %p205 = por %p203, %p204
      %p207 = scmp.ne.s32.totalorder %s190, %s206
      %p208 = scmp.eq.s32.totalorder %s25, 0
      %p209 = por %p207, %p208
      %s210 = ssub.s32 %s19, %s26
      %p211 = scmp.eq.s32.totalorder %s210, 0
      %s213 = sadd.s32 %s212, 1
      %s214 = scalar_select %p211, %s212, %s213
      %p217 = pneg %p211
      %p218 = scmp.eq.s32.totalorder %s19, 1
      %p219 = por %p217, %p218
      %p220 = scmp.ne.s32.totalorder %s212, %s215
      %p221 = scmp.eq.s32.totalorder %s19, 0
      %p222 = por %p220, %p221
      %p223 = scmp.ne.s32.totalorder %s212, %s215
      %p224 = scmp.eq.s32.totalorder %s24, 1
      %p225 = por %p223, %p224
      %p226 = scmp.ne.s32.totalorder %s215, %s216
      %p227 = scmp.eq.s32.totalorder %s24, 0
      %p228 = por %p226, %p227
      %p229 = scmp.ne.s32.totalorder %s215, %s216
      %p230 = scmp.eq.s32.totalorder %s25, 1
      %p231 = por %p229, %p230
      %p233 = scmp.ne.s32.totalorder %s216, %s232
      %p234 = scmp.eq.s32.totalorder %s25, 0
      %p235 = por %p233, %p234
      %s236 = ssub.s32 %s19, %s26
      %p237 = scmp.eq.s32.totalorder %s236, 0
      %s239 = sadd.s32 %s238, 1
      %s240 = scalar_select %p237, %s238, %s239
      %p243 = pneg %p237
      %p244 = scmp.eq.s32.totalorder %s19, 1
      %p245 = por %p243, %p244
      %p246 = scmp.ne.s32.totalorder %s238, %s241
      %p247 = scmp.eq.s32.totalorder %s19, 0
      %p248 = por %p246, %p247
      %p249 = scmp.ne.s32.totalorder %s238, %s241
      %p250 = scmp.eq.s32.totalorder %s24, 1
      %p251 = por %p249, %p250
      %p252 = scmp.ne.s32.totalorder %s241, %s242
      %p253 = scmp.eq.s32.totalorder %s24, 0
      %p254 = por %p252, %p253
      %p255 = scmp.ne.s32.totalorder %s241, %s242
      %p256 = scmp.eq.s32.totalorder %s25, 1
      %p257 = por %p255, %p256
      %p259 = scmp.ne.s32.totalorder %s242, %s258
      %p260 = scmp.eq.s32.totalorder %s25, 0
      %p261 = por %p259, %p260
      %p262 = scmp.le.s32.totalorder 1, %s19
      %p263 = scmp.lt.s32.totalorder %s19, 3
      %p264 = pnand %p262, %p263
      %p265 = pneg %p264
      // Predicated region
      $region9: #{rvqvae_forward.1} parent=5 // pred_check
        _
      $region10: #{rvqvae_forward.1} parent=5 // pred_check_branch
        %267 = sbr.rel (%p264) target = $region12
      $region11: #{rvqvae_forward.1} parent=5 // pred_region
        %s268 = ssub.s32 %s19, 1
        // Predicated region
        $region13: #{rvqvae_forward.1} parent=11 // pred_check
          %p269 = pneg %p66
        $region14: #{rvqvae_forward.1} parent=11 // pred_check_branch
          %271 = sbr.rel (%p269) target = $region16
        $region15: #{rvqvae_forward.1} parent=11 // pred_region
          _
        $region16: #{rvqvae_forward.1} parent=11 // pred_fallthru
          _
        // Predicated region
        $region17: #{rvqvae_forward.1} parent=11 // pred_check
          %p272 = pneg %p87
        $region18: #{rvqvae_forward.1} parent=11 // pred_check_branch
          %274 = sbr.rel (%p272) target = $region20
        $region19: #{rvqvae_forward.1} parent=11 // pred_region
          _
        $region20: #{rvqvae_forward.1} parent=11 // pred_fallthru
          _
        // Predicated region
        $region21: #{rvqvae_forward.1} parent=11 // pred_check
          %p275 = pneg %p108
        $region22: #{rvqvae_forward.1} parent=11 // pred_check_branch
          %277 = sbr.rel (%p275) target = $region24
        $region23: #{rvqvae_forward.1} parent=11 // pred_region
          _
        $region24: #{rvqvae_forward.1} parent=11 // pred_fallthru
          _
        // Predicated region
        $region25: #{rvqvae_forward.1} parent=11 // pred_check
          %p278 = pneg %p129
        $region26: #{rvqvae_forward.1} parent=11 // pred_check_branch
          %280 = sbr.rel (%p278) target = $region28
        $region27: #{rvqvae_forward.1} parent=11 // pred_region
          _
        $region28: #{rvqvae_forward.1} parent=11 // pred_fallthru
          _
        // Predicated region
        $region29: #{rvqvae_forward.1} parent=11 // pred_check
          %p281 = pneg %p150
        $region30: #{rvqvae_forward.1} parent=11 // pred_check_branch
          %283 = sbr.rel (%p281) target = $region32
        $region31: #{rvqvae_forward.1} parent=11 // pred_region
          _
        $region32: #{rvqvae_forward.1} parent=11 // pred_fallthru
          _
      $region12: #{rvqvae_forward.1} parent=5 // pred_fallthru
        _
      %p284 = scmp.lt.s32.totalorder %s19, 2
      // Predicated region
      $region33: #{rvqvae_forward.1} parent=5 // pred_check
        %p285 = pneg %p284
      $region34: #{rvqvae_forward.1} parent=5 // pred_check_branch
        %287 = sbr.rel (%p285) target = $region36
      $region35: #{rvqvae_forward.1} parent=5 // pred_region
        // Predicated region
        $region37: #{rvqvae_forward.1} parent=35 // pred_check
          %p288 = pneg %p39
        $region38: #{rvqvae_forward.1} parent=35 // pred_check_branch
          %290 = sbr.rel (%p288) target = $region40
        $region39: #{rvqvae_forward.1} parent=35 // pred_region
          %p291 = scmp.lt.s32.totalorder %s19, 1
          %s292 = scalar_select %p291, %s19, 1
          %s293 = smul.addr %s292, 2
          %s294 = smul.addr %s293, 8
          %s295 = scalar_lea.vmem %s0, %s294
        $region40: #{rvqvae_forward.1} parent=35 // pred_fallthru
          _
      $region36: #{rvqvae_forward.1} parent=5 // pred_fallthru
        _
      %p296 = scmp.le.s32.totalorder 1, %s19
      %p297 = scmp.lt.s32.totalorder %s19, 3
      %p298 = pnand %p296, %p297
      %p299 = pneg %p298
      // Predicated region
      $region41: #{rvqvae_forward.1} parent=5 // pred_check
        _
      $region42: #{rvqvae_forward.1} parent=5 // pred_check_branch
        %301 = sbr.rel (%p298) target = $region44
      $region43: #{rvqvae_forward.1} parent=5 // pred_region
        %s302 = ssub.s32 %s19, 1
        %p303 = scmp.lt.s32.totalorder %s24, 1
        %s304 = scalar_select %p303, %s24, 1
        %s305 = smul.addr %s304, 2
        %s306 = smul.addr %s305, 8
        %s307 = scalar_lea.vmem %s0, %s306
        %p308 = pneg %p45
        %p309 = pneg %p42
        %p310 = pneg %p66
        %p311 = pneg %p63
        %p312 = pneg %p87
        %p313 = pneg %p84
        %p314 = pneg %p108
        %p315 = pneg %p105
        %p316 = pneg %p129
        %p317 = pneg %p126
        %p318 = pneg %p150
        %p319 = pneg %p147
        %p320 = pneg %p176
        %p321 = pneg %p173
        %p322 = scmp.lt.s32.totalorder %s24, 1
        %s323 = scalar_select %p322, %s24, 1
        %s324 = smul.addr %s323, 2
        %s325 = smul.addr %s324, 8
        %s326 = scalar_lea.vmem %s6, %s325
        %p327 = pneg %p202
        %p328 = pneg %p199
        %s329 = sand.u32 %s189, 1
        %s330 = scalar_lea.sflag [#allocation3], %s329
        %s331 = sand.u32 %s189, 1
        %s332 = smul.addr %s331, 2
        %s333 = scalar_lea.vmem [#allocation2], %s332
        %p334 = pneg %p228
        %p335 = pneg %p225
        %p336 = scmp.lt.s32.totalorder %s24, 1
        %s337 = scalar_select %p336, %s24, 1
        %s338 = smul.addr %s337, 2
        %s339 = scalar_lea.vmem %s8, %s338
        %p340 = pneg %p254
        %p341 = pneg %p251
        %p342 = scmp.lt.s32.totalorder %s24, 1
        %s343 = scalar_select %p342, %s24, 1
        %s344 = smul.addr %s343, 2
        %s345 = scalar_lea.vmem %s9, %s344
        %p346 = scmp.lt.s32.totalorder %s24, 1
        %s347 = scalar_select %p346, %s24, 1
        %s348 = smul.addr %s347, 2
        %s349 = smul.addr %s348, 8
        %s350 = scalar_lea.vmem %s0, %s349
        %p351 = scmp.lt.s32.totalorder %s24, 1
        %s352 = scalar_select %p351, %s24, 1
        %s353 = smul.addr %s352, 2
        %s354 = smul.addr %s353, 8
        %s355 = scalar_lea.vmem %s6, %s354
        %p356 = scmp.lt.s32.totalorder %s24, 1
        %s357 = scalar_select %p356, %s24, 1
        %s358 = smul.addr %s357, 2
        %s359 = scalar_lea.vmem %s8, %s358
        %p360 = scmp.lt.s32.totalorder %s24, 1
        %s361 = scalar_select %p360, %s24, 1
        %s362 = smul.addr %s361, 2
        %s363 = scalar_lea.vmem %s9, %s362
        %v365 = vld [vmem:[%s350] sm:$0xff]
        %v366 = vld [vmem:[%s350 + $0x8] sm:$0xff]
        %vm369 = vcmask 1040384
        %v370 = vrot.slane %v365, 7
        %v371 = vrot.slane %v366, 7
        %v372 = vsel %vm369, %v370, %v371
        %v375 = vsel %vm369, 0.0, %v370
        %vm376 = vcmask 1046528
        %v377 = vrot.slane %v365, 1
        %v378 = vrot.slane %v366, 1
        %v379 = vsel %vm376, %v377, %v378
        %v381 = vsel %vm376, %v378, 0.0
        %382 = vrot.lane.b32.xlu0 %v365, 16
        %v383 = vpop.permute.xlu0 %382
        %384 = vrot.lane.b32.xlu0 %v366, 16
        %v385 = vpop.permute.xlu0 %384
        %389 = vrot.lane.b32.xlu0 %v379, 32
        %v390 = vpop.permute.xlu0 %389
        %391 = vrot.lane.b32.xlu0 %v381, 32
        %v392 = vpop.permute.xlu0 %391
        %vm395 = vcmask 130048
        %v396 = vsel %vm395, %v375, %v383
        %v397 = vsel %vm395, %v372, %v385
        %vm398 = vcmask 261120
        %v399 = vsel %vm398, %v396, %v390
        %v400 = vsel %vm398, %v397, %v392
        %v401 = vpack.c.bf16 %v400, %v399
        %v402 = vld [vmem:[%s1] sm:$0xf]
        %v403 = vld [vmem:[%s1 + $0x4] sm:$0xf]
        %v404 = vld [vmem:[%s1 + $0x8] sm:$0xf]
        %v405 = vld [vmem:[%s1 + $0xc] sm:$0xf]
        %v406 = vld [vmem:[%s1 + $0x10] sm:$0xf]
        %v407 = vld [vmem:[%s1 + $0x14] sm:$0xf]
        %v408 = vld [vmem:[%s2] sm:$0x1]
        %v409 = vlaneseq
        %v410 = vshrl.u32 %v409, 7
        %v411 = vsub.s32 0, %v410
        %v412 = vrot.slane %v408, %v411
        %v419 = vunpack.c.l.b16 %v402
        %v420 = vunpack.c.l.b16 %v403
        %v421 = vunpack.c.l.b16 %v404
        %v422 = vunpack.c.l.b16 %v405
        %v423 = vunpack.c.l.b16 %v406
        %v424 = vunpack.c.l.b16 %v407
        %v425 = vpack.c.b16 %v420, %v419
        %v426 = vpack.c.b16 %v422, %v421
        %v427 = vpack.c.b16 %v424, %v423
        %vm431 = vcmask 392192
        %v433 = vsel %vm431, %v401, 0
        %435 = vmatprep.subr.bf16.mxu0 0
        %436 = vmatpush1.bf16.msra.mxu0 %v425
        %437 = vmatprep.subr.bf16.mxu0 0
        %438 = vmatpush1.bf16.msra.mxu0 %v426
        %439 = vmatprep.subr.bf16.mxu0 0
        %440 = vmatpush1.bf16.msra.mxu0 %v427
        %441 = vmatprep.subr.bf16.mxu0 0
        %442 = vmatpush1.bf16.msra.mxu0 0
        %443 = vmatprep.subr.bf16.mxu0 0
        %444 = vmatpush1.bf16.msra.mxu0 0
        %445 = vmatprep.subr.bf16.mxu0 0
        %446 = vmatpush1.bf16.msra.mxu0 0
        %447 = vmatprep.subr.bf16.mxu0 0
        %448 = vmatpush1.bf16.msra.mxu0 0
        %449 = vmatprep.subr.bf16.mxu0 0
        %450 = vmatpush1.bf16.msra.mxu0 0
        %451 = vmatprep.subr.bf16.mxu0 0
        %452 = vmatpush1.bf16.msra.mxu0 0
        %453 = vmatprep.subr.bf16.mxu0 0
        %454 = vmatpush1.bf16.msra.mxu0 0
        %455 = vmatprep.subr.bf16.mxu0 0
        %456 = vmatpush1.bf16.msra.mxu0 0
        %457 = vmatprep.subr.bf16.mxu0 0
        %458 = vmatpush1.bf16.msra.mxu0 0
        %459 = vmatprep.subr.bf16.mxu0 0
        %460 = vmatpush1.bf16.msra.mxu0 0
        %461 = vmatprep.subr.bf16.mxu0 0
        %462 = vmatpush1.bf16.msra.mxu0 0
        %463 = vmatprep.subr.bf16.mxu0 0
        %464 = vmatpush1.bf16.msra.mxu0 0
        %465 = vmatprep.subr.bf16.mxu0 0
        %466 = vmatpush1.bf16.msra.mxu0 0
        %467 = vmatprep.mubr.bf16.mxu0 0
        %468 = vmatmul.mubr.bf16.gmra.mrb[0].mxu0 %v433
        %v469 = vpop.f32.mrb[0].mxu0
        %v470 = vadd.f32 %v412, %v469
        %v471 = vpop.f32.mrb[0].mxu0
        %v472 = vpop.f32.mrb[0].mxu0
        %v473 = vadd.f32 %v412, %v472
        %v474 = vpop.f32.mrb[0].mxu0
        %475 = vdwg.mxu0
        %v476 = vmax.f32 %v470, 0.0
        %v477 = vmax.f32 %v473, 0.0
        %v480 = vrot.slane %v476, 7
        %v481 = vrot.slane %v477, 7
        %v482 = vsel %vm369, %v480, %v481
        %v485 = vsel %vm369, 0.0, %v480
        %v486 = vrot.slane %v476, 1
        %v487 = vrot.slane %v477, 1
        %v488 = vsel %vm376, %v486, %v487
        %v490 = vsel %vm376, %v487, 0.0
        %vm491 = vcmask 1045504
        %v492 = vrot.slane %v476, 2
        %v493 = vrot.slane %v477, 2
        %v494 = vsel %vm491, %v492, %v493
        %v496 = vsel %vm491, %v493, 0.0
        %497 = vrot.lane.b32.xlu0 %v476, 32
        %v498 = vpop.permute.xlu0 %497
        %499 = vrot.lane.b32.xlu0 %v477, 32
        %v500 = vpop.permute.xlu0 %499
        %504 = vrot.lane.b32.xlu0 %v488, 64
        %v505 = vpop.permute.xlu0 %504
        %506 = vrot.lane.b32.xlu0 %v490, 64
        %v507 = vpop.permute.xlu0 %506
        %511 = vrot.lane.b32.xlu0 %v494, 96
        %v512 = vpop.permute.xlu0 %511
        %513 = vrot.lane.b32.xlu0 %v496, 96
        %v514 = vpop.permute.xlu0 %513
        %v517 = vsel %vm398, %v485, %v498
        %v518 = vsel %vm398, %v482, %v500
        %vm519 = vcmask 523264
        %v520 = vsel %vm519, %v517, %v505
        %v521 = vsel %vm519, %v518, %v507
        %vm522 = vcmask 785408
        %v523 = vsel %vm522, %v520, %v512
        %v524 = vsel %vm522, %v521, %v514
        %v525 = vpack.c.bf16 %v524, %v523
        %v526 = vld [vmem:[%s3] sm:$0xf]
        %v528 = vsel %vm395, %v526, 0
        %530 = vmatprep.subr.bf16.mxu0 0
        %531 = vmatpush1.bf16.msra.mxu0 %v525
        %532 = vmatprep.subr.bf16.mxu0 0
        %533 = vmatpush1.bf16.msra.mxu0 0
        %534 = vmatprep.subr.bf16.mxu0 0
        %535 = vmatpush1.bf16.msra.mxu0 0
        %536 = vmatprep.subr.bf16.mxu0 0
        %537 = vmatpush1.bf16.msra.mxu0 0
        %538 = vmatprep.subr.bf16.mxu0 0
        %539 = vmatpush1.bf16.msra.mxu0 0
        %540 = vmatprep.subr.bf16.mxu0 0
        %541 = vmatpush1.bf16.msra.mxu0 0
        %542 = vmatprep.subr.bf16.mxu0 0
        %543 = vmatpush1.bf16.msra.mxu0 0
        %544 = vmatprep.subr.bf16.mxu0 0
        %545 = vmatpush1.bf16.msra.mxu0 0
        %546 = vmatprep.subr.bf16.mxu0 0
        %547 = vmatpush1.bf16.msra.mxu0 0
        %548 = vmatprep.subr.bf16.mxu0 0
        %549 = vmatpush1.bf16.msra.mxu0 0
        %550 = vmatprep.subr.bf16.mxu0 0
        %551 = vmatpush1.bf16.msra.mxu0 0
        %552 = vmatprep.subr.bf16.mxu0 0
        %553 = vmatpush1.bf16.msra.mxu0 0
        %554 = vmatprep.subr.bf16.mxu0 0
        %555 = vmatpush1.bf16.msra.mxu0 0
        %556 = vmatprep.subr.bf16.mxu0 0
        %557 = vmatpush1.bf16.msra.mxu0 0
        %558 = vmatprep.subr.bf16.mxu0 0
        %559 = vmatpush1.bf16.msra.mxu0 0
        %560 = vmatprep.subr.bf16.mxu0 0
        %561 = vmatpush1.bf16.msra.mxu0 0
        %562 = vmatprep.mubr.bf16.mxu0 0
        %563 = vmatmul.mubr.bf16.gmra.mrb[0].mxu0 %v528
        %v564 = vpop.f32.mrb[0].mxu0
        %v565 = vadd.f32 0.0, %v564
        %v566 = vpop.f32.mrb[0].mxu0
        %v567 = vpop.f32.mrb[0].mxu0
        %v568 = vpop.f32.mrb[0].mxu0
        %569 = vdwg.mxu0
        %v570 = vpack.c.bf16 %v565, %v565
        %v571 = vld [vmem:[%s1 + $0x18] sm:$0xf]
        %v572 = vld [vmem:[%s1 + $0x1c] sm:$0xf]
        %v573 = vld [vmem:[%s1 + $0x20] sm:$0xf]
        %v574 = vld [vmem:[%s1 + $0x24] sm:$0xf]
        %v575 = vld [vmem:[%s1 + $0x28] sm:$0xf]
        %v576 = vld [vmem:[%s1 + $0x2c] sm:$0xf]
        %v577 = vld [vmem:[%s1 + $0x30] sm:$0xf]
        %v578 = vld [vmem:[%s1 + $0x34] sm:$0xf]
        %v579 = vld [vmem:[%s1 + $0x38] sm:$0xf]
        %v580 = vld [vmem:[%s1 + $0x3c] sm:$0xf]
        %v581 = vld [vmem:[%s1 + $0x40] sm:$0xf]
        %v582 = vld [vmem:[%s1 + $0x44] sm:$0xf]
        %v583 = vld [vmem:[%s1 + $0x48] sm:$0xf]
        %v584 = vld [vmem:[%s1 + $0x4c] sm:$0xf]
        %v585 = vld [vmem:[%s1 + $0x50] sm:$0xf]
        %v586 = vld [vmem:[%s1 + $0x54] sm:$0xf]
        %v587 = vld [vmem:[%s2 + $0x1] sm:$0x1]
        %v588 = vlaneseq
        %v589 = vshrl.u32 %v588, 7
        %v590 = vsub.s32 0, %v589
        %v591 = vrot.slane %v587, %v590
        %v608 = vunpack.c.l.b16 %v571
        %v609 = vunpack.c.l.b16 %v572
        %v610 = vunpack.c.l.b16 %v573
        %v611 = vunpack.c.l.b16 %v574
        %v612 = vunpack.c.l.b16 %v575
        %v613 = vunpack.c.l.b16 %v576
        %v614 = vunpack.c.l.b16 %v577
        %v615 = vunpack.c.l.b16 %v578
        %v616 = vunpack.c.l.b16 %v579
        %v617 = vunpack.c.l.b16 %v580
        %v618 = vunpack.c.l.b16 %v581
        %v619 = vunpack.c.l.b16 %v582
        %v620 = vunpack.c.l.b16 %v583
        %v621 = vunpack.c.l.b16 %v584
        %v622 = vunpack.c.l.b16 %v585
        %v623 = vunpack.c.l.b16 %v586
        %v624 = vpack.c.b16 %v609, %v608
        %v625 = vpack.c.b16 %v611, %v610
        %v626 = vpack.c.b16 %v613, %v612
        %v627 = vpack.c.b16 %v615, %v614
        %v628 = vpack.c.b16 %v617, %v616
        %v629 = vpack.c.b16 %v619, %v618
        %v630 = vpack.c.b16 %v621, %v620
        %v631 = vpack.c.b16 %v623, %v622
        %640 = vmatprep.subr.bf16.mxu0 0
        %641 = vmatpush1.bf16.msra.mxu0 %v624
        %642 = vmatprep.subr.bf16.mxu0 0
        %643 = vmatpush1.bf16.msra.mxu0 %v625
        %644 = vmatprep.subr.bf16.mxu0 0
        %645 = vmatpush1.bf16.msra.mxu0 %v626
        %646 = vmatprep.subr.bf16.mxu0 0
        %647 = vmatpush1.bf16.msra.mxu0 %v627
        %648 = vmatprep.subr.bf16.mxu0 0
        %649 = vmatpush1.bf16.msra.mxu0 %v628
        %650 = vmatprep.subr.bf16.mxu0 0
        %651 = vmatpush1.bf16.msra.mxu0 %v629
        %652 = vmatprep.subr.bf16.mxu0 0
        %653 = vmatpush1.bf16.msra.mxu0 %v630
        %654 = vmatprep.subr.bf16.mxu0 0
        %655 = vmatpush1.bf16.msra.mxu0 %v631
        %656 = vmatprep.subr.bf16.mxu0 0
        %657 = vmatpush1.bf16.msra.mxu0 0
        %658 = vmatprep.subr.bf16.mxu0 0
        %659 = vmatpush1.bf16.msra.mxu0 0
        %660 = vmatprep.subr.bf16.mxu0 0
        %661 = vmatpush1.bf16.msra.mxu0 0
        %662 = vmatprep.subr.bf16.mxu0 0
        %663 = vmatpush1.bf16.msra.mxu0 0
        %664 = vmatprep.subr.bf16.mxu0 0
        %665 = vmatpush1.bf16.msra.mxu0 0
        %666 = vmatprep.subr.bf16.mxu0 0
        %667 = vmatpush1.bf16.msra.mxu0 0
        %668 = vmatprep.subr.bf16.mxu0 0
        %669 = vmatpush1.bf16.msra.mxu0 0
        %670 = vmatprep.subr.bf16.mxu0 0
        %671 = vmatpush1.bf16.msra.mxu0 0
        %672 = vmatprep.mubr.bf16.mxu0 0
        %673 = vmatmul.mubr.bf16.gmra.mrb[0].mxu0 %v570
        %v674 = vpop.f32.mrb[0].mxu0
        %v675 = vadd.f32 %v591, %v674
        %v676 = vpop.f32.mrb[0].mxu0
        %v677 = vpop.f32.mrb[0].mxu0
        %v678 = vpop.f32.mrb[0].mxu0
        %679 = vdwg.mxu0
        %v680 = vmax.f32 %v675, 0.0
        %v682 = vrot.slane %v680, 5
        %vm684 = vcmask 1042432
        %v685 = vsel %vm684, 0.0, %v682
        %v686 = vrot.slane %v680, 3
        %vm688 = vcmask 1044480
        %v689 = vsel %vm688, %v686, 0.0
        %690 = vrot.lane.b32.xlu0 %v680, 32
        %v691 = vpop.permute.xlu0 %690
        %694 = vrot.lane.b32.xlu0 %v689, 64
        %v695 = vpop.permute.xlu0 %694
        %v697 = vsel %vm398, %v685, %v691
        %v698 = vsel %vm519, %v697, %v695
        %v699 = vpack.c.bf16 %v698, %v698
        %v700 = vld [vmem:[%s1 + $0x58] sm:$0xf]
        %v701 = vld [vmem:[%s1 + $0x5c] sm:$0xf]
        %v702 = vld [vmem:[%s1 + $0x60] sm:$0xf]
        %v703 = vld [vmem:[%s1 + $0x64] sm:$0xf]
        %v704 = vld [vmem:[%s1 + $0x68] sm:$0xf]
        %v705 = vld [vmem:[%s1 + $0x6c] sm:$0xf]
        %v706 = vld [vmem:[%s1 + $0x70] sm:$0xf]
        %v707 = vld [vmem:[%s1 + $0x74] sm:$0xf]
        %v708 = vld [vmem:[%s1 + $0x78] sm:$0xf]
        %v709 = vld [vmem:[%s1 + $0x7c] sm:$0xf]
        %v710 = vld [vmem:[%s1 + $0x80] sm:$0xf]
        %v711 = vld [vmem:[%s1 + $0x84] sm:$0xf]
        %v712 = vld [vmem:[%s2 + $0x2] sm:$0x1]
        %v713 = vlaneseq
        %v714 = vshrl.u32 %v713, 7
        %v715 = vsub.s32 0, %v714
        %v716 = vrot.slane %v712, %v715
        %v729 = vunpack.c.l.b16 %v700
        %v730 = vunpack.c.l.b16 %v701
        %v731 = vunpack.c.l.b16 %v702
        %v732 = vunpack.c.l.b16 %v703
        %v733 = vunpack.c.l.b16 %v704
        %v734 = vunpack.c.l.b16 %v705
        %v735 = vunpack.c.l.b16 %v706
        %v736 = vunpack.c.l.b16 %v707
        %v737 = vunpack.c.l.b16 %v708
        %v738 = vunpack.c.l.b16 %v709
        %v739 = vunpack.c.l.b16 %v710
        %v740 = vunpack.c.l.b16 %v711
        %v741 = vpack.c.b16 %v730, %v729
        %v742 = vpack.c.b16 %v732, %v731
        %v743 = vpack.c.b16 %v734, %v733
        %v744 = vpack.c.b16 %v736, %v735
        %v745 = vpack.c.b16 %v738, %v737
        %v746 = vpack.c.b16 %v740, %v739
        %v754 = vsel %vm522, %v699, 0
        %756 = vmatprep.subr.bf16.mxu0 0
        %757 = vmatpush1.bf16.msra.mxu0 %v741
        %758 = vmatprep.subr.bf16.mxu0 0
        %759 = vmatpush1.bf16.msra.mxu0 %v742
        %760 = vmatprep.subr.bf16.mxu0 0
        %761 = vmatpush1.bf16.msra.mxu0 %v743
        %762 = vmatprep.subr.bf16.mxu0 0
        %763 = vmatpush1.bf16.msra.mxu0 %v744
        %764 = vmatprep.subr.bf16.mxu0 0
        %765 = vmatpush1.bf16.msra.mxu0 %v745
        %766 = vmatprep.subr.bf16.mxu0 0
        %767 = vmatpush1.bf16.msra.mxu0 %v746
        %768 = vmatprep.subr.bf16.mxu0 0
        %769 = vmatpush1.bf16.msra.mxu0 0
        %770 = vmatprep.subr.bf16.mxu0 0
        %771 = vmatpush1.bf16.msra.mxu0 0
        %772 = vmatprep.subr.bf16.mxu0 0
        %773 = vmatpush1.bf16.msra.mxu0 0
        %774 = vmatprep.subr.bf16.mxu0 0
        %775 = vmatpush1.bf16.msra.mxu0 0
        %776 = vmatprep.subr.bf16.mxu0 0
        %777 = vmatpush1.bf16.msra.mxu0 0
        %778 = vmatprep.subr.bf16.mxu0 0
        %779 = vmatpush1.bf16.msra.mxu0 0
        %780 = vmatprep.subr.bf16.mxu0 0
        %781 = vmatpush1.bf16.msra.mxu0 0
        %782 = vmatprep.subr.bf16.mxu0 0
        %783 = vmatpush1.bf16.msra.mxu0 0
        %784 = vmatprep.subr.bf16.mxu0 0
        %785 = vmatpush1.bf16.msra.mxu0 0
        %786 = vmatprep.subr.bf16.mxu0 0
        %787 = vmatpush1.bf16.msra.mxu0 0
        %788 = vmatprep.mubr.bf16.mxu0 0
        %789 = vmatmul.mubr.bf16.gmra.mrb[0].mxu0 %v754
        %v790 = vpop.f32.mrb[0].mxu0
        %v791 = vadd.f32 %v716, %v790
        %v792 = vpop.f32.mrb[0].mxu0
        %v793 = vpop.f32.mrb[0].mxu0
        %v794 = vpop.f32.mrb[0].mxu0
        %795 = vdwg.mxu0
        %v796 = vmax.f32 %v791, 0.0
        %v797 = vpack.c.bf16 %v796, %v796
        %v798 = vld [vmem:[%s1 + $0x88] sm:$0xf]
        %v799 = vld [vmem:[%s1 + $0x8c] sm:$0xf]
        %v800 = vld [vmem:[%s1 + $0x90] sm:$0xf]
        %v801 = vld [vmem:[%s1 + $0x94] sm:$0xf]
        %v802 = vld [vmem:[%s2 + $0x3] sm:$0x1]
        %v803 = vlaneseq
        %v804 = vshrl.u32 %v803, 7
        %v805 = vsub.s32 0, %v804
        %v806 = vrot.slane %v802, %v805
        %v811 = vunpack.c.l.b16 %v798
        %v812 = vunpack.c.l.b16 %v799
        %v813 = vunpack.c.l.b16 %v800
        %v814 = vunpack.c.l.b16 %v801
        %v815 = vpack.c.b16 %v812, %v811
        %v816 = vpack.c.b16 %v814, %v813
        %v820 = vsel %vm398, %v797, 0
        %822 = vmatprep.subr.bf16.mxu0 0
        %823 = vmatpush1.bf16.msra.mxu0 %v815
        %824 = vmatprep.subr.bf16.mxu0 0
        %825 = vmatpush1.bf16.msra.mxu0 %v816
        %826 = vmatprep.subr.bf16.mxu0 0
        %827 = vmatpush1.bf16.msra.mxu0 0
        %828 = vmatprep.subr.bf16.mxu0 0
        %829 = vmatpush1.bf16.msra.mxu0 0
        %830 = vmatprep.subr.bf16.mxu0 0
        %831 = vmatpush1.bf16.msra.mxu0 0
        %832 = vmatprep.subr.bf16.mxu0 0
        %833 = vmatpush1.bf16.msra.mxu0 0
        %834 = vmatprep.subr.bf16.mxu0 0
        %835 = vmatpush1.bf16.msra.mxu0 0
        %836 = vmatprep.subr.bf16.mxu0 0
        %837 = vmatpush1.bf16.msra.mxu0 0
        %838 = vmatprep.subr.bf16.mxu0 0
        %839 = vmatpush1.bf16.msra.mxu0 0
        %840 = vmatprep.subr.bf16.mxu0 0
        %841 = vmatpush1.bf16.msra.mxu0 0
        %842 = vmatprep.subr.bf16.mxu0 0
        %843 = vmatpush1.bf16.msra.mxu0 0
        %844 = vmatprep.subr.bf16.mxu0 0
        %845 = vmatpush1.bf16.msra.mxu0 0
        %846 = vmatprep.subr.bf16.mxu0 0
        %847 = vmatpush1.bf16.msra.mxu0 0
        %848 = vmatprep.subr.bf16.mxu0 0
        %849 = vmatpush1.bf16.msra.mxu0 0
        %850 = vmatprep.subr.bf16.mxu0 0
        %851 = vmatpush1.bf16.msra.mxu0 0
        %852 = vmatprep.subr.bf16.mxu0 0
        %853 = vmatpush1.bf16.msra.mxu0 0
        %854 = vmatprep.mubr.bf16.mxu0 0
        %855 = vmatmul.mubr.bf16.gmra.mrb[0].mxu0 %v820
        %v856 = vpop.f32.mrb[0].mxu0
        %v857 = vadd.f32 %v806, %v856
        %v858 = vpop.f32.mrb[0].mxu0
        %v859 = vpop.f32.mrb[0].mxu0
        %v860 = vpop.f32.mrb[0].mxu0
        %861 = vdwg.mxu0
        %v862 = vadd.f32 %v857, %v675
        %v863 = vmax.f32 %v862, 0.0
        %v865 = vrot.slane %v863, 7
        %v867 = vsel %vm369, 0.0, %v865
        %v868 = vrot.slane %v863, 1
        %v870 = vsel %vm376, %v868, 0.0
        %871 = vrot.lane.b32.xlu0 %v863, 32
        %v872 = vpop.permute.xlu0 %871
        %875 = vrot.lane.b32.xlu0 %v870, 64
        %v876 = vpop.permute.xlu0 %875
        %v878 = vsel %vm398, %v867, %v872
        %v879 = vsel %vm519, %v878, %v876
        %v880 = vpack.c.bf16 %v879, %v879
        %v881 = vld [vmem:[%s1 + $0x98] sm:$0xf]
        %v882 = vld [vmem:[%s1 + $0x9c] sm:$0xf]
        %v883 = vld [vmem:[%s1 + $0xa0] sm:$0xf]
        %v884 = vld [vmem:[%s1 + $0xa4] sm:$0xf]
        %v885 = vld [vmem:[%s1 + $0xa8] sm:$0xf]
        %v886 = vld [vmem:[%s1 + $0xac] sm:$0xf]
        %v887 = vld [vmem:[%s1 + $0xb0] sm:$0xf]
        %v888 = vld [vmem:[%s1 + $0xb4] sm:$0xf]
        %v889 = vld [vmem:[%s1 + $0xb8] sm:$0xf]
        %v890 = vld [vmem:[%s1 + $0xbc] sm:$0xf]
        %v891 = vld [vmem:[%s1 + $0xc0] sm:$0xf]
        %v892 = vld [vmem:[%s1 + $0xc4] sm:$0xf]
        %v893 = vld [vmem:[%s2 + $0x4] sm:$0x1]
        %v894 = vlaneseq
        %v895 = vshrl.u32 %v894, 7
        %v896 = vsub.s32 0, %v895
        %v897 = vrot.slane %v893, %v896
        %v910 = vunpack.c.l.b16 %v881
        %v911 = vunpack.c.l.b16 %v882
        %v912 = vunpack.c.l.b16 %v883
        %v913 = vunpack.c.l.b16 %v884
        %v914 = vunpack.c.l.b16 %v885
        %v915 = vunpack.c.l.b16 %v886
        %v916 = vunpack.c.l.b16 %v887
        %v917 = vunpack.c.l.b16 %v888
        %v918 = vunpack.c.l.b16 %v889
        %v919 = vunpack.c.l.b16 %v890
        %v920 = vunpack.c.l.b16 %v891
        %v921 = vunpack.c.l.b16 %v892
        %v922 = vpack.c.b16 %v911, %v910
        %v923 = vpack.c.b16 %v913, %v912
        %v924 = vpack.c.b16 %v915, %v914
        %v925 = vpack.c.b16 %v917, %v916
        %v926 = vpack.c.b16 %v919, %v918
        %v927 = vpack.c.b16 %v921, %v920
        %v935 = vsel %vm522, %v880, 0
        %937 = vmatprep.subr.bf16.mxu0 0
        %938 = vmatpush1.bf16.msra.mxu0 %v922
        %939 = vmatprep.subr.bf16.mxu0 0
        %940 = vmatpush1.bf16.msra.mxu0 %v923
        %941 = vmatprep.subr.bf16.mxu0 0
        %942 = vmatpush1.bf16.msra.mxu0 %v924
        %943 = vmatprep.subr.bf16.mxu0 0
        %944 = vmatpush1.bf16.msra.mxu0 %v925
        %945 = vmatprep.subr.bf16.mxu0 0
        %946 = vmatpush1.bf16.msra.mxu0 %v926
        %947 = vmatprep.subr.bf16.mxu0 0
        %948 = vmatpush1.bf16.msra.mxu0 %v927
        %949 = vmatprep.subr.bf16.mxu0 0
        %950 = vmatpush1.bf16.msra.mxu0 0
        %951 = vmatprep.subr.bf16.mxu0 0
        %952 = vmatpush1.bf16.msra.mxu0 0
        %953 = vmatprep.subr.bf16.mxu0 0
        %954 = vmatpush1.bf16.msra.mxu0 0
        %955 = vmatprep.subr.bf16.mxu0 0
        %956 = vmatpush1.bf16.msra.mxu0 0
        %957 = vmatprep.subr.bf16.mxu0 0
        %958 = vmatpush1.bf16.msra.mxu0 0
        %959 = vmatprep.subr.bf16.mxu0 0
        %960 = vmatpush1.bf16.msra.mxu0 0
        %961 = vmatprep.subr.bf16.mxu0 0
        %962 = vmatpush1.bf16.msra.mxu0 0
        %963 = vmatprep.subr.bf16.mxu0 0
        %964 = vmatpush1.bf16.msra.mxu0 0
        %965 = vmatprep.subr.bf16.mxu0 0
        %966 = vmatpush1.bf16.msra.mxu0 0
        %967 = vmatprep.subr.bf16.mxu0 0
        %968 = vmatpush1.bf16.msra.mxu0 0
        %969 = vmatprep.mubr.bf16.mxu0 0
        %970 = vmatmul.mubr.bf16.gmra.mrb[0].mxu0 %v935
        %v971 = vpop.f32.mrb[0].mxu0
        %v972 = vadd.f32 %v897, %v971
        %v973 = vpop.f32.mrb[0].mxu0
        %v974 = vpop.f32.mrb[0].mxu0
        %v975 = vpop.f32.mrb[0].mxu0
        %976 = vdwg.mxu0
        %v977 = vmax.f32 %v972, 0.0
        %v978 = vpack.c.bf16 %v977, %v977
        %v979 = vld [vmem:[%s1 + $0xc8] sm:$0xf]
        %v980 = vld [vmem:[%s1 + $0xcc] sm:$0xf]
        %v981 = vld [vmem:[%s1 + $0xd0] sm:$0xf]
        %v982 = vld [vmem:[%s1 + $0xd4] sm:$0xf]
        %v983 = vld [vmem:[%s2 + $0x5] sm:$0x1]
        %v984 = vlaneseq
        %v985 = vshrl.u32 %v984, 7
        %v986 = vsub.s32 0, %v985
        %v987 = vrot.slane %v983, %v986
        %v992 = vunpack.c.l.b16 %v979
        %v993 = vunpack.c.l.b16 %v980
        %v994 = vunpack.c.l.b16 %v981
        %v995 = vunpack.c.l.b16 %v982
        %v996 = vpack.c.b16 %v993, %v992
        %v997 = vpack.c.b16 %v995, %v994
        %v1001 = vsel %vm398, %v978, 0
        %1003 = vmatprep.subr.bf16.mxu0 0
        %1004 = vmatpush1.bf16.msra.mxu0 %v996
        %1005 = vmatprep.subr.bf16.mxu0 0
        %1006 = vmatpush1.bf16.msra.mxu0 %v997
        %1007 = vmatprep.subr.bf16.mxu0 0
        %1008 = vmatpush1.bf16.msra.mxu0 0
        %1009 = vmatprep.subr.bf16.mxu0 0
        %1010 = vmatpush1.bf16.msra.mxu0 0
        %1011 = vmatprep.subr.bf16.mxu0 0
        %1012 = vmatpush1.bf16.msra.mxu0 0
        %1013 = vmatprep.subr.bf16.mxu0 0
        %1014 = vmatpush1.bf16.msra.mxu0 0
        %1015 = vmatprep.subr.bf16.mxu0 0
        %1016 = vmatpush1.bf16.msra.mxu0 0
        %1017 = vmatprep.subr.bf16.mxu0 0
        %1018 = vmatpush1.bf16.msra.mxu0 0
        %1019 = vmatprep.subr.bf16.mxu0 0
        %1020 = vmatpush1.bf16.msra.mxu0 0
        %1021 = vmatprep.subr.bf16.mxu0 0
        %1022 = vmatpush1.bf16.msra.mxu0 0
        %1023 = vmatprep.subr.bf16.mxu0 0
        %1024 = vmatpush1.bf16.msra.mxu0 0
        %1025 = vmatprep.subr.bf16.mxu0 0
        %1026 = vmatpush1.bf16.msra.mxu0 0
        %1027 = vmatprep.subr.bf16.mxu0 0
        %1028 = vmatpush1.bf16.msra.mxu0 0
        %1029 = vmatprep.subr.bf16.mxu0 0
        %1030 = vmatpush1.bf16.msra.mxu0 0
        %1031 = vmatprep.subr.bf16.mxu0 0
        %1032 = vmatpush1.bf16.msra.mxu0 0
        %1033 = vmatprep.subr.bf16.mxu0 0
        %1034 = vmatpush1.bf16.msra.mxu0 0
        %1035 = vmatprep.mubr.bf16.mxu0 0
        %1036 = vmatmul.mubr.bf16.gmra.mrb[0].mxu0 %v1001
        %v1037 = vpop.f32.mrb[0].mxu0
        %v1038 = vadd.f32 %v987, %v1037
        %v1039 = vpop.f32.mrb[0].mxu0
        %v1040 = vpop.f32.mrb[0].mxu0
        %v1041 = vpop.f32.mrb[0].mxu0
        %1042 = vdwg.mxu0
        %v1043 = vadd.f32 %v1038, %v862
        %v1045 = vrot.slane %v1043, 7
        %v1047 = vsel %vm369, 0.0, %v1045
        %v1048 = vrot.slane %v1043, 1
        %v1050 = vsel %vm376, %v1048, 0.0
        %v1051 = vrot.slane %v1043, 2
        %v1053 = vsel %vm491, %v1051, 0.0
        %1054 = vrot.lane.b32.xlu0 %v1043, 32
        %v1055 = vpop.permute.xlu0 %1054
        %1058 = vrot.lane.b32.xlu0 %v1050, 64
        %v1059 = vpop.permute.xlu0 %1058
        %1062 = vrot.lane.b32.xlu0 %v1053, 96
        %v1063 = vpop.permute.xlu0 %1062
        %v1065 = vsel %vm398, %v1047, %v1055
        %v1066 = vsel %vm519, %v1065, %v1059
        %v1067 = vsel %vm522, %v1066, %v1063
        %v1068 = vpack.c.bf16 %v1067, %v1067
        %s1069 = scalar_lea.vmem %s3, 8
        %v1070 = vld [vmem:[%s1069] sm:$0xf]
        %vm1071 = vcmask 64512
        %v1073 = vsel %vm1071, %v1070, 0
        %vm1075 = vcmask 1043456
        %v1077 = vsel %vm1075, %v1068, 0
        %1079 = vmatprep.subr.bf16.mxu0 0
        %1080 = vmatpush1.bf16.msra.mxu0 %v1077
        %1081 = vmatprep.subr.bf16.mxu0 0
        %1082 = vmatpush1.bf16.msra.mxu0 0
        %1083 = vmatprep.subr.bf16.mxu0 0
        %1084 = vmatpush1.bf16.msra.mxu0 0
        %1085 = vmatprep.subr.bf16.mxu0 0
        %1086 = vmatpush1.bf16.msra.mxu0 0
        %1087 = vmatprep.subr.bf16.mxu0 0
        %1088 = vmatpush1.bf16.msra.mxu0 0
        %1089 = vmatprep.subr.bf16.mxu0 0
        %1090 = vmatpush1.bf16.msra.mxu0 0
        %1091 = vmatprep.subr.bf16.mxu0 0
        %1092 = vmatpush1.bf16.msra.mxu0 0
        %1093 = vmatprep.subr.bf16.mxu0 0
        %1094 = vmatpush1.bf16.msra.mxu0 0
        %1095 = vmatprep.subr.bf16.mxu0 0
        %1096 = vmatpush1.bf16.msra.mxu0 0
        %1097 = vmatprep.subr.bf16.mxu0 0
        %1098 = vmatpush1.bf16.msra.mxu0 0
        %1099 = vmatprep.subr.bf16.mxu0 0
        %1100 = vmatpush1.bf16.msra.mxu0 0
        %1101 = vmatprep.subr.bf16.mxu0 0
        %1102 = vmatpush1.bf16.msra.mxu0 0
        %1103 = vmatprep.subr.bf16.mxu0 0
        %1104 = vmatpush1.bf16.msra.mxu0 0
        %1105 = vmatprep.subr.bf16.mxu0 0
        %1106 = vmatpush1.bf16.msra.mxu0 0
        %1107 = vmatprep.subr.bf16.mxu0 0
        %1108 = vmatpush1.bf16.msra.mxu0 0
        %1109 = vmatprep.subr.bf16.mxu0 0
        %1110 = vmatpush1.bf16.msra.mxu0 0
        %1111 = vmatprep.mubr.bf16.mxu0 0
        %1112 = vmatmul.mubr.bf16.gmra.mrb[0].mxu0 %v1073
        %v1113 = vpop.f32.mrb[0].mxu0
        %v1114 = vadd.f32 0.0, %v1113
        %v1115 = vpop.f32.mrb[0].mxu0
        %v1116 = vpop.f32.mrb[0].mxu0
        %v1117 = vpop.f32.mrb[0].mxu0
        %1118 = vdwg.mxu0
        %v1119 = vpack.c.bf16 %v1114, %v1114
        %v1120 = vld [vmem:[%s1 + $0xd8] sm:$0xf]
        %v1121 = vld [vmem:[%s1 + $0xdc] sm:$0xf]
        %v1122 = vld [vmem:[%s1 + $0xe0] sm:$0xf]
        %v1123 = vld [vmem:[%s1 + $0xe4] sm:$0xf]
        %v1124 = vld [vmem:[%s1 + $0xe8] sm:$0xf]
        %v1125 = vld [vmem:[%s1 + $0xec] sm:$0xf]
        %v1126 = vld [vmem:[%s1 + $0xf0] sm:$0xf]
        %v1127 = vld [vmem:[%s1 + $0xf4] sm:$0xf]
        %v1128 = vld [vmem:[%s1 + $0xf8] sm:$0xf]
        %v1129 = vld [vmem:[%s1 + $0xfc] sm:$0xf]
        %v1130 = vld [vmem:[%s1 + $0x100] sm:$0xf]
        %v1131 = vld [vmem:[%s1 + $0x104] sm:$0xf]
        %v1132 = vld [vmem:[%s1 + $0x108] sm:$0xf]
        %v1133 = vld [vmem:[%s1 + $0x10c] sm:$0xf]
        %v1134 = vld [vmem:[%s1 + $0x110] sm:$0xf]
        %v1135 = vld [vmem:[%s1 + $0x114] sm:$0xf]
        %v1136 = vld [vmem:[%s2 + $0x6] sm:$0x1]
        %v1137 = vlaneseq
        %v1138 = vshrl.u32 %v1137, 7
        %v1139 = vsub.s32 0, %v1138
        %v1140 = vrot.slane %v1136, %v1139
        %v1157 = vunpack.c.l.b16 %v1120
        %v1158 = vunpack.c.l.b16 %v1121
        %v1159 = vunpack.c.l.b16 %v1122
        %v1160 = vunpack.c.l.b16 %v1123
        %v1161 = vunpack.c.l.b16 %v1124
        %v1162 = vunpack.c.l.b16 %v1125
        %v1163 = vunpack.c.l.b16 %v1126
        %v1164 = vunpack.c.l.b16 %v1127
        %v1165 = vunpack.c.l.b16 %v1128
        %v1166 = vunpack.c.l.b16 %v1129
        %v1167 = vunpack.c.l.b16 %v1130
        %v1168 = vunpack.c.l.b16 %v1131
        %v1169 = vunpack.c.l.b16 %v1132
        %v1170 = vunpack.c.l.b16 %v1133
        %v1171 = vunpack.c.l.b16 %v1134
        %v1172 = vunpack.c.l.b16 %v1135
        %v1173 = vpack.c.b16 %v1158, %v1157
        %v1174 = vpack.c.b16 %v1160, %v1159
        %v1175 = vpack.c.b16 %v1162, %v1161
        %v1176 = vpack.c.b16 %v1164, %v1163
        %v1177 = vpack.c.b16 %v1166, %v1165
        %v1178 = vpack.c.b16 %v1168, %v1167
        %v1179 = vpack.c.b16 %v1170, %v1169
        %v1180 = vpack.c.b16 %v1172, %v1171
        %1189 = vmatprep.subr.bf16.mxu0 0
        %1190 = vmatpush1.bf16.msra.mxu0 %v1173
        %1191 = vmatprep.subr.bf16.mxu0 0
        %1192 = vmatpush1.bf16.msra.mxu0 %v1174
        %1193 = vmatprep.subr.bf16.mxu0 0
        %1194 = vmatpush1.bf16.msra.mxu0 %v1175
        %1195 = vmatprep.subr.bf16.mxu0 0
        %1196 = vmatpush1.bf16.msra.mxu0 %v1176
        %1197 = vmatprep.subr.bf16.mxu0 0
        %1198 = vmatpush1.bf16.msra.mxu0 %v1177
        %1199 = vmatprep.subr.bf16.mxu0 0
        %1200 = vmatpush1.bf16.msra.mxu0 %v1178
        %1201 = vmatprep.subr.bf16.mxu0 0
        %1202 = vmatpush1.bf16.msra.mxu0 %v1179
        %1203 = vmatprep.subr.bf16.mxu0 0
        %1204 = vmatpush1.bf16.msra.mxu0 %v1180
        %1205 = vmatprep.subr.bf16.mxu0 0
        %1206 = vmatpush1.bf16.msra.mxu0 0
        %1207 = vmatprep.subr.bf16.mxu0 0
        %1208 = vmatpush1.bf16.msra.mxu0 0
        %1209 = vmatprep.subr.bf16.mxu0 0
        %1210 = vmatpush1.bf16.msra.mxu0 0
        %1211 = vmatprep.subr.bf16.mxu0 0
        %1212 = vmatpush1.bf16.msra.mxu0 0
        %1213 = vmatprep.subr.bf16.mxu0 0
        %1214 = vmatpush1.bf16.msra.mxu0 0
        %1215 = vmatprep.subr.bf16.mxu0 0
        %1216 = vmatpush1.bf16.msra.mxu0 0
        %1217 = vmatprep.subr.bf16.mxu0 0
        %1218 = vmatpush1.bf16.msra.mxu0 0
        %1219 = vmatprep.subr.bf16.mxu0 0
        %1220 = vmatpush1.bf16.msra.mxu0 0
        %1221 = vmatprep.mubr.bf16.mxu0 0
        %1222 = vmatmul.mubr.bf16.gmra.mrb[0].mxu0 %v1119
        %v1223 = vpop.f32.mrb[0].mxu0
        %v1224 = vadd.f32 %v1140, %v1223
        %v1225 = vpop.f32.mrb[0].mxu0
        %v1226 = vpop.f32.mrb[0].mxu0
        %v1227 = vpop.f32.mrb[0].mxu0
        %1228 = vdwg.mxu0
        %v1229 = vmax.f32 %v1224, 0.0
        %v1231 = vrot.slane %v1229, 5
        %v1233 = vsel %vm684, 0.0, %v1231
        %v1234 = vrot.slane %v1229, 3
        %v1236 = vsel %vm369, %v1234, 0.0
        %1237 = vrot.lane.b32.xlu0 %v1229, 32
        %v1238 = vpop.permute.xlu0 %1237
        %1241 = vrot.lane.b32.xlu0 %v1236, 64
        %v1242 = vpop.permute.xlu0 %1241
        %v1244 = vsel %vm398, %v1233, %v1238
        %v1245 = vsel %vm519, %v1244, %v1242
        %v1246 = vpack.c.bf16 %v1245, %v1245
        %v1247 = vld [vmem:[%s1 + $0x118] sm:$0xf]
        %v1248 = vld [vmem:[%s1 + $0x11c] sm:$0xf]
        %v1249 = vld [vmem:[%s1 + $0x120] sm:$0xf]
        %v1250 = vld [vmem:[%s1 + $0x124] sm:$0xf]
        %v1251 = vld [vmem:[%s1 + $0x128] sm:$0xf]
        %v1252 = vld [vmem:[%s1 + $0x12c] sm:$0xf]
        %v1253 = vld [vmem:[%s1 + $0x130] sm:$0xf]
        %v1254 = vld [vmem:[%s1 + $0x134] sm:$0xf]
        %v1255 = vld [vmem:[%s1 + $0x138] sm:$0xf]
        %v1256 = vld [vmem:[%s1 + $0x13c] sm:$0xf]
        %v1257 = vld [vmem:[%s1 + $0x140] sm:$0xf]
        %v1258 = vld [vmem:[%s1 + $0x144] sm:$0xf]
        %v1259 = vld [vmem:[%s2 + $0x7] sm:$0x1]
        %v1260 = vlaneseq
        %v1261 = vshrl.u32 %v1260, 7
        %v1262 = vsub.s32 0, %v1261
        %v1263 = vrot.slane %v1259, %v1262
        %v1276 = vunpack.c.l.b16 %v1247
        %v1277 = vunpack.c.l.b16 %v1248
        %v1278 = vunpack.c.l.b16 %v1249
        %v1279 = vunpack.c.l.b16 %v1250
        %v1280 = vunpack.c.l.b16 %v1251
        %v1281 = vunpack.c.l.b16 %v1252
        %v1282 = vunpack.c.l.b16 %v1253
        %v1283 = vunpack.c.l.b16 %v1254
        %v1284 = vunpack.c.l.b16 %v1255
        %v1285 = vunpack.c.l.b16 %v1256
        %v1286 = vunpack.c.l.b16 %v1257
        %v1287 = vunpack.c.l.b16 %v1258
        %v1288 = vpack.c.b16 %v1277, %v1276
        %v1289 = vpack.c.b16 %v1279, %v1278
        %v1290 = vpack.c.b16 %v1281, %v1280
        %v1291 = vpack.c.b16 %v1283, %v1282
        %v1292 = vpack.c.b16 %v1285, %v1284
        %v1293 = vpack.c.b16 %v1287, %v1286
        %v1301 = vsel %vm522, %v1246, 0
        %1303 = vmatprep.subr.bf16.mxu0 0
        %1304 = vmatpush1.bf16.msra.mxu0 %v1288
        %1305 = vmatprep.subr.bf16.mxu0 0
        %1306 = vmatpush1.bf16.msra.mxu0 %v1289
        %1307 = vmatprep.subr.bf16.mxu0 0
        %1308 = vmatpush1.bf16.msra.mxu0 %v1290
        %1309 = vmatprep.subr.bf16.mxu0 0
        %1310 = vmatpush1.bf16.msra.mxu0 %v1291
        %1311 = vmatprep.subr.bf16.mxu0 0
        %1312 = vmatpush1.bf16.msra.mxu0 %v1292
        %1313 = vmatprep.subr.bf16.mxu0 0
        %1314 = vmatpush1.bf16.msra.mxu0 %v1293
        %1315 = vmatprep.subr.bf16.mxu0 0
        %1316 = vmatpush1.bf16.msra.mxu0 0
        %1317 = vmatprep.subr.bf16.mxu0 0
        %1318 = vmatpush1.bf16.msra.mxu0 0
        %1319 = vmatprep.subr.bf16.mxu0 0
        %1320 = vmatpush1.bf16.msra.mxu0 0
        %1321 = vmatprep.subr.bf16.mxu0 0
        %1322 = vmatpush1.bf16.msra.mxu0 0
        %1323 = vmatprep.subr.bf16.mxu0 0
        %1324 = vmatpush1.bf16.msra.mxu0 0
        %1325 = vmatprep.subr.bf16.mxu0 0
        %1326 = vmatpush1.bf16.msra.mxu0 0
        %1327 = vmatprep.subr.bf16.mxu0 0
        %1328 = vmatpush1.bf16.msra.mxu0 0
        %1329 = vmatprep.subr.bf16.mxu0 0
        %1330 = vmatpush1.bf16.msra.mxu0 0
        %1331 = vmatprep.subr.bf16.mxu0 0
        %1332 = vmatpush1.bf16.msra.mxu0 0
        %1333 = vmatprep.subr.bf16.mxu0 0
        %1334 = vmatpush1.bf16.msra.mxu0 0
        %1335 = vmatprep.mubr.bf16.mxu0 0
        %1336 = vmatmul.mubr.bf16.gmra.mrb[0].mxu0 %v1301
        %v1337 = vpop.f32.mrb[0].mxu0
        %v1338 = vadd.f32 %v1263, %v1337
        %v1339 = vpop.f32.mrb[0].mxu0
        %v1340 = vpop.f32.mrb[0].mxu0
        %v1341 = vpop.f32.mrb[0].mxu0
        %1342 = vdwg.mxu0
        %v1343 = vmax.f32 %v1338, 0.0
        %v1344 = vpack.c.bf16 %v1343, %v1343
        %v1345 = vld [vmem:[%s1 + $0x148] sm:$0xf]
        %v1346 = vld [vmem:[%s1 + $0x14c] sm:$0xf]
        %v1347 = vld [vmem:[%s1 + $0x150] sm:$0xf]
        %v1348 = vld [vmem:[%s1 + $0x154] sm:$0xf]
        %v1349 = vld [vmem:[%s2 + $0x8] sm:$0x1]
        %v1350 = vlaneseq
        %v1351 = vshrl.u32 %v1350, 7
        %v1352 = vsub.s32 0, %v1351
        %v1353 = vrot.slane %v1349, %v1352
        %v1358 = vunpack.c.l.b16 %v1345
        %v1359 = vunpack.c.l.b16 %v1346
        %v1360 = vunpack.c.l.b16 %v1347
        %v1361 = vunpack.c.l.b16 %v1348
        %v1362 = vpack.c.b16 %v1359, %v1358
        %v1363 = vpack.c.b16 %v1361, %v1360
        %v1367 = vsel %vm398, %v1344, 0
        %1369 = vmatprep.subr.bf16.mxu0 0
        %1370 = vmatpush1.bf16.msra.mxu0 %v1362
        %1371 = vmatprep.subr.bf16.mxu0 0
        %1372 = vmatpush1.bf16.msra.mxu0 %v1363
        %1373 = vmatprep.subr.bf16.mxu0 0
        %1374 = vmatpush1.bf16.msra.mxu0 0
        %1375 = vmatprep.subr.bf16.mxu0 0
        %1376 = vmatpush1.bf16.msra.mxu0 0
        %1377 = vmatprep.subr.bf16.mxu0 0
        %1378 = vmatpush1.bf16.msra.mxu0 0
        %1379 = vmatprep.subr.bf16.mxu0 0
        %1380 = vmatpush1.bf16.msra.mxu0 0
        %1381 = vmatprep.subr.bf16.mxu0 0
        %1382 = vmatpush1.bf16.msra.mxu0 0
        %1383 = vmatprep.subr.bf16.mxu0 0
        %1384 = vmatpush1.bf16.msra.mxu0 0
        %1385 = vmatprep.subr.bf16.mxu0 0
        %1386 = vmatpush1.bf16.msra.mxu0 0
        %1387 = vmatprep.subr.bf16.mxu0 0
        %1388 = vmatpush1.bf16.msra.mxu0 0
        %1389 = vmatprep.subr.bf16.mxu0 0
        %1390 = vmatpush1.bf16.msra.mxu0 0
        %1391 = vmatprep.subr.bf16.mxu0 0
        %1392 = vmatpush1.bf16.msra.mxu0 0
        %1393 = vmatprep.subr.bf16.mxu0 0
        %1394 = vmatpush1.bf16.msra.mxu0 0
        %1395 = vmatprep.subr.bf16.mxu0 0
        %1396 = vmatpush1.bf16.msra.mxu0 0
        %1397 = vmatprep.subr.bf16.mxu0 0
        %1398 = vmatpush1.bf16.msra.mxu0 0
        %1399 = vmatprep.subr.bf16.mxu0 0
        %1400 = vmatpush1.bf16.msra.mxu0 0
        %1401 = vmatprep.mubr.bf16.mxu0 0
        %1402 = vmatmul.mubr.bf16.gmra.mrb[0].mxu0 %v1367
        %v1403 = vpop.f32.mrb[0].mxu0
        %v1404 = vadd.f32 %v1353, %v1403
        %v1405 = vpop.f32.mrb[0].mxu0
        %v1406 = vpop.f32.mrb[0].mxu0
        %v1407 = vpop.f32.mrb[0].mxu0
        %1408 = vdwg.mxu0
        %v1409 = vadd.f32 %v1404, %v1224
        %v1410 = vmax.f32 %v1409, 0.0
        %v1412 = vrot.slane %v1410, 7
        %v1414 = vsel %vm369, 0.0, %v1412
        %v1415 = vrot.slane %v1410, 1
        %v1417 = vsel %vm684, %v1415, 0.0
        %1418 = vrot.lane.b32.xlu0 %v1410, 32
        %v1419 = vpop.permute.xlu0 %1418
        %1422 = vrot.lane.b32.xlu0 %v1417, 64
        %v1423 = vpop.permute.xlu0 %1422
        %v1425 = vsel %vm398, %v1414, %v1419
        %v1426 = vsel %vm519, %v1425, %v1423
        %v1427 = vpack.c.bf16 %v1426, %v1426
        %v1428 = vld [vmem:[%s1 + $0x158] sm:$0xf]
        %v1429 = vld [vmem:[%s1 + $0x15c] sm:$0xf]
        %v1430 = vld [vmem:[%s1 + $0x160] sm:$0xf]
        %v1431 = vld [vmem:[%s1 + $0x164] sm:$0xf]
        %v1432 = vld [vmem:[%s1 + $0x168] sm:$0xf]
        %v1433 = vld [vmem:[%s1 + $0x16c] sm:$0xf]
        %v1434 = vld [vmem:[%s1 + $0x170] sm:$0xf]
        %v1435 = vld [vmem:[%s1 + $0x174] sm:$0xf]
        %v1436 = vld [vmem:[%s1 + $0x178] sm:$0xf]
        %v1437 = vld [vmem:[%s1 + $0x17c] sm:$0xf]
        %v1438 = vld [vmem:[%s1 + $0x180] sm:$0xf]
        %v1439 = vld [vmem:[%s1 + $0x184] sm:$0xf]
        %v1440 = vld [vmem:[%s2 + $0x9] sm:$0x1]
        %v1441 = vlaneseq
        %v1442 = vshrl.u32 %v1441, 7
        %v1443 = vsub.s32 0, %v1442
        %v1444 = vrot.slane %v1440, %v1443
        %v1457 = vunpack.c.l.b16 %v1428
        %v1458 = vunpack.c.l.b16 %v1429
        %v1459 = vunpack.c.l.b16 %v1430
        %v1460 = vunpack.c.l.b16 %v1431
        %v1461 = vunpack.c.l.b16 %v1432
        %v1462 = vunpack.c.l.b16 %v1433
        %v1463 = vunpack.c.l.b16 %v1434
        %v1464 = vunpack.c.l.b16 %v1435
        %v1465 = vunpack.c.l.b16 %v1436
        %v1466 = vunpack.c.l.b16 %v1437
        %v1467 = vunpack.c.l.b16 %v1438
        %v1468 = vunpack.c.l.b16 %v1439
        %v1469 = vpack.c.b16 %v1458, %v1457
        %v1470 = vpack.c.b16 %v1460, %v1459
        %v1471 = vpack.c.b16 %v1462, %v1461
        %v1472 = vpack.c.b16 %v1464, %v1463
        %v1473 = vpack.c.b16 %v1466, %v1465
        %v1474 = vpack.c.b16 %v1468, %v1467
        %v1482 = vsel %vm522, %v1427, 0
        %1484 = vmatprep.subr.bf16.mxu0 0
        %1485 = vmatpush1.bf16.msra.mxu0 %v1469
        %1486 = vmatprep.subr.bf16.mxu0 0
        %1487 = vmatpush1.bf16.msra.mxu0 %v1470
        %1488 = vmatprep.subr.bf16.mxu0 0
        %1489 = vmatpush1.bf16.msra.mxu0 %v1471
        %1490 = vmatprep.subr.bf16.mxu0 0
        %1491 = vmatpush1.bf16.msra.mxu0 %v1472
        %1492 = vmatprep.subr.bf16.mxu0 0
        %1493 = vmatpush1.bf16.msra.mxu0 %v1473
        %1494 = vmatprep.subr.bf16.mxu0 0
        %1495 = vmatpush1.bf16.msra.mxu0 %v1474
        %1496 = vmatprep.subr.bf16.mxu0 0
        %1497 = vmatpush1.bf16.msra.mxu0 0
        %1498 = vmatprep.subr.bf16.mxu0 0
        %1499 = vmatpush1.bf16.msra.mxu0 0
        %1500 = vmatprep.subr.bf16.mxu0 0
        %1501 = vmatpush1.bf16.msra.mxu0 0
        %1502 = vmatprep.subr.bf16.mxu0 0
        %1503 = vmatpush1.bf16.msra.mxu0 0
        %1504 = vmatprep.subr.bf16.mxu0 0
        %1505 = vmatpush1.bf16.msra.mxu0 0
        %1506 = vmatprep.subr.bf16.mxu0 0
        %1507 = vmatpush1.bf16.msra.mxu0 0
        %1508 = vmatprep.subr.bf16.mxu0 0
        %1509 = vmatpush1.bf16.msra.mxu0 0
        %1510 = vmatprep.subr.bf16.mxu0 0
        %1511 = vmatpush1.bf16.msra.mxu0 0
        %1512 = vmatprep.subr.bf16.mxu0 0
        %1513 = vmatpush1.bf16.msra.mxu0 0
        %1514 = vmatprep.subr.bf16.mxu0 0
        %1515 = vmatpush1.bf16.msra.mxu0 0
        %1516 = vmatprep.mubr.bf16.mxu0 0
        %1517 = vmatmul.mubr.bf16.gmra.mrb[0].mxu0 %v1482
        %v1518 = vpop.f32.mrb[0].mxu0
        %v1519 = vadd.f32 %v1444, %v1518
        %v1520 = vpop.f32.mrb[0].mxu0
        %v1521 = vpop.f32.mrb[0].mxu0
        %v1522 = vpop.f32.mrb[0].mxu0
        %1523 = vdwg.mxu0
        %v1524 = vmax.f32 %v1519, 0.0
        %v1525 = vpack.c.bf16 %v1524, %v1524
        %v1526 = vld [vmem:[%s1 + $0x188] sm:$0xf]
        %v1527 = vld [vmem:[%s1 + $0x18c] sm:$0xf]
        %v1528 = vld [vmem:[%s1 + $0x190] sm:$0xf]
        %v1529 = vld [vmem:[%s1 + $0x194] sm:$0xf]
        %v1530 = vld [vmem:[%s2 + $0xa] sm:$0x1]
        %v1531 = vlaneseq
        %v1532 = vshrl.u32 %v1531, 7
        %v1533 = vsub.s32 0, %v1532
        %v1534 = vrot.slane %v1530, %v1533
        %v1539 = vunpack.c.l.b16 %v1526
        %v1540 = vunpack.c.l.b16 %v1527
        %v1541 = vunpack.c.l.b16 %v1528
        %v1542 = vunpack.c.l.b16 %v1529
        %v1543 = vpack.c.b16 %v1540, %v1539
        %v1544 = vpack.c.b16 %v1542, %v1541
        %v1548 = vsel %vm398, %v1525, 0
        %1550 = vmatprep.subr.bf16.mxu0 0
        %1551 = vmatpush1.bf16.msra.mxu0 %v1543
        %1552 = vmatprep.subr.bf16.mxu0 0
        %1553 = vmatpush1.bf16.msra.mxu0 %v1544
        %1554 = vmatprep.subr.bf16.mxu0 0
        %1555 = vmatpush1.bf16.msra.mxu0 0
        %1556 = vmatprep.subr.bf16.mxu0 0
        %1557 = vmatpush1.bf16.msra.mxu0 0
        %1558 = vmatprep.subr.bf16.mxu0 0
        %1559 = vmatpush1.bf16.msra.mxu0 0
        %1560 = vmatprep.subr.bf16.mxu0 0
        %1561 = vmatpush1.bf16.msra.mxu0 0
        %1562 = vmatprep.subr.bf16.mxu0 0
        %1563 = vmatpush1.bf16.msra.mxu0 0
        %1564 = vmatprep.subr.bf16.mxu0 0
        %1565 = vmatpush1.bf16.msra.mxu0 0
        %1566 = vmatprep.subr.bf16.mxu0 0
        %1567 = vmatpush1.bf16.msra.mxu0 0
        %1568 = vmatprep.subr.bf16.mxu0 0
        %1569 = vmatpush1.bf16.msra.mxu0 0
        %1570 = vmatprep.subr.bf16.mxu0 0
        %1571 = vmatpush1.bf16.msra.mxu0 0
        %1572 = vmatprep.subr.bf16.mxu0 0
        %1573 = vmatpush1.bf16.msra.mxu0 0
        %1574 = vmatprep.subr.bf16.mxu0 0
        %1575 = vmatpush1.bf16.msra.mxu0 0
        %1576 = vmatprep.subr.bf16.mxu0 0
        %1577 = vmatpush1.bf16.msra.mxu0 0
        %1578 = vmatprep.subr.bf16.mxu0 0
        %1579 = vmatpush1.bf16.msra.mxu0 0
        %1580 = vmatprep.subr.bf16.mxu0 0
        %1581 = vmatpush1.bf16.msra.mxu0 0
        %1582 = vmatprep.mubr.bf16.mxu0 0
        %1583 = vmatmul.mubr.bf16.gmra.mrb[0].mxu0 %v1548
        %v1584 = vpop.f32.mrb[0].mxu0
        %v1585 = vadd.f32 %v1534, %v1584
        %v1586 = vpop.f32.mrb[0].mxu0
        %v1587 = vpop.f32.mrb[0].mxu0
        %v1588 = vpop.f32.mrb[0].mxu0
        %1589 = vdwg.mxu0
        %v1590 = vadd.f32 %v1585, %v1409
        %v1592 = vrot.slane %v1590, 7
        %v1594 = vsel %vm369, 0.0, %v1592
        %v1595 = vrot.slane %v1590, 1
        %v1597 = vsel %vm684, %v1595, 0.0
        %1598 = vrot.lane.b32.xlu0 %v1590, 32
        %v1599 = vpop.permute.xlu0 %1598
        %1602 = vrot.lane.b32.xlu0 %v1597, 64
        %v1603 = vpop.permute.xlu0 %1602
        %v1605 = vsel %vm398, %v1594, %v1599
        %v1606 = vsel %vm519, %v1605, %v1603
        %v1607 = vpack.c.bf16 %v1606, %v1606
        %v1608 = vld [vmem:[%s1 + $0x198] sm:$0xf]
        %v1609 = vld [vmem:[%s1 + $0x19c] sm:$0xf]
        %v1610 = vld [vmem:[%s1 + $0x1a0] sm:$0xf]
        %v1611 = vld [vmem:[%s1 + $0x1a4] sm:$0xf]
        %v1612 = vld [vmem:[%s1 + $0x1a8] sm:$0xf]
        %v1613 = vld [vmem:[%s1 + $0x1ac] sm:$0xf]
        %v1614 = vld [vmem:[%s1 + $0x1b0] sm:$0xf]
        %v1615 = vld [vmem:[%s1 + $0x1b4] sm:$0xf]
        %v1616 = vld [vmem:[%s1 + $0x1b8] sm:$0xf]
        %v1617 = vld [vmem:[%s1 + $0x1bc] sm:$0xf]
        %v1618 = vld [vmem:[%s1 + $0x1c0] sm:$0xf]
        %v1619 = vld [vmem:[%s1 + $0x1c4] sm:$0xf]
        %v1620 = vld [vmem:[%s2 + $0xb] sm:$0x1]
        %v1621 = vlaneseq
        %v1622 = vshrl.u32 %v1621, 7
        %v1623 = vsub.s32 0, %v1622
        %v1624 = vrot.slane %v1620, %v1623
        %v1637 = vunpack.c.l.b16 %v1608
        %v1638 = vunpack.c.l.b16 %v1609
        %v1639 = vunpack.c.l.b16 %v1610
        %v1640 = vunpack.c.l.b16 %v1611
        %v1641 = vunpack.c.l.b16 %v1612
        %v1642 = vunpack.c.l.b16 %v1613
        %v1643 = vunpack.c.l.b16 %v1614
        %v1644 = vunpack.c.l.b16 %v1615
        %v1645 = vunpack.c.l.b16 %v1616
        %v1646 = vunpack.c.l.b16 %v1617
        %v1647 = vunpack.c.l.b16 %v1618
        %v1648 = vunpack.c.l.b16 %v1619
        %v1649 = vpack.c.b16 %v1638, %v1637
        %v1650 = vpack.c.b16 %v1640, %v1639
        %v1651 = vpack.c.b16 %v1642, %v1641
        %v1652 = vpack.c.b16 %v1644, %v1643
        %v1653 = vpack.c.b16 %v1646, %v1645
        %v1654 = vpack.c.b16 %v1648, %v1647
        %v1662 = vsel %vm522, %v1607, 0
        %1664 = vmatprep.subr.bf16.mxu0 0
        %1665 = vmatpush1.bf16.msra.mxu0 %v1649
        %1666 = vmatprep.subr.bf16.mxu0 0
        %1667 = vmatpush1.bf16.msra.mxu0 %v1650
        %1668 = vmatprep.subr.bf16.mxu0 0
        %1669 = vmatpush1.bf16.msra.mxu0 %v1651
        %1670 = vmatprep.subr.bf16.mxu0 0
        %1671 = vmatpush1.bf16.msra.mxu0 %v1652
        %1672 = vmatprep.subr.bf16.mxu0 0
        %1673 = vmatpush1.bf16.msra.mxu0 %v1653
        %1674 = vmatprep.subr.bf16.mxu0 0
        %1675 = vmatpush1.bf16.msra.mxu0 %v1654
        %1676 = vmatprep.subr.bf16.mxu0 0
        %1677 = vmatpush1.bf16.msra.mxu0 0
        %1678 = vmatprep.subr.bf16.mxu0 0
        %1679 = vmatpush1.bf16.msra.mxu0 0
        %1680 = vmatprep.subr.bf16.mxu0 0
        %1681 = vmatpush1.bf16.msra.mxu0 0
        %1682 = vmatprep.subr.bf16.mxu0 0
        %1683 = vmatpush1.bf16.msra.mxu0 0
        %1684 = vmatprep.subr.bf16.mxu0 0
        %1685 = vmatpush1.bf16.msra.mxu0 0
        %1686 = vmatprep.subr.bf16.mxu0 0
        %1687 = vmatpush1.bf16.msra.mxu0 0
        %1688 = vmatprep.subr.bf16.mxu0 0
        %1689 = vmatpush1.bf16.msra.mxu0 0
        %1690 = vmatprep.subr.bf16.mxu0 0
        %1691 = vmatpush1.bf16.msra.mxu0 0
        %1692 = vmatprep.subr.bf16.mxu0 0
        %1693 = vmatpush1.bf16.msra.mxu0 0
        %1694 = vmatprep.subr.bf16.mxu0 0
        %1695 = vmatpush1.bf16.msra.mxu0 0
        %1696 = vmatprep.mubr.bf16.mxu0 0
        %1697 = vmatmul.mubr.bf16.gmra.mrb[0].mxu0 %v1662
        %v1698 = vpop.f32.mrb[0].mxu0
        %v1699 = vadd.f32 %v1624, %v1698
        %v1700 = vpop.f32.mrb[0].mxu0
        %v1701 = vpop.f32.mrb[0].mxu0
        %v1702 = vpop.f32.mrb[0].mxu0
        %1703 = vdwg.mxu0
        %v1704 = vlaneseq
        %v1705 = vand.u32 %v1704, 127
        %v1706 = vld [vmem:[%s4] sm:$0xff]
        %v1707 = vld [vmem:[%s4 + $0x8] sm:$0xff]
        %v1708 = vld [vmem:[%s4 + $0x10] sm:$0xff]
        %v1709 = vld [vmem:[%s4 + $0x18] sm:$0xff]
        %v1710 = vld [vmem:[%s4 + $0x20] sm:$0xff]
        %v1711 = vld [vmem:[%s4 + $0x28] sm:$0xff]
        %v1712 = vld [vmem:[%s4 + $0x30] sm:$0xff]
        %v1713 = vld [vmem:[%s4 + $0x38] sm:$0xff]
        %v1715 = vsel %vm398, %v1699, 0
        %v1718 = vsel %vm398, %v1706, 0
        %v1721 = vsel %vm398, %v1707, 0
        %v1724 = vsel %vm398, %v1708, 0
        %v1727 = vsel %vm398, %v1709, 0
        %v1730 = vsel %vm398, %v1710, 0
        %v1733 = vsel %vm398, %v1711, 0
        %v1736 = vsel %vm398, %v1712, 0
        %v1739 = vsel %vm398, %v1713, 0
        %1741 = vmatprep.subr.mxu0 0.0
        %1742 = vmatpush1.xpose.msra.mxu0 %v1718
        %1743 = vmatprep.subr.mxu0 0.0
        %1744 = vmatpush1.xpose.msra.mxu0 %v1721
        %1745 = vmatprep.subr.mxu0 0.0
        %1746 = vmatpush1.xpose.msra.mxu0 %v1724
        %1747 = vmatprep.subr.mxu0 0.0
        %1748 = vmatpush1.xpose.msra.mxu0 %v1727
        %1749 = vmatprep.subr.mxu0 0.0
        %1750 = vmatpush1.xpose.msra.mxu0 %v1730
        %1751 = vmatprep.subr.mxu0 0.0
        %1752 = vmatpush1.xpose.msra.mxu0 %v1733
        %1753 = vmatprep.subr.mxu0 0.0
        %1754 = vmatpush1.xpose.msra.mxu0 %v1736
        %1755 = vmatprep.subr.mxu0 0.0
        %1756 = vmatpush1.xpose.msra.mxu0 %v1739
        %1757 = vmatprep.subr.mxu0 0.0
        %1758 = vmatpush1.xpose.msra.mxu0 0.0
        %1759 = vmatprep.subr.mxu0 0.0
        %1760 = vmatpush1.xpose.msra.mxu0 0.0
        %1761 = vmatprep.subr.mxu0 0.0
        %1762 = vmatpush1.xpose.msra.mxu0 0.0
        %1763 = vmatprep.subr.mxu0 0.0
        %1764 = vmatpush1.xpose.msra.mxu0 0.0
        %1765 = vmatprep.subr.mxu0 0.0
        %1766 = vmatpush1.xpose.msra.mxu0 0.0
        %1767 = vmatprep.subr.mxu0 0.0
        %1768 = vmatpush1.xpose.msra.mxu0 0.0
        %1769 = vmatprep.subr.mxu0 0.0
        %1770 = vmatpush1.xpose.msra.mxu0 0.0
        %1771 = vmatprep.subr.mxu0 0.0
        %1772 = vmatpush1.xpose.msra.mxu0 0.0
        %1773 = vmatprep.subr.mxu0 0.0
        %1774 = vmatpush1.xpose.msra.mxu0 0.0
        %1775 = vmatprep.subr.mxu0 0.0
        %1776 = vmatpush1.xpose.msra.mxu0 0.0
        %1777 = vmatprep.subr.mxu0 0.0
        %1778 = vmatpush1.xpose.msra.mxu0 0.0
        %1779 = vmatprep.subr.mxu0 0.0
        %1780 = vmatpush1.xpose.msra.mxu0 0.0
        %1781 = vmatprep.subr.mxu0 0.0
        %1782 = vmatpush1.xpose.msra.mxu0 0.0
        %1783 = vmatprep.subr.mxu0 0.0
        %1784 = vmatpush1.xpose.msra.mxu0 0.0
        %1785 = vmatprep.subr.mxu0 0.0
        %1786 = vmatpush1.xpose.msra.mxu0 0.0
        %1787 = vmatprep.subr.mxu0 0.0
        %1788 = vmatpush1.xpose.msra.mxu0 0.0
        %1789 = vmatprep.subr.mxu0 0.0
        %1790 = vmatpush1.xpose.msra.mxu0 0.0
        %1791 = vmatprep.subr.mxu0 0.0
        %1792 = vmatpush1.xpose.msra.mxu0 0.0
        %1793 = vmatprep.subr.mxu0 0.0
        %1794 = vmatpush1.xpose.msra.mxu0 0.0
        %1795 = vmatprep.subr.mxu0 0.0
        %1796 = vmatpush1.xpose.msra.mxu0 0.0
        %1797 = vmatprep.subr.mxu0 0.0
        %1798 = vmatpush1.xpose.msra.mxu0 0.0
        %1799 = vmatprep.subr.mxu0 0.0
        %1800 = vmatpush1.xpose.msra.mxu0 0.0
        %1801 = vmatprep.subr.mxu0 0.0
        %1802 = vmatpush1.xpose.msra.mxu0 0.0
        %1803 = vmatprep.subr.mxu0 0.0
        %1804 = vmatpush1.xpose.msra.mxu0 0.0
        %1805 = vmatprep.mubr.f32.mxu0 0.0
        %1806 = vmatmul.mubr.f32.gmra.mrb[0].mxu0 %v1715
        %v1807 = vpop.f32.mrb[0].mxu0
        %v1808 = vadd.f32 0.0, %v1807
        %v1809 = vpop.f32.mrb[0].mxu0
        %1810 = vdwg.mxu0
        %v1811 = vld [vmem:[%s5] sm:$0x1]
        %v1812 = vmul.f32 %v1808, 2.0
        %v1814 = vlaneseq
        %v1815 = vshrl.u32 %v1814, 7
        %v1816 = vsub.s32 0, %v1815
        %v1817 = vrot.slane %v1811, %v1816
        %v1819 = vsub.f32 %v1817, %v1812
        %vm1820 = vcmask 519168
        %v1821 = vsel %vm1820, %v1819, inf
        %1822 = vmin.xlane.f32.xlu0 %v1821
        %v1823 = vpop.xlane.xlu0 %1822
        %vm1824 = vcmp.le.f32.partialorder %v1819, %v1823
        %v1825 = vsel %vm1824, %v1705, 64
        %v1826 = vsel %vm1820, %v1825, 2147483647
        %v1827 = vand.u32 %v1826, 65535
        %v1828 = vshra.s32 %v1826, 16
        %v1829 = vcvt.s32.f32 %v1827
        %v1830 = vcvt.s32.f32 %v1828
        %1831 = vmin.xlane.f32.xlu0 %v1830
        %v1832 = vpop.xlane.xlu0 %1831
        %vm1833 = vcmp.eq.f32.partialorder %v1830, %v1832
        %v1834 = vsel %vm1833, %v1829, inf
        %1835 = vmin.xlane.f32.xlu0 %v1834
        %v1836 = vpop.xlane.xlu0 %1835
        %v1837 = vcvt.f32.s32 %v1836
        %v1838 = vcvt.f32.s32 %v1832
        %v1839 = vshll.u32 %v1838, 16
        %v1840 = vadd.s32 %v1839, %v1837
        %vm1841 = vcmp.eq.s32.totalorder %v1705, %v1840
        %v1842 = vsel %vm1841, 1, 0
        %v1843 = vcvt.s32.f32 %v1842
        %v1845 = vsel %vm519, %v1843, 0
        %1847 = vmatprep.subr.mxu0 0.0
        %1848 = vmatpush1.msra.mxu0 %v1706
        %1849 = vmatprep.subr.mxu0 0.0
        %1850 = vmatpush1.msra.mxu0 %v1707
        %1851 = vmatprep.subr.mxu0 0.0
        %1852 = vmatpush1.msra.mxu0 %v1708
        %1853 = vmatprep.subr.mxu0 0.0
        %1854 = vmatpush1.msra.mxu0 %v1709
        %1855 = vmatprep.subr.mxu0 0.0
        %1856 = vmatpush1.msra.mxu0 %v1710
        %1857 = vmatprep.subr.mxu0 0.0
        %1858 = vmatpush1.msra.mxu0 %v1711
        %1859 = vmatprep.subr.mxu0 0.0
        %1860 = vmatpush1.msra.mxu0 %v1712
        %1861 = vmatprep.subr.mxu0 0.0
        %1862 = vmatpush1.msra.mxu0 %v1713
        %1863 = vmatprep.subr.mxu0 0.0
        %1864 = vmatpush1.msra.mxu0 0.0
        %1865 = vmatprep.subr.mxu0 0.0
        %1866 = vmatpush1.msra.mxu0 0.0
        %1867 = vmatprep.subr.mxu0 0.0
        %1868 = vmatpush1.msra.mxu0 0.0
        %1869 = vmatprep.subr.mxu0 0.0
        %1870 = vmatpush1.msra.mxu0 0.0
        %1871 = vmatprep.subr.mxu0 0.0
        %1872 = vmatpush1.msra.mxu0 0.0
        %1873 = vmatprep.subr.mxu0 0.0
        %1874 = vmatpush1.msra.mxu0 0.0
        %1875 = vmatprep.subr.mxu0 0.0
        %1876 = vmatpush1.msra.mxu0 0.0
        %1877 = vmatprep.subr.mxu0 0.0
        %1878 = vmatpush1.msra.mxu0 0.0
        %1879 = vmatprep.subr.mxu0 0.0
        %1880 = vmatpush1.msra.mxu0 0.0
        %1881 = vmatprep.subr.mxu0 0.0
        %1882 = vmatpush1.msra.mxu0 0.0
        %1883 = vmatprep.subr.mxu0 0.0
        %1884 = vmatpush1.msra.mxu0 0.0
        %1885 = vmatprep.subr.mxu0 0.0
        %1886 = vmatpush1.msra.mxu0 0.0
        %1887 = vmatprep.subr.mxu0 0.0
        %1888 = vmatpush1.msra.mxu0 0.0
        %1889 = vmatprep.subr.mxu0 0.0
        %1890 = vmatpush1.msra.mxu0 0.0
        %1891 = vmatprep.subr.mxu0 0.0
        %1892 = vmatpush1.msra.mxu0 0.0
        %1893 = vmatprep.subr.mxu0 0.0
        %1894 = vmatpush1.msra.mxu0 0.0
        %1895 = vmatprep.subr.mxu0 0.0
        %1896 = vmatpush1.msra.mxu0 0.0
        %1897 = vmatprep.subr.mxu0 0.0
        %1898 = vmatpush1.msra.mxu0 0.0
        %1899 = vmatprep.subr.mxu0 0.0
        %1900 = vmatpush1.msra.mxu0 0.0
        %1901 = vmatprep.subr.mxu0 0.0
        %1902 = vmatpush1.msra.mxu0 0.0
        %1903 = vmatprep.subr.mxu0 0.0
        %1904 = vmatpush1.msra.mxu0 0.0
        %1905 = vmatprep.subr.mxu0 0.0
        %1906 = vmatpush1.msra.mxu0 0.0
        %1907 = vmatprep.subr.mxu0 0.0
        %1908 = vmatpush1.msra.mxu0 0.0
        %1909 = vmatprep.subr.mxu0 0.0
        %1910 = vmatpush1.msra.mxu0 0.0
        %1911 = vmatprep.mubr.f32.mxu0 0.0
        %1912 = vmatmul.mubr.f32.gmra.mrb[0].mxu0 %v1845
        %v1913 = vpop.f32.mrb[0].mxu0
        %v1914 = vadd.f32 0.0, %v1913
        %v1915 = vpop.f32.mrb[0].mxu0
        %1916 = vdwg.mxu0
        %v1917 = vmul.f32 %v1699, %v1699
        %vm1918 = vcmask 257024
        %v1919 = vsel %vm1918, %v1917, 0.0
        %1920 = vadd.xlane.f32.xlu0 %v1919
        %v1921 = vpop.xlane.xlu0 %1920
        %v1922 = vadd.f32 %v1921, %v1823
        %v1923 = vmax.f32 %v1922, 0.0
        %v1924 = vlaneseq
        %v1925 = vshrl.u32 %v1924, 7
        %v1926 = vsub.s32 %v1705, %v1925
        %v1927 = vrot.slane %v1840, %v1926
        %vm1928 = vcmask 24576
        %1929 = vst.msk [vmem:[%s333] sm:$0x1] %vm1928, %v1927
        %v1931 = vlaneseq
        %v1932 = vshrl.u32 %v1931, 7
        %v1933 = vsub.s32 %v1705, %v1932
        %v1934 = vrot.slane %v1923, %v1933
        %1936 = vst.msk [vmem:[%s359] sm:$0x1] %vm1928, %v1934
        %v1937 = vsel %vm1820, %v1843, 0.0
        %v1938 = vrot.slane %v1937, 4
        %v1939 = vadd.f32 %v1937, %v1938
        %v1940 = vrot.slane %v1939, 2
        %v1941 = vadd.f32 %v1939, %v1940
        %v1942 = vrot.slane %v1941, 1
        %v1943 = vadd.f32 %v1941, %v1942
        %vm1944 = vcmask 516096
        %1945 = vst.msk [vmem:[%s363] sm:$0x1] %vm1944, %v1943
        %v1946 = vadd.f32 %v1914, 0.0
        %v1947 = vsub.f32 %v1699, %v1914
        %s1948 = scalar_lea.vmem %s4, 64
        %v1949 = vld [vmem:[%s1948] sm:$0xff]
        %v1950 = vld [vmem:[%s1948 + $0x8] sm:$0xff]
        %v1951 = vld [vmem:[%s1948 + $0x10] sm:$0xff]
        %v1952 = vld [vmem:[%s1948 + $0x18] sm:$0xff]
        %v1953 = vld [vmem:[%s1948 + $0x20] sm:$0xff]
        %v1954 = vld [vmem:[%s1948 + $0x28] sm:$0xff]
        %v1955 = vld [vmem:[%s1948 + $0x30] sm:$0xff]
        %v1956 = vld [vmem:[%s1948 + $0x38] sm:$0xff]
        %v1958 = vsel %vm398, %v1947, 0
        %v1961 = vsel %vm398, %v1949, 0
        %v1964 = vsel %vm398, %v1950, 0
        %v1967 = vsel %vm398, %v1951, 0
        %v1970 = vsel %vm398, %v1952, 0
        %v1973 = vsel %vm398, %v1953, 0
        %v1976 = vsel %vm398, %v1954, 0
        %v1979 = vsel %vm398, %v1955, 0
        %v1982 = vsel %vm398, %v1956, 0
        %1984 = vmatprep.subr.mxu0 0.0
        %1985 = vmatpush1.xpose.msra.mxu0 %v1961
        %1986 = vmatprep.subr.mxu0 0.0
        %1987 = vmatpush1.xpose.msra.mxu0 %v1964
        %1988 = vmatprep.subr.mxu0 0.0
        %1989 = vmatpush1.xpose.msra.mxu0 %v1967
        %1990 = vmatprep.subr.mxu0 0.0
        %1991 = vmatpush1.xpose.msra.mxu0 %v1970
        %1992 = vmatprep.subr.mxu0 0.0
        %1993 = vmatpush1.xpose.msra.mxu0 %v1973
        %1994 = vmatprep.subr.mxu0 0.0
        %1995 = vmatpush1.xpose.msra.mxu0 %v1976
        %1996 = vmatprep.subr.mxu0 0.0
        %1997 = vmatpush1.xpose.msra.mxu0 %v1979
        %1998 = vmatprep.subr.mxu0 0.0
        %1999 = vmatpush1.xpose.msra.mxu0 %v1982
        %2000 = vmatprep.subr.mxu0 0.0
        %2001 = vmatpush1.xpose.msra.mxu0 0.0
        %2002 = vmatprep.subr.mxu0 0.0
        %2003 = vmatpush1.xpose.msra.mxu0 0.0
        %2004 = vmatprep.subr.mxu0 0.0
        %2005 = vmatpush1.xpose.msra.mxu0 0.0
        %2006 = vmatprep.subr.mxu0 0.0
        %2007 = vmatpush1.xpose.msra.mxu0 0.0
        %2008 = vmatprep.subr.mxu0 0.0
        %2009 = vmatpush1.xpose.msra.mxu0 0.0
        %2010 = vmatprep.subr.mxu0 0.0
        %2011 = vmatpush1.xpose.msra.mxu0 0.0
        %2012 = vmatprep.subr.mxu0 0.0
        %2013 = vmatpush1.xpose.msra.mxu0 0.0
        %2014 = vmatprep.subr.mxu0 0.0
        %2015 = vmatpush1.xpose.msra.mxu0 0.0
        %2016 = vmatprep.subr.mxu0 0.0
        %2017 = vmatpush1.xpose.msra.mxu0 0.0
        %2018 = vmatprep.subr.mxu0 0.0
        %2019 = vmatpush1.xpose.msra.mxu0 0.0
        %2020 = vmatprep.subr.mxu0 0.0
        %2021 = vmatpush1.xpose.msra.mxu0 0.0
        %2022 = vmatprep.subr.mxu0 0.0
        %2023 = vmatpush1.xpose.msra.mxu0 0.0
        %2024 = vmatprep.subr.mxu0 0.0
        %2025 = vmatpush1.xpose.msra.mxu0 0.0
        %2026 = vmatprep.subr.mxu0 0.0
        %2027 = vmatpush1.xpose.msra.mxu0 0.0
        %2028 = vmatprep.subr.mxu0 0.0
        %2029 = vmatpush1.xpose.msra.mxu0 0.0
        %2030 = vmatprep.subr.mxu0 0.0
        %2031 = vmatpush1.xpose.msra.mxu0 0.0
        %2032 = vmatprep.subr.mxu0 0.0
        %2033 = vmatpush1.xpose.msra.mxu0 0.0
        %2034 = vmatprep.subr.mxu0 0.0
        %2035 = vmatpush1.xpose.msra.mxu0 0.0
        %2036 = vmatprep.subr.mxu0 0.0
        %2037 = vmatpush1.xpose.msra.mxu0 0.0
        %2038 = vmatprep.subr.mxu0 0.0
        %2039 = vmatpush1.xpose.msra.mxu0 0.0
        %2040 = vmatprep.subr.mxu0 0.0
        %2041 = vmatpush1.xpose.msra.mxu0 0.0
        %2042 = vmatprep.subr.mxu0 0.0
        %2043 = vmatpush1.xpose.msra.mxu0 0.0
        %2044 = vmatprep.subr.mxu0 0.0
        %2045 = vmatpush1.xpose.msra.mxu0 0.0
        %2046 = vmatprep.subr.mxu0 0.0
        %2047 = vmatpush1.xpose.msra.mxu0 0.0
        %2048 = vmatprep.mubr.f32.mxu0 0.0
        %2049 = vmatmul.mubr.f32.gmra.mrb[0].mxu0 %v1958
        %v2050 = vpop.f32.mrb[0].mxu0
        %v2051 = vadd.f32 0.0, %v2050
        %v2052 = vpop.f32.mrb[0].mxu0
        %2053 = vdwg.mxu0
        %s2054 = scalar_lea.vmem %s5, 1
        %v2055 = vld [vmem:[%s2054] sm:$0x1]
        %v2056 = vmul.f32 %v2051, 2.0
        %v2058 = vlaneseq
        %v2059 = vshrl.u32 %v2058, 7
        %v2060 = vsub.s32 0, %v2059
        %v2061 = vrot.slane %v2055, %v2060
        %v2063 = vsub.f32 %v2061, %v2056
        %v2064 = vsel %vm1820, %v2063, inf
        %2065 = vmin.xlane.f32.xlu0 %v2064
        %v2066 = vpop.xlane.xlu0 %2065
        %vm2067 = vcmp.le.f32.partialorder %v2063, %v2066
        %v2068 = vsel %vm2067, %v1705, 64
        %v2069 = vsel %vm1820, %v2068, 2147483647
        %v2070 = vand.u32 %v2069, 65535
        %v2071 = vshra.s32 %v2069, 16
        %v2072 = vcvt.s32.f32 %v2070
        %v2073 = vcvt.s32.f32 %v2071
        %2074 = vmin.xlane.f32.xlu0 %v2073
        %v2075 = vpop.xlane.xlu0 %2074
        %vm2076 = vcmp.eq.f32.partialorder %v2073, %v2075
        %v2077 = vsel %vm2076, %v2072, inf
        %2078 = vmin.xlane.f32.xlu0 %v2077
        %v2079 = vpop.xlane.xlu0 %2078
        %v2080 = vcvt.f32.s32 %v2079
        %v2081 = vcvt.f32.s32 %v2075
        %v2082 = vshll.u32 %v2081, 16
        %v2083 = vadd.s32 %v2082, %v2080
        %vm2084 = vcmp.eq.s32.totalorder %v1705, %v2083
        %v2085 = vsel %vm2084, 1, 0
        %v2086 = vcvt.s32.f32 %v2085
        %v2088 = vsel %vm519, %v2086, 0
        %2090 = vmatprep.subr.mxu0 0.0
        %2091 = vmatpush1.msra.mxu0 %v1949
        %2092 = vmatprep.subr.mxu0 0.0
        %2093 = vmatpush1.msra.mxu0 %v1950
        %2094 = vmatprep.subr.mxu0 0.0
        %2095 = vmatpush1.msra.mxu0 %v1951
        %2096 = vmatprep.subr.mxu0 0.0
        %2097 = vmatpush1.msra.mxu0 %v1952
        %2098 = vmatprep.subr.mxu0 0.0
        %2099 = vmatpush1.msra.mxu0 %v1953
        %2100 = vmatprep.subr.mxu0 0.0
        %2101 = vmatpush1.msra.mxu0 %v1954
        %2102 = vmatprep.subr.mxu0 0.0
        %2103 = vmatpush1.msra.mxu0 %v1955
        %2104 = vmatprep.subr.mxu0 0.0
        %2105 = vmatpush1.msra.mxu0 %v1956
        %2106 = vmatprep.subr.mxu0 0.0
        %2107 = vmatpush1.msra.mxu0 0.0
        %2108 = vmatprep.subr.mxu0 0.0
        %2109 = vmatpush1.msra.mxu0 0.0
        %2110 = vmatprep.subr.mxu0 0.0
        %2111 = vmatpush1.msra.mxu0 0.0
        %2112 = vmatprep.subr.mxu0 0.0
        %2113 = vmatpush1.msra.mxu0 0.0
        %2114 = vmatprep.subr.mxu0 0.0
        %2115 = vmatpush1.msra.mxu0 0.0
        %2116 = vmatprep.subr.mxu0 0.0
        %2117 = vmatpush1.msra.mxu0 0.0
        %2118 = vmatprep.subr.mxu0 0.0
        %2119 = vmatpush1.msra.mxu0 0.0
        %2120 = vmatprep.subr.mxu0 0.0
        %2121 = vmatpush1.msra.mxu0 0.0
        %2122 = vmatprep.subr.mxu0 0.0
        %2123 = vmatpush1.msra.mxu0 0.0
        %2124 = vmatprep.subr.mxu0 0.0
        %2125 = vmatpush1.msra.mxu0 0.0
        %2126 = vmatprep.subr.mxu0 0.0
        %2127 = vmatpush1.msra.mxu0 0.0
        %2128 = vmatprep.subr.mxu0 0.0
        %2129 = vmatpush1.msra.mxu0 0.0
        %2130 = vmatprep.subr.mxu0 0.0
        %2131 = vmatpush1.msra.mxu0 0.0
        %2132 = vmatprep.subr.mxu0 0.0
        %2133 = vmatpush1.msra.mxu0 0.0
        %2134 = vmatprep.subr.mxu0 0.0
        %2135 = vmatpush1.msra.mxu0 0.0
        %2136 = vmatprep.subr.mxu0 0.0
        %2137 = vmatpush1.msra.mxu0 0.0
        %2138 = vmatprep.subr.mxu0 0.0
        %2139 = vmatpush1.msra.mxu0 0.0
        %2140 = vmatprep.subr.mxu0 0.0
        %2141 = vmatpush1.msra.mxu0 0.0
        %2142 = vmatprep.subr.mxu0 0.0
        %2143 = vmatpush1.msra.mxu0 0.0
        %2144 = vmatprep.subr.mxu0 0.0
        %2145 = vmatpush1.msra.mxu0 0.0
        %2146 = vmatprep.subr.mxu0 0.0
        %2147 = vmatpush1.msra.mxu0 0.0
        %2148 = vmatprep.subr.mxu0 0.0
        %2149 = vmatpush1.msra.mxu0 0.0
        %2150 = vmatprep.subr.mxu0 0.0
        %2151 = vmatpush1.msra.mxu0 0.0
        %2152 = vmatprep.subr.mxu0 0.0
        %2153 = vmatpush1.msra.mxu0 0.0
        %2154 = vmatprep.mubr.f32.mxu0 0.0
        %2155 = vmatmul.mubr.f32.gmra.mrb[0].mxu0 %v2088
        %v2156 = vpop.f32.mrb[0].mxu0
        %v2157 = vadd.f32 0.0, %v2156
        %v2158 = vpop.f32.mrb[0].mxu0
        %2159 = vdwg.mxu0
        %v2160 = vmul.f32 %v1947, %v1947
        %v2161 = vsel %vm1918, %v2160, 0.0
        %2162 = vadd.xlane.f32.xlu0 %v2161
        %v2163 = vpop.xlane.xlu0 %2162
        %v2164 = vadd.f32 %v2163, %v2066
        %v2165 = vmax.f32 %v2164, 0.0
        %v2166 = vlaneseq
        %v2167 = vshrl.u32 %v2166, 7
        %v2168 = vsub.s32 %v1705, %v2167
        %v2169 = vrot.slane %v2083, %v2168
        %2170 = vst.msk [vmem:[%s333 + $0x1] sm:$0x1] %vm1928, %v2169
        %v2172 = vlaneseq
        %v2173 = vshrl.u32 %v2172, 7
        %v2174 = vsub.s32 %v1705, %v2173
        %v2175 = vrot.slane %v2165, %v2174
        %2177 = vst.msk [vmem:[%s359 + $0x1] sm:$0x1] %vm1928, %v2175
        %v2178 = vsel %vm1820, %v2086, 0.0
        %v2179 = vrot.slane %v2178, 4
        %v2180 = vadd.f32 %v2178, %v2179
        %v2181 = vrot.slane %v2180, 2
        %v2182 = vadd.f32 %v2180, %v2181
        %v2183 = vrot.slane %v2182, 1
        %v2184 = vadd.f32 %v2182, %v2183
        %2185 = vst.msk [vmem:[%s363 + $0x1] sm:$0x1] %vm1944, %v2184
        %v2186 = vadd.f32 %v1946, %v2157
        %v2188 = vrot.slane %v2186, 7
        %v2190 = vsel %vm369, 0.0, %v2188
        %v2191 = vrot.slane %v2186, 1
        %v2193 = vsel %vm684, %v2191, 0.0
        %2194 = vrot.lane.b32.xlu0 %v2186, 32
        %v2195 = vpop.permute.xlu0 %2194
        %2198 = vrot.lane.b32.xlu0 %v2193, 64
        %v2199 = vpop.permute.xlu0 %2198
        %v2201 = vsel %vm398, %v2190, %v2195
        %v2202 = vsel %vm519, %v2201, %v2199
        %v2203 = vpack.c.bf16 %v2202, %v2202
        %v2204 = vld [vmem:[%s1 + $0x1c8] sm:$0xf]
        %v2205 = vld [vmem:[%s1 + $0x1cc] sm:$0xf]
        %v2206 = vld [vmem:[%s1 + $0x1d0] sm:$0xf]
        %v2207 = vld [vmem:[%s1 + $0x1d4] sm:$0xf]
        %v2208 = vld [vmem:[%s1 + $0x1d8] sm:$0xf]
        %v2209 = vld [vmem:[%s1 + $0x1dc] sm:$0xf]
        %v2210 = vld [vmem:[%s1 + $0x1e0] sm:$0xf]
        %v2211 = vld [vmem:[%s1 + $0x1e4] sm:$0xf]
        %v2212 = vld [vmem:[%s1 + $0x1e8] sm:$0xf]
        %v2213 = vld [vmem:[%s1 + $0x1ec] sm:$0xf]
        %v2214 = vld [vmem:[%s1 + $0x1f0] sm:$0xf]
        %v2215 = vld [vmem:[%s1 + $0x1f4] sm:$0xf]
        %v2216 = vld [vmem:[%s2 + $0xc] sm:$0x1]
        %v2217 = vlaneseq
        %v2218 = vshrl.u32 %v2217, 7
        %v2219 = vsub.s32 0, %v2218
        %v2220 = vrot.slane %v2216, %v2219
        %v2233 = vunpack.c.l.b16 %v2204
        %v2234 = vunpack.c.l.b16 %v2205
        %v2235 = vunpack.c.l.b16 %v2206
        %v2236 = vunpack.c.l.b16 %v2207
        %v2237 = vunpack.c.l.b16 %v2208
        %v2238 = vunpack.c.l.b16 %v2209
        %v2239 = vunpack.c.l.b16 %v2210
        %v2240 = vunpack.c.l.b16 %v2211
        %v2241 = vunpack.c.l.b16 %v2212
        %v2242 = vunpack.c.l.b16 %v2213
        %v2243 = vunpack.c.l.b16 %v2214
        %v2244 = vunpack.c.l.b16 %v2215
        %v2245 = vpack.c.b16 %v2234, %v2233
        %v2246 = vpack.c.b16 %v2236, %v2235
        %v2247 = vpack.c.b16 %v2238, %v2237
        %v2248 = vpack.c.b16 %v2240, %v2239
        %v2249 = vpack.c.b16 %v2242, %v2241
        %v2250 = vpack.c.b16 %v2244, %v2243
        %v2258 = vsel %vm522, %v2203, 0
        %2260 = vmatprep.subr.bf16.mxu0 0
        %2261 = vmatpush1.bf16.msra.mxu0 %v2245
        %2262 = vmatprep.subr.bf16.mxu0 0
        %2263 = vmatpush1.bf16.msra.mxu0 %v2246
        %2264 = vmatprep.subr.bf16.mxu0 0
        %2265 = vmatpush1.bf16.msra.mxu0 %v2247
        %2266 = vmatprep.subr.bf16.mxu0 0
        %2267 = vmatpush1.bf16.msra.mxu0 %v2248
        %2268 = vmatprep.subr.bf16.mxu0 0
        %2269 = vmatpush1.bf16.msra.mxu0 %v2249
        %2270 = vmatprep.subr.bf16.mxu0 0
        %2271 = vmatpush1.bf16.msra.mxu0 %v2250
        %2272 = vmatprep.subr.bf16.mxu0 0
        %2273 = vmatpush1.bf16.msra.mxu0 0
        %2274 = vmatprep.subr.bf16.mxu0 0
        %2275 = vmatpush1.bf16.msra.mxu0 0
        %2276 = vmatprep.subr.bf16.mxu0 0
        %2277 = vmatpush1.bf16.msra.mxu0 0
        %2278 = vmatprep.subr.bf16.mxu0 0
        %2279 = vmatpush1.bf16.msra.mxu0 0
        %2280 = vmatprep.subr.bf16.mxu0 0
        %2281 = vmatpush1.bf16.msra.mxu0 0
        %2282 = vmatprep.subr.bf16.mxu0 0
        %2283 = vmatpush1.bf16.msra.mxu0 0
        %2284 = vmatprep.subr.bf16.mxu0 0
        %2285 = vmatpush1.bf16.msra.mxu0 0
        %2286 = vmatprep.subr.bf16.mxu0 0
        %2287 = vmatpush1.bf16.msra.mxu0 0
        %2288 = vmatprep.subr.bf16.mxu0 0
        %2289 = vmatpush1.bf16.msra.mxu0 0
        %2290 = vmatprep.subr.bf16.mxu0 0
        %2291 = vmatpush1.bf16.msra.mxu0 0
        %2292 = vmatprep.mubr.bf16.mxu0 0
        %2293 = vmatmul.mubr.bf16.gmra.mrb[0].mxu0 %v2258
        %v2294 = vpop.f32.mrb[0].mxu0
        %v2295 = vadd.f32 %v2220, %v2294
        %v2296 = vpop.f32.mrb[0].mxu0
        %v2297 = vpop.f32.mrb[0].mxu0
        %v2298 = vpop.f32.mrb[0].mxu0
        %2299 = vdwg.mxu0
        %v2300 = vmax.f32 %v2295, 0.0
        %v2301 = vmax.f32 %v2300, 0.0
        %v2303 = vrot.slane %v2301, 5
        %v2305 = vsel %vm684, 0.0, %v2303
        %v2306 = vrot.slane %v2301, 3
        %v2308 = vsel %vm369, %v2306, 0.0
        %2309 = vrot.lane.b32.xlu0 %v2301, 32
        %v2310 = vpop.permute.xlu0 %2309
        %2313 = vrot.lane.b32.xlu0 %v2308, 64
        %v2314 = vpop.permute.xlu0 %2313
        %v2316 = vsel %vm398, %v2305, %v2310
        %v2317 = vsel %vm519, %v2316, %v2314
        %v2318 = vpack.c.bf16 %v2317, %v2317
        %v2319 = vld [vmem:[%s1 + $0x1f8] sm:$0xf]
        %v2320 = vld [vmem:[%s1 + $0x1fc] sm:$0xf]
        %v2321 = vld [vmem:[%s1 + $0x200] sm:$0xf]
        %v2322 = vld [vmem:[%s1 + $0x204] sm:$0xf]
        %v2323 = vld [vmem:[%s1 + $0x208] sm:$0xf]
        %v2324 = vld [vmem:[%s1 + $0x20c] sm:$0xf]
        %v2325 = vld [vmem:[%s1 + $0x210] sm:$0xf]
        %v2326 = vld [vmem:[%s1 + $0x214] sm:$0xf]
        %v2327 = vld [vmem:[%s1 + $0x218] sm:$0xf]
        %v2328 = vld [vmem:[%s1 + $0x21c] sm:$0xf]
        %v2329 = vld [vmem:[%s1 + $0x220] sm:$0xf]
        %v2330 = vld [vmem:[%s1 + $0x224] sm:$0xf]
        %v2331 = vld [vmem:[%s2 + $0xd] sm:$0x1]
        %v2332 = vlaneseq
        %v2333 = vshrl.u32 %v2332, 7
        %v2334 = vsub.s32 0, %v2333
        %v2335 = vrot.slane %v2331, %v2334
        %v2348 = vunpack.c.l.b16 %v2319
        %v2349 = vunpack.c.l.b16 %v2320
        %v2350 = vunpack.c.l.b16 %v2321
        %v2351 = vunpack.c.l.b16 %v2322
        %v2352 = vunpack.c.l.b16 %v2323
        %v2353 = vunpack.c.l.b16 %v2324
        %v2354 = vunpack.c.l.b16 %v2325
        %v2355 = vunpack.c.l.b16 %v2326
        %v2356 = vunpack.c.l.b16 %v2327
        %v2357 = vunpack.c.l.b16 %v2328
        %v2358 = vunpack.c.l.b16 %v2329
        %v2359 = vunpack.c.l.b16 %v2330
        %v2360 = vpack.c.b16 %v2349, %v2348
        %v2361 = vpack.c.b16 %v2351, %v2350
        %v2362 = vpack.c.b16 %v2353, %v2352
        %v2363 = vpack.c.b16 %v2355, %v2354
        %v2364 = vpack.c.b16 %v2357, %v2356
        %v2365 = vpack.c.b16 %v2359, %v2358
        %v2373 = vsel %vm522, %v2318, 0
        %2375 = vmatprep.subr.bf16.mxu0 0
        %2376 = vmatpush1.bf16.msra.mxu0 %v2360
        %2377 = vmatprep.subr.bf16.mxu0 0
        %2378 = vmatpush1.bf16.msra.mxu0 %v2361
        %2379 = vmatprep.subr.bf16.mxu0 0
        %2380 = vmatpush1.bf16.msra.mxu0 %v2362
        %2381 = vmatprep.subr.bf16.mxu0 0
        %2382 = vmatpush1.bf16.msra.mxu0 %v2363
        %2383 = vmatprep.subr.bf16.mxu0 0
        %2384 = vmatpush1.bf16.msra.mxu0 %v2364
        %2385 = vmatprep.subr.bf16.mxu0 0
        %2386 = vmatpush1.bf16.msra.mxu0 %v2365
        %2387 = vmatprep.subr.bf16.mxu0 0
        %2388 = vmatpush1.bf16.msra.mxu0 0
        %2389 = vmatprep.subr.bf16.mxu0 0
        %2390 = vmatpush1.bf16.msra.mxu0 0
        %2391 = vmatprep.subr.bf16.mxu0 0
        %2392 = vmatpush1.bf16.msra.mxu0 0
        %2393 = vmatprep.subr.bf16.mxu0 0
        %2394 = vmatpush1.bf16.msra.mxu0 0
        %2395 = vmatprep.subr.bf16.mxu0 0
        %2396 = vmatpush1.bf16.msra.mxu0 0
        %2397 = vmatprep.subr.bf16.mxu0 0
        %2398 = vmatpush1.bf16.msra.mxu0 0
        %2399 = vmatprep.subr.bf16.mxu0 0
        %2400 = vmatpush1.bf16.msra.mxu0 0
        %2401 = vmatprep.subr.bf16.mxu0 0
        %2402 = vmatpush1.bf16.msra.mxu0 0
        %2403 = vmatprep.subr.bf16.mxu0 0
        %2404 = vmatpush1.bf16.msra.mxu0 0
        %2405 = vmatprep.subr.bf16.mxu0 0
        %2406 = vmatpush1.bf16.msra.mxu0 0
        %2407 = vmatprep.mubr.bf16.mxu0 0
        %2408 = vmatmul.mubr.bf16.gmra.mrb[0].mxu0 %v2373
        %v2409 = vpop.f32.mrb[0].mxu0
        %v2410 = vadd.f32 %v2335, %v2409
        %v2411 = vpop.f32.mrb[0].mxu0
        %v2412 = vpop.f32.mrb[0].mxu0
        %v2413 = vpop.f32.mrb[0].mxu0
        %2414 = vdwg.mxu0
        %v2415 = vmax.f32 %v2410, 0.0
        %v2416 = vpack.c.bf16 %v2415, %v2415
        %v2417 = vld [vmem:[%s1 + $0x228] sm:$0xf]
        %v2418 = vld [vmem:[%s1 + $0x22c] sm:$0xf]
        %v2419 = vld [vmem:[%s1 + $0x230] sm:$0xf]
        %v2420 = vld [vmem:[%s1 + $0x234] sm:$0xf]
        %v2421 = vld [vmem:[%s2 + $0xe] sm:$0x1]
        %v2422 = vlaneseq
        %v2423 = vshrl.u32 %v2422, 7
        %v2424 = vsub.s32 0, %v2423
        %v2425 = vrot.slane %v2421, %v2424
        %v2430 = vunpack.c.l.b16 %v2417
        %v2431 = vunpack.c.l.b16 %v2418
        %v2432 = vunpack.c.l.b16 %v2419
        %v2433 = vunpack.c.l.b16 %v2420
        %v2434 = vpack.c.b16 %v2431, %v2430
        %v2435 = vpack.c.b16 %v2433, %v2432
        %v2439 = vsel %vm398, %v2416, 0
        %2441 = vmatprep.subr.bf16.mxu0 0
        %2442 = vmatpush1.bf16.msra.mxu0 %v2434
        %2443 = vmatprep.subr.bf16.mxu0 0
        %2444 = vmatpush1.bf16.msra.mxu0 %v2435
        %2445 = vmatprep.subr.bf16.mxu0 0
        %2446 = vmatpush1.bf16.msra.mxu0 0
        %2447 = vmatprep.subr.bf16.mxu0 0
        %2448 = vmatpush1.bf16.msra.mxu0 0
        %2449 = vmatprep.subr.bf16.mxu0 0
        %2450 = vmatpush1.bf16.msra.mxu0 0
        %2451 = vmatprep.subr.bf16.mxu0 0
        %2452 = vmatpush1.bf16.msra.mxu0 0
        %2453 = vmatprep.subr.bf16.mxu0 0
        %2454 = vmatpush1.bf16.msra.mxu0 0
        %2455 = vmatprep.subr.bf16.mxu0 0
        %2456 = vmatpush1.bf16.msra.mxu0 0
        %2457 = vmatprep.subr.bf16.mxu0 0
        %2458 = vmatpush1.bf16.msra.mxu0 0
        %2459 = vmatprep.subr.bf16.mxu0 0
        %2460 = vmatpush1.bf16.msra.mxu0 0
        %2461 = vmatprep.subr.bf16.mxu0 0
        %2462 = vmatpush1.bf16.msra.mxu0 0
        %2463 = vmatprep.subr.bf16.mxu0 0
        %2464 = vmatpush1.bf16.msra.mxu0 0
        %2465 = vmatprep.subr.bf16.mxu0 0
        %2466 = vmatpush1.bf16.msra.mxu0 0
        %2467 = vmatprep.subr.bf16.mxu0 0
        %2468 = vmatpush1.bf16.msra.mxu0 0
        %2469 = vmatprep.subr.bf16.mxu0 0
        %2470 = vmatpush1.bf16.msra.mxu0 0
        %2471 = vmatprep.subr.bf16.mxu0 0
        %2472 = vmatpush1.bf16.msra.mxu0 0
        %2473 = vmatprep.mubr.bf16.mxu0 0
        %2474 = vmatmul.mubr.bf16.gmra.mrb[0].mxu0 %v2439
        %v2475 = vpop.f32.mrb[0].mxu0
        %v2476 = vadd.f32 %v2425, %v2475
        %v2477 = vpop.f32.mrb[0].mxu0
        %v2478 = vpop.f32.mrb[0].mxu0
        %v2479 = vpop.f32.mrb[0].mxu0
        %2480 = vdwg.mxu0
        %v2481 = vadd.f32 %v2476, %v2300
        %v2482 = vmax.f32 %v2481, 0.0
        %v2484 = vrot.slane %v2482, 7
        %v2486 = vsel %vm369, 0.0, %v2484
        %v2487 = vrot.slane %v2482, 1
        %v2489 = vsel %vm684, %v2487, 0.0
        %2490 = vrot.lane.b32.xlu0 %v2482, 32
        %v2491 = vpop.permute.xlu0 %2490
        %2494 = vrot.lane.b32.xlu0 %v2489, 64
        %v2495 = vpop.permute.xlu0 %2494
        %v2497 = vsel %vm398, %v2486, %v2491
        %v2498 = vsel %vm519, %v2497, %v2495
        %v2499 = vpack.c.bf16 %v2498, %v2498
        %v2500 = vld [vmem:[%s1 + $0x238] sm:$0xf]
        %v2501 = vld [vmem:[%s1 + $0x23c] sm:$0xf]
        %v2502 = vld [vmem:[%s1 + $0x240] sm:$0xf]
        %v2503 = vld [vmem:[%s1 + $0x244] sm:$0xf]
        %v2504 = vld [vmem:[%s1 + $0x248] sm:$0xf]
        %v2505 = vld [vmem:[%s1 + $0x24c] sm:$0xf]
        %v2506 = vld [vmem:[%s1 + $0x250] sm:$0xf]
        %v2507 = vld [vmem:[%s1 + $0x254] sm:$0xf]
        %v2508 = vld [vmem:[%s1 + $0x258] sm:$0xf]
        %v2509 = vld [vmem:[%s1 + $0x25c] sm:$0xf]
        %v2510 = vld [vmem:[%s1 + $0x260] sm:$0xf]
        %v2511 = vld [vmem:[%s1 + $0x264] sm:$0xf]
        %v2512 = vld [vmem:[%s2 + $0xf] sm:$0x1]
        %v2513 = vlaneseq
        %v2514 = vshrl.u32 %v2513, 7
        %v2515 = vsub.s32 0, %v2514
        %v2516 = vrot.slane %v2512, %v2515
        %v2529 = vunpack.c.l.b16 %v2500
        %v2530 = vunpack.c.l.b16 %v2501
        %v2531 = vunpack.c.l.b16 %v2502
        %v2532 = vunpack.c.l.b16 %v2503
        %v2533 = vunpack.c.l.b16 %v2504
        %v2534 = vunpack.c.l.b16 %v2505
        %v2535 = vunpack.c.l.b16 %v2506
        %v2536 = vunpack.c.l.b16 %v2507
        %v2537 = vunpack.c.l.b16 %v2508
        %v2538 = vunpack.c.l.b16 %v2509
        %v2539 = vunpack.c.l.b16 %v2510
        %v2540 = vunpack.c.l.b16 %v2511
        %v2541 = vpack.c.b16 %v2530, %v2529
        %v2542 = vpack.c.b16 %v2532, %v2531
        %v2543 = vpack.c.b16 %v2534, %v2533
        %v2544 = vpack.c.b16 %v2536, %v2535
        %v2545 = vpack.c.b16 %v2538, %v2537
        %v2546 = vpack.c.b16 %v2540, %v2539
        %v2554 = vsel %vm522, %v2499, 0
        %2556 = vmatprep.subr.bf16.mxu0 0
        %2557 = vmatpush1.bf16.msra.mxu0 %v2541
        %2558 = vmatprep.subr.bf16.mxu0 0
        %2559 = vmatpush1.bf16.msra.mxu0 %v2542
        %2560 = vmatprep.subr.bf16.mxu0 0
        %2561 = vmatpush1.bf16.msra.mxu0 %v2543
        %2562 = vmatprep.subr.bf16.mxu0 0
        %2563 = vmatpush1.bf16.msra.mxu0 %v2544
        %2564 = vmatprep.subr.bf16.mxu0 0
        %2565 = vmatpush1.bf16.msra.mxu0 %v2545
        %2566 = vmatprep.subr.bf16.mxu0 0
        %2567 = vmatpush1.bf16.msra.mxu0 %v2546
        %2568 = vmatprep.subr.bf16.mxu0 0
        %2569 = vmatpush1.bf16.msra.mxu0 0
        %2570 = vmatprep.subr.bf16.mxu0 0
        %2571 = vmatpush1.bf16.msra.mxu0 0
        %2572 = vmatprep.subr.bf16.mxu0 0
        %2573 = vmatpush1.bf16.msra.mxu0 0
        %2574 = vmatprep.subr.bf16.mxu0 0
        %2575 = vmatpush1.bf16.msra.mxu0 0
        %2576 = vmatprep.subr.bf16.mxu0 0
        %2577 = vmatpush1.bf16.msra.mxu0 0
        %2578 = vmatprep.subr.bf16.mxu0 0
        %2579 = vmatpush1.bf16.msra.mxu0 0
        %2580 = vmatprep.subr.bf16.mxu0 0
        %2581 = vmatpush1.bf16.msra.mxu0 0
        %2582 = vmatprep.subr.bf16.mxu0 0
        %2583 = vmatpush1.bf16.msra.mxu0 0
        %2584 = vmatprep.subr.bf16.mxu0 0
        %2585 = vmatpush1.bf16.msra.mxu0 0
        %2586 = vmatprep.subr.bf16.mxu0 0
        %2587 = vmatpush1.bf16.msra.mxu0 0
        %2588 = vmatprep.mubr.bf16.mxu0 0
        %2589 = vmatmul.mubr.bf16.gmra.mrb[0].mxu0 %v2554
        %v2590 = vpop.f32.mrb[0].mxu0
        %v2591 = vadd.f32 %v2516, %v2590
        %v2592 = vpop.f32.mrb[0].mxu0
        %v2593 = vpop.f32.mrb[0].mxu0
        %v2594 = vpop.f32.mrb[0].mxu0
        %2595 = vdwg.mxu0
        %v2596 = vmax.f32 %v2591, 0.0
        %v2597 = vpack.c.bf16 %v2596, %v2596
        %v2598 = vld [vmem:[%s1 + $0x268] sm:$0xf]
        %v2599 = vld [vmem:[%s1 + $0x26c] sm:$0xf]
        %v2600 = vld [vmem:[%s1 + $0x270] sm:$0xf]
        %v2601 = vld [vmem:[%s1 + $0x274] sm:$0xf]
        %v2602 = vld [vmem:[%s2 + $0x10] sm:$0x1]
        %v2603 = vlaneseq
        %v2604 = vshrl.u32 %v2603, 7
        %v2605 = vsub.s32 0, %v2604
        %v2606 = vrot.slane %v2602, %v2605
        %v2611 = vunpack.c.l.b16 %v2598
        %v2612 = vunpack.c.l.b16 %v2599
        %v2613 = vunpack.c.l.b16 %v2600
        %v2614 = vunpack.c.l.b16 %v2601
        %v2615 = vpack.c.b16 %v2612, %v2611
        %v2616 = vpack.c.b16 %v2614, %v2613
        %v2620 = vsel %vm398, %v2597, 0
        %2622 = vmatprep.subr.bf16.mxu0 0
        %2623 = vmatpush1.bf16.msra.mxu0 %v2615
        %2624 = vmatprep.subr.bf16.mxu0 0
        %2625 = vmatpush1.bf16.msra.mxu0 %v2616
        %2626 = vmatprep.subr.bf16.mxu0 0
        %2627 = vmatpush1.bf16.msra.mxu0 0
        %2628 = vmatprep.subr.bf16.mxu0 0
        %2629 = vmatpush1.bf16.msra.mxu0 0
        %2630 = vmatprep.subr.bf16.mxu0 0
        %2631 = vmatpush1.bf16.msra.mxu0 0
        %2632 = vmatprep.subr.bf16.mxu0 0
        %2633 = vmatpush1.bf16.msra.mxu0 0
        %2634 = vmatprep.subr.bf16.mxu0 0
        %2635 = vmatpush1.bf16.msra.mxu0 0
        %2636 = vmatprep.subr.bf16.mxu0 0
        %2637 = vmatpush1.bf16.msra.mxu0 0
        %2638 = vmatprep.subr.bf16.mxu0 0
        %2639 = vmatpush1.bf16.msra.mxu0 0
        %2640 = vmatprep.subr.bf16.mxu0 0
        %2641 = vmatpush1.bf16.msra.mxu0 0
        %2642 = vmatprep.subr.bf16.mxu0 0
        %2643 = vmatpush1.bf16.msra.mxu0 0
        %2644 = vmatprep.subr.bf16.mxu0 0
        %2645 = vmatpush1.bf16.msra.mxu0 0
        %2646 = vmatprep.subr.bf16.mxu0 0
        %2647 = vmatpush1.bf16.msra.mxu0 0
        %2648 = vmatprep.subr.bf16.mxu0 0
        %2649 = vmatpush1.bf16.msra.mxu0 0
        %2650 = vmatprep.subr.bf16.mxu0 0
        %2651 = vmatpush1.bf16.msra.mxu0 0
        %2652 = vmatprep.subr.bf16.mxu0 0
        %2653 = vmatpush1.bf16.msra.mxu0 0
        %2654 = vmatprep.mubr.bf16.mxu0 0
        %2655 = vmatmul.mubr.bf16.gmra.mrb[0].mxu0 %v2620
        %v2656 = vpop.f32.mrb[0].mxu0
        %v2657 = vadd.f32 %v2606, %v2656
        %v2658 = vpop.f32.mrb[0].mxu0
        %v2659 = vpop.f32.mrb[0].mxu0
        %v2660 = vpop.f32.mrb[0].mxu0
        %2661 = vdwg.mxu0
        %v2662 = vadd.f32 %v2657, %v2481
        %s2663 = scalar_lea.vmem %s3, 16
        %v2664 = vld [vmem:[%s2663] sm:$0xf]
        %v2665 = vpack.c.bf16 %v2662, %v2662
        %vm2666 = vcmask 31744
        %v2668 = vsel %vm2666, %v2664, 0
        %vm2670 = vcmask 1041408
        %v2672 = vsel %vm2670, %v2665, 0
        %2674 = vmatprep.subr.bf16.mxu0 0
        %2675 = vmatpush1.bf16.msra.mxu0 %v2672
        %2676 = vmatprep.subr.bf16.mxu0 0
        %2677 = vmatpush1.bf16.msra.mxu0 0
        %2678 = vmatprep.subr.bf16.mxu0 0
        %2679 = vmatpush1.bf16.msra.mxu0 0
        %2680 = vmatprep.subr.bf16.mxu0 0
        %2681 = vmatpush1.bf16.msra.mxu0 0
        %2682 = vmatprep.subr.bf16.mxu0 0
        %2683 = vmatpush1.bf16.msra.mxu0 0
        %2684 = vmatprep.subr.bf16.mxu0 0
        %2685 = vmatpush1.bf16.msra.mxu0 0
        %2686 = vmatprep.subr.bf16.mxu0 0
        %2687 = vmatpush1.bf16.msra.mxu0 0
        %2688 = vmatprep.subr.bf16.mxu0 0
        %2689 = vmatpush1.bf16.msra.mxu0 0
        %2690 = vmatprep.subr.bf16.mxu0 0
        %2691 = vmatpush1.bf16.msra.mxu0 0
        %2692 = vmatprep.subr.bf16.mxu0 0
        %2693 = vmatpush1.bf16.msra.mxu0 0
        %2694 = vmatprep.subr.bf16.mxu0 0
        %2695 = vmatpush1.bf16.msra.mxu0 0
        %2696 = vmatprep.subr.bf16.mxu0 0
        %2697 = vmatpush1.bf16.msra.mxu0 0
        %2698 = vmatprep.subr.bf16.mxu0 0
        %2699 = vmatpush1.bf16.msra.mxu0 0
        %2700 = vmatprep.subr.bf16.mxu0 0
        %2701 = vmatpush1.bf16.msra.mxu0 0
        %2702 = vmatprep.subr.bf16.mxu0 0
        %2703 = vmatpush1.bf16.msra.mxu0 0
        %2704 = vmatprep.subr.bf16.mxu0 0
        %2705 = vmatpush1.bf16.msra.mxu0 0
        %2706 = vmatprep.mubr.bf16.mxu0 0
        %2707 = vmatmul.mubr.bf16.gmra.mrb[0].mxu0 %v2668
        %v2708 = vpop.f32.mrb[0].mxu0
        %v2709 = vadd.f32 0.0, %v2708
        %v2710 = vpop.f32.mrb[0].mxu0
        %v2711 = vpop.f32.mrb[0].mxu0
        %v2712 = vpop.f32.mrb[0].mxu0
        %2713 = vdwg.mxu0
        %v2715 = vrot.slane %v2709, 7
        %v2717 = vsel %vm369, 0.0, %v2715
        %v2718 = vrot.slane %v2709, 1
        %v2720 = vsel %vm376, %v2718, 0.0
        %2721 = vrot.lane.b32.xlu0 %v2709, 32
        %v2722 = vpop.permute.xlu0 %2721
        %2725 = vrot.lane.b32.xlu0 %v2720, 64
        %v2726 = vpop.permute.xlu0 %2725
        %v2728 = vsel %vm398, %v2717, %v2722
        %v2729 = vsel %vm519, %v2728, %v2726
        %v2730 = vpack.c.bf16 %v2729, %v2729
        %v2731 = vld [vmem:[%s1 + $0x278] sm:$0xf]
        %v2732 = vld [vmem:[%s1 + $0x27c] sm:$0xf]
        %v2733 = vld [vmem:[%s1 + $0x280] sm:$0xf]
        %v2734 = vld [vmem:[%s1 + $0x284] sm:$0xf]
        %v2735 = vld [vmem:[%s1 + $0x288] sm:$0xf]
        %v2736 = vld [vmem:[%s1 + $0x28c] sm:$0xf]
        %v2737 = vld [vmem:[%s1 + $0x290] sm:$0xf]
        %v2738 = vld [vmem:[%s1 + $0x294] sm:$0xf]
        %v2739 = vld [vmem:[%s1 + $0x298] sm:$0xf]
        %v2740 = vld [vmem:[%s1 + $0x29c] sm:$0xf]
        %v2741 = vld [vmem:[%s1 + $0x2a0] sm:$0xf]
        %v2742 = vld [vmem:[%s1 + $0x2a4] sm:$0xf]
        %v2743 = vld [vmem:[%s2 + $0x11] sm:$0x1]
        %v2744 = vlaneseq
        %v2745 = vshrl.u32 %v2744, 7
        %v2746 = vsub.s32 0, %v2745
        %v2747 = vrot.slane %v2743, %v2746
        %v2760 = vunpack.c.l.b16 %v2731
        %v2761 = vunpack.c.l.b16 %v2732
        %v2762 = vunpack.c.l.b16 %v2733
        %v2763 = vunpack.c.l.b16 %v2734
        %v2764 = vunpack.c.l.b16 %v2735
        %v2765 = vunpack.c.l.b16 %v2736
        %v2766 = vunpack.c.l.b16 %v2737
        %v2767 = vunpack.c.l.b16 %v2738
        %v2768 = vunpack.c.l.b16 %v2739
        %v2769 = vunpack.c.l.b16 %v2740
        %v2770 = vunpack.c.l.b16 %v2741
        %v2771 = vunpack.c.l.b16 %v2742
        %v2772 = vpack.c.b16 %v2761, %v2760
        %v2773 = vpack.c.b16 %v2763, %v2762
        %v2774 = vpack.c.b16 %v2765, %v2764
        %v2775 = vpack.c.b16 %v2767, %v2766
        %v2776 = vpack.c.b16 %v2769, %v2768
        %v2777 = vpack.c.b16 %v2771, %v2770
        %v2785 = vsel %vm522, %v2730, 0
        %2787 = vmatprep.subr.bf16.mxu0 0
        %2788 = vmatpush1.bf16.msra.mxu0 %v2772
        %2789 = vmatprep.subr.bf16.mxu0 0
        %2790 = vmatpush1.bf16.msra.mxu0 %v2773
        %2791 = vmatprep.subr.bf16.mxu0 0
        %2792 = vmatpush1.bf16.msra.mxu0 %v2774
        %2793 = vmatprep.subr.bf16.mxu0 0
        %2794 = vmatpush1.bf16.msra.mxu0 %v2775
        %2795 = vmatprep.subr.bf16.mxu0 0
        %2796 = vmatpush1.bf16.msra.mxu0 %v2776
        %2797 = vmatprep.subr.bf16.mxu0 0
        %2798 = vmatpush1.bf16.msra.mxu0 %v2777
        %2799 = vmatprep.subr.bf16.mxu0 0
        %2800 = vmatpush1.bf16.msra.mxu0 0
        %2801 = vmatprep.subr.bf16.mxu0 0
        %2802 = vmatpush1.bf16.msra.mxu0 0
        %2803 = vmatprep.subr.bf16.mxu0 0
        %2804 = vmatpush1.bf16.msra.mxu0 0
        %2805 = vmatprep.subr.bf16.mxu0 0
        %2806 = vmatpush1.bf16.msra.mxu0 0
        %2807 = vmatprep.subr.bf16.mxu0 0
        %2808 = vmatpush1.bf16.msra.mxu0 0
        %2809 = vmatprep.subr.bf16.mxu0 0
        %2810 = vmatpush1.bf16.msra.mxu0 0
        %2811 = vmatprep.subr.bf16.mxu0 0
        %2812 = vmatpush1.bf16.msra.mxu0 0
        %2813 = vmatprep.subr.bf16.mxu0 0
        %2814 = vmatpush1.bf16.msra.mxu0 0
        %2815 = vmatprep.subr.bf16.mxu0 0
        %2816 = vmatpush1.bf16.msra.mxu0 0
        %2817 = vmatprep.subr.bf16.mxu0 0
        %2818 = vmatpush1.bf16.msra.mxu0 0
        %2819 = vmatprep.mubr.bf16.mxu0 0
        %2820 = vmatmul.mubr.bf16.gmra.mrb[0].mxu0 %v2785
        %v2821 = vpop.f32.mrb[0].mxu0
        %v2822 = vadd.f32 %v2747, %v2821
        %v2823 = vpop.f32.mrb[0].mxu0
        %v2824 = vpop.f32.mrb[0].mxu0
        %v2825 = vpop.f32.mrb[0].mxu0
        %2826 = vdwg.mxu0
        %v2827 = vmax.f32 %v2822, 0.0
        %v2829 = vrot.slane %v2827, 5
        %v2831 = vsel %vm684, 0.0, %v2829
        %v2832 = vrot.slane %v2827, 3
        %v2834 = vsel %vm688, %v2832, 0.0
        %2835 = vrot.lane.b32.xlu0 %v2827, 32
        %v2836 = vpop.permute.xlu0 %2835
        %2839 = vrot.lane.b32.xlu0 %v2834, 64
        %v2840 = vpop.permute.xlu0 %2839
        %v2842 = vsel %vm398, %v2831, %v2836
        %v2843 = vsel %vm519, %v2842, %v2840
        %v2844 = vpack.c.bf16 %v2843, %v2843
        %v2845 = vld [vmem:[%s1 + $0x2a8] sm:$0xf]
        %v2846 = vld [vmem:[%s1 + $0x2ac] sm:$0xf]
        %v2847 = vld [vmem:[%s1 + $0x2b0] sm:$0xf]
        %v2848 = vld [vmem:[%s1 + $0x2b4] sm:$0xf]
        %v2849 = vld [vmem:[%s1 + $0x2b8] sm:$0xf]
        %v2850 = vld [vmem:[%s1 + $0x2bc] sm:$0xf]
        %v2851 = vld [vmem:[%s1 + $0x2c0] sm:$0xf]
        %v2852 = vld [vmem:[%s1 + $0x2c4] sm:$0xf]
        %v2853 = vld [vmem:[%s1 + $0x2c8] sm:$0xf]
        %v2854 = vld [vmem:[%s1 + $0x2cc] sm:$0xf]
        %v2855 = vld [vmem:[%s1 + $0x2d0] sm:$0xf]
        %v2856 = vld [vmem:[%s1 + $0x2d4] sm:$0xf]
        %v2857 = vld [vmem:[%s2 + $0x12] sm:$0x1]
        %v2858 = vlaneseq
        %v2859 = vshrl.u32 %v2858, 7
        %v2860 = vsub.s32 0, %v2859
        %v2861 = vrot.slane %v2857, %v2860
        %v2874 = vunpack.c.l.b16 %v2845
        %v2875 = vunpack.c.l.b16 %v2846
        %v2876 = vunpack.c.l.b16 %v2847
        %v2877 = vunpack.c.l.b16 %v2848
        %v2878 = vunpack.c.l.b16 %v2849
        %v2879 = vunpack.c.l.b16 %v2850
        %v2880 = vunpack.c.l.b16 %v2851
        %v2881 = vunpack.c.l.b16 %v2852
        %v2882 = vunpack.c.l.b16 %v2853
        %v2883 = vunpack.c.l.b16 %v2854
        %v2884 = vunpack.c.l.b16 %v2855
        %v2885 = vunpack.c.l.b16 %v2856
        %v2886 = vpack.c.b16 %v2875, %v2874
        %v2887 = vpack.c.b16 %v2877, %v2876
        %v2888 = vpack.c.b16 %v2879, %v2878
        %v2889 = vpack.c.b16 %v2881, %v2880
        %v2890 = vpack.c.b16 %v2883, %v2882
        %v2891 = vpack.c.b16 %v2885, %v2884
        %v2899 = vsel %vm522, %v2844, 0
        %2901 = vmatprep.subr.bf16.mxu0 0
        %2902 = vmatpush1.bf16.msra.mxu0 %v2886
        %2903 = vmatprep.subr.bf16.mxu0 0
        %2904 = vmatpush1.bf16.msra.mxu0 %v2887
        %2905 = vmatprep.subr.bf16.mxu0 0
        %2906 = vmatpush1.bf16.msra.mxu0 %v2888
        %2907 = vmatprep.subr.bf16.mxu0 0
        %2908 = vmatpush1.bf16.msra.mxu0 %v2889
        %2909 = vmatprep.subr.bf16.mxu0 0
        %2910 = vmatpush1.bf16.msra.mxu0 %v2890
        %2911 = vmatprep.subr.bf16.mxu0 0
        %2912 = vmatpush1.bf16.msra.mxu0 %v2891
        %2913 = vmatprep.subr.bf16.mxu0 0
        %2914 = vmatpush1.bf16.msra.mxu0 0
        %2915 = vmatprep.subr.bf16.mxu0 0
        %2916 = vmatpush1.bf16.msra.mxu0 0
        %2917 = vmatprep.subr.bf16.mxu0 0
        %2918 = vmatpush1.bf16.msra.mxu0 0
        %2919 = vmatprep.subr.bf16.mxu0 0
        %2920 = vmatpush1.bf16.msra.mxu0 0
        %2921 = vmatprep.subr.bf16.mxu0 0
        %2922 = vmatpush1.bf16.msra.mxu0 0
        %2923 = vmatprep.subr.bf16.mxu0 0
        %2924 = vmatpush1.bf16.msra.mxu0 0
        %2925 = vmatprep.subr.bf16.mxu0 0
        %2926 = vmatpush1.bf16.msra.mxu0 0
        %2927 = vmatprep.subr.bf16.mxu0 0
        %2928 = vmatpush1.bf16.msra.mxu0 0
        %2929 = vmatprep.subr.bf16.mxu0 0
        %2930 = vmatpush1.bf16.msra.mxu0 0
        %2931 = vmatprep.subr.bf16.mxu0 0
        %2932 = vmatpush1.bf16.msra.mxu0 0
        %2933 = vmatprep.mubr.bf16.mxu0 0
        %2934 = vmatmul.mubr.bf16.gmra.mrb[0].mxu0 %v2899
        %v2935 = vpop.f32.mrb[0].mxu0
        %v2936 = vadd.f32 %v2861, %v2935
        %v2937 = vpop.f32.mrb[0].mxu0
        %v2938 = vpop.f32.mrb[0].mxu0
        %v2939 = vpop.f32.mrb[0].mxu0
        %2940 = vdwg.mxu0
        %v2941 = vmax.f32 %v2936, 0.0
        %v2942 = vpack.c.bf16 %v2941, %v2941
        %v2943 = vld [vmem:[%s1 + $0x2d8] sm:$0xf]
        %v2944 = vld [vmem:[%s1 + $0x2dc] sm:$0xf]
        %v2945 = vld [vmem:[%s1 + $0x2e0] sm:$0xf]
        %v2946 = vld [vmem:[%s1 + $0x2e4] sm:$0xf]
        %v2947 = vld [vmem:[%s2 + $0x13] sm:$0x1]
        %v2948 = vlaneseq
        %v2949 = vshrl.u32 %v2948, 7
        %v2950 = vsub.s32 0, %v2949
        %v2951 = vrot.slane %v2947, %v2950
        %v2956 = vunpack.c.l.b16 %v2943
        %v2957 = vunpack.c.l.b16 %v2944
        %v2958 = vunpack.c.l.b16 %v2945
        %v2959 = vunpack.c.l.b16 %v2946
        %v2960 = vpack.c.b16 %v2957, %v2956
        %v2961 = vpack.c.b16 %v2959, %v2958
        %v2965 = vsel %vm398, %v2942, 0
        %2967 = vmatprep.subr.bf16.mxu0 0
        %2968 = vmatpush1.bf16.msra.mxu0 %v2960
        %2969 = vmatprep.subr.bf16.mxu0 0
        %2970 = vmatpush1.bf16.msra.mxu0 %v2961
        %2971 = vmatprep.subr.bf16.mxu0 0
        %2972 = vmatpush1.bf16.msra.mxu0 0
        %2973 = vmatprep.subr.bf16.mxu0 0
        %2974 = vmatpush1.bf16.msra.mxu0 0
        %2975 = vmatprep.subr.bf16.mxu0 0
        %2976 = vmatpush1.bf16.msra.mxu0 0
        %2977 = vmatprep.subr.bf16.mxu0 0
        %2978 = vmatpush1.bf16.msra.mxu0 0
        %2979 = vmatprep.subr.bf16.mxu0 0
        %2980 = vmatpush1.bf16.msra.mxu0 0
        %2981 = vmatprep.subr.bf16.mxu0 0
        %2982 = vmatpush1.bf16.msra.mxu0 0
        %2983 = vmatprep.subr.bf16.mxu0 0
        %2984 = vmatpush1.bf16.msra.mxu0 0
        %2985 = vmatprep.subr.bf16.mxu0 0
        %2986 = vmatpush1.bf16.msra.mxu0 0
        %2987 = vmatprep.subr.bf16.mxu0 0
        %2988 = vmatpush1.bf16.msra.mxu0 0
        %2989 = vmatprep.subr.bf16.mxu0 0
        %2990 = vmatpush1.bf16.msra.mxu0 0
        %2991 = vmatprep.subr.bf16.mxu0 0
        %2992 = vmatpush1.bf16.msra.mxu0 0
        %2993 = vmatprep.subr.bf16.mxu0 0
        %2994 = vmatpush1.bf16.msra.mxu0 0
        %2995 = vmatprep.subr.bf16.mxu0 0
        %2996 = vmatpush1.bf16.msra.mxu0 0
        %2997 = vmatprep.subr.bf16.mxu0 0
        %2998 = vmatpush1.bf16.msra.mxu0 0
        %2999 = vmatprep.mubr.bf16.mxu0 0
        %3000 = vmatmul.mubr.bf16.gmra.mrb[0].mxu0 %v2965
        %v3001 = vpop.f32.mrb[0].mxu0
        %v3002 = vadd.f32 %v2951, %v3001
        %v3003 = vpop.f32.mrb[0].mxu0
        %v3004 = vpop.f32.mrb[0].mxu0
        %v3005 = vpop.f32.mrb[0].mxu0
        %3006 = vdwg.mxu0
        %v3007 = vadd.f32 %v3002, %v2822
        %v3008 = vmax.f32 %v3007, 0.0
        %v3010 = vrot.slane %v3008, 7
        %v3012 = vsel %vm369, 0.0, %v3010
        %v3013 = vrot.slane %v3008, 1
        %v3015 = vsel %vm376, %v3013, 0.0
        %3016 = vrot.lane.b32.xlu0 %v3008, 32
        %v3017 = vpop.permute.xlu0 %3016
        %3020 = vrot.lane.b32.xlu0 %v3015, 64
        %v3021 = vpop.permute.xlu0 %3020
        %v3023 = vsel %vm398, %v3012, %v3017
        %v3024 = vsel %vm519, %v3023, %v3021
        %v3025 = vpack.c.bf16 %v3024, %v3024
        %v3026 = vld [vmem:[%s1 + $0x2e8] sm:$0xf]
        %v3027 = vld [vmem:[%s1 + $0x2ec] sm:$0xf]
        %v3028 = vld [vmem:[%s1 + $0x2f0] sm:$0xf]
        %v3029 = vld [vmem:[%s1 + $0x2f4] sm:$0xf]
        %v3030 = vld [vmem:[%s1 + $0x2f8] sm:$0xf]
        %v3031 = vld [vmem:[%s1 + $0x2fc] sm:$0xf]
        %v3032 = vld [vmem:[%s1 + $0x300] sm:$0xf]
        %v3033 = vld [vmem:[%s1 + $0x304] sm:$0xf]
        %v3034 = vld [vmem:[%s1 + $0x308] sm:$0xf]
        %v3035 = vld [vmem:[%s1 + $0x30c] sm:$0xf]
        %v3036 = vld [vmem:[%s1 + $0x310] sm:$0xf]
        %v3037 = vld [vmem:[%s1 + $0x314] sm:$0xf]
        %v3038 = vld [vmem:[%s2 + $0x14] sm:$0x1]
        %v3039 = vlaneseq
        %v3040 = vshrl.u32 %v3039, 7
        %v3041 = vsub.s32 0, %v3040
        %v3042 = vrot.slane %v3038, %v3041
        %v3055 = vunpack.c.l.b16 %v3026
        %v3056 = vunpack.c.l.b16 %v3027
        %v3057 = vunpack.c.l.b16 %v3028
        %v3058 = vunpack.c.l.b16 %v3029
        %v3059 = vunpack.c.l.b16 %v3030
        %v3060 = vunpack.c.l.b16 %v3031
        %v3061 = vunpack.c.l.b16 %v3032
        %v3062 = vunpack.c.l.b16 %v3033
        %v3063 = vunpack.c.l.b16 %v3034
        %v3064 = vunpack.c.l.b16 %v3035
        %v3065 = vunpack.c.l.b16 %v3036
        %v3066 = vunpack.c.l.b16 %v3037
        %v3067 = vpack.c.b16 %v3056, %v3055
        %v3068 = vpack.c.b16 %v3058, %v3057
        %v3069 = vpack.c.b16 %v3060, %v3059
        %v3070 = vpack.c.b16 %v3062, %v3061
        %v3071 = vpack.c.b16 %v3064, %v3063
        %v3072 = vpack.c.b16 %v3066, %v3065
        %v3080 = vsel %vm522, %v3025, 0
        %3082 = vmatprep.subr.bf16.mxu0 0
        %3083 = vmatpush1.bf16.msra.mxu0 %v3067
        %3084 = vmatprep.subr.bf16.mxu0 0
        %3085 = vmatpush1.bf16.msra.mxu0 %v3068
        %3086 = vmatprep.subr.bf16.mxu0 0
        %3087 = vmatpush1.bf16.msra.mxu0 %v3069
        %3088 = vmatprep.subr.bf16.mxu0 0
        %3089 = vmatpush1.bf16.msra.mxu0 %v3070
        %3090 = vmatprep.subr.bf16.mxu0 0
        %3091 = vmatpush1.bf16.msra.mxu0 %v3071
        %3092 = vmatprep.subr.bf16.mxu0 0
        %3093 = vmatpush1.bf16.msra.mxu0 %v3072
        %3094 = vmatprep.subr.bf16.mxu0 0
        %3095 = vmatpush1.bf16.msra.mxu0 0
        %3096 = vmatprep.subr.bf16.mxu0 0
        %3097 = vmatpush1.bf16.msra.mxu0 0
        %3098 = vmatprep.subr.bf16.mxu0 0
        %3099 = vmatpush1.bf16.msra.mxu0 0
        %3100 = vmatprep.subr.bf16.mxu0 0
        %3101 = vmatpush1.bf16.msra.mxu0 0
        %3102 = vmatprep.subr.bf16.mxu0 0
        %3103 = vmatpush1.bf16.msra.mxu0 0
        %3104 = vmatprep.subr.bf16.mxu0 0
        %3105 = vmatpush1.bf16.msra.mxu0 0
        %3106 = vmatprep.subr.bf16.mxu0 0
        %3107 = vmatpush1.bf16.msra.mxu0 0
        %3108 = vmatprep.subr.bf16.mxu0 0
        %3109 = vmatpush1.bf16.msra.mxu0 0
        %3110 = vmatprep.subr.bf16.mxu0 0
        %3111 = vmatpush1.bf16.msra.mxu0 0
        %3112 = vmatprep.subr.bf16.mxu0 0
        %3113 = vmatpush1.bf16.msra.mxu0 0
        %3114 = vmatprep.mubr.bf16.mxu0 0
        %3115 = vmatmul.mubr.bf16.gmra.mrb[0].mxu0 %v3080
        %v3116 = vpop.f32.mrb[0].mxu0
        %v3117 = vadd.f32 %v3042, %v3116
        %v3118 = vpop.f32.mrb[0].mxu0
        %v3119 = vpop.f32.mrb[0].mxu0
        %v3120 = vpop.f32.mrb[0].mxu0
        %3121 = vdwg.mxu0
        %v3122 = vmax.f32 %v3117, 0.0
        %v3123 = vpack.c.bf16 %v3122, %v3122
        %v3124 = vld [vmem:[%s1 + $0x318] sm:$0xf]
        %v3125 = vld [vmem:[%s1 + $0x31c] sm:$0xf]
        %v3126 = vld [vmem:[%s1 + $0x320] sm:$0xf]
        %v3127 = vld [vmem:[%s1 + $0x324] sm:$0xf]
        %v3128 = vld [vmem:[%s2 + $0x15] sm:$0x1]
        %v3129 = vlaneseq
        %v3130 = vshrl.u32 %v3129, 7
        %v3131 = vsub.s32 0, %v3130
        %v3132 = vrot.slane %v3128, %v3131
        %v3137 = vunpack.c.l.b16 %v3124
        %v3138 = vunpack.c.l.b16 %v3125
        %v3139 = vunpack.c.l.b16 %v3126
        %v3140 = vunpack.c.l.b16 %v3127
        %v3141 = vpack.c.b16 %v3138, %v3137
        %v3142 = vpack.c.b16 %v3140, %v3139
        %v3146 = vsel %vm398, %v3123, 0
        %3148 = vmatprep.subr.bf16.mxu0 0
        %3149 = vmatpush1.bf16.msra.mxu0 %v3141
        %3150 = vmatprep.subr.bf16.mxu0 0
        %3151 = vmatpush1.bf16.msra.mxu0 %v3142
        %3152 = vmatprep.subr.bf16.mxu0 0
        %3153 = vmatpush1.bf16.msra.mxu0 0
        %3154 = vmatprep.subr.bf16.mxu0 0
        %3155 = vmatpush1.bf16.msra.mxu0 0
        %3156 = vmatprep.subr.bf16.mxu0 0
        %3157 = vmatpush1.bf16.msra.mxu0 0
        %3158 = vmatprep.subr.bf16.mxu0 0
        %3159 = vmatpush1.bf16.msra.mxu0 0
        %3160 = vmatprep.subr.bf16.mxu0 0
        %3161 = vmatpush1.bf16.msra.mxu0 0
        %3162 = vmatprep.subr.bf16.mxu0 0
        %3163 = vmatpush1.bf16.msra.mxu0 0
        %3164 = vmatprep.subr.bf16.mxu0 0
        %3165 = vmatpush1.bf16.msra.mxu0 0
        %3166 = vmatprep.subr.bf16.mxu0 0
        %3167 = vmatpush1.bf16.msra.mxu0 0
        %3168 = vmatprep.subr.bf16.mxu0 0
        %3169 = vmatpush1.bf16.msra.mxu0 0
        %3170 = vmatprep.subr.bf16.mxu0 0
        %3171 = vmatpush1.bf16.msra.mxu0 0
        %3172 = vmatprep.subr.bf16.mxu0 0
        %3173 = vmatpush1.bf16.msra.mxu0 0
        %3174 = vmatprep.subr.bf16.mxu0 0
        %3175 = vmatpush1.bf16.msra.mxu0 0
        %3176 = vmatprep.subr.bf16.mxu0 0
        %3177 = vmatpush1.bf16.msra.mxu0 0
        %3178 = vmatprep.subr.bf16.mxu0 0
        %3179 = vmatpush1.bf16.msra.mxu0 0
        %3180 = vmatprep.mubr.bf16.mxu0 0
        %3181 = vmatmul.mubr.bf16.gmra.mrb[0].mxu0 %v3146
        %v3182 = vpop.f32.mrb[0].mxu0
        %v3183 = vadd.f32 %v3132, %v3182
        %v3184 = vpop.f32.mrb[0].mxu0
        %v3185 = vpop.f32.mrb[0].mxu0
        %v3186 = vpop.f32.mrb[0].mxu0
        %3187 = vdwg.mxu0
        %v3188 = vadd.f32 %v3183, %v3007
        %s3189 = scalar_lea.vmem %s3, 24
        %v3190 = vld [vmem:[%s3189] sm:$0xf]
        %v3191 = vld [vmem:[%s3189 + $0x4] sm:$0xf]
        %v3192 = vpack.c.bf16 %v3188, %v3188
        %v3195 = vunpack.c.l.b16 %v3190
        %v3196 = vunpack.c.l.b16 %v3191
        %v3197 = vpack.c.b16 %v3196, %v3195
        %v3199 = vsel %vm1071, %v3197, 0
        %v3202 = vsel %vm1075, %v3192, 0
        %3204 = vmatprep.subr.bf16.mxu0 0
        %3205 = vmatpush1.bf16.msra.mxu0 %v3202
        %3206 = vmatprep.subr.bf16.mxu0 0
        %3207 = vmatpush1.bf16.msra.mxu0 0
        %3208 = vmatprep.subr.bf16.mxu0 0
        %3209 = vmatpush1.bf16.msra.mxu0 0
        %3210 = vmatprep.subr.bf16.mxu0 0
        %3211 = vmatpush1.bf16.msra.mxu0 0
        %3212 = vmatprep.subr.bf16.mxu0 0
        %3213 = vmatpush1.bf16.msra.mxu0 0
        %3214 = vmatprep.subr.bf16.mxu0 0
        %3215 = vmatpush1.bf16.msra.mxu0 0
        %3216 = vmatprep.subr.bf16.mxu0 0
        %3217 = vmatpush1.bf16.msra.mxu0 0
        %3218 = vmatprep.subr.bf16.mxu0 0
        %3219 = vmatpush1.bf16.msra.mxu0 0
        %3220 = vmatprep.subr.bf16.mxu0 0
        %3221 = vmatpush1.bf16.msra.mxu0 0
        %3222 = vmatprep.subr.bf16.mxu0 0
        %3223 = vmatpush1.bf16.msra.mxu0 0
        %3224 = vmatprep.subr.bf16.mxu0 0
        %3225 = vmatpush1.bf16.msra.mxu0 0
        %3226 = vmatprep.subr.bf16.mxu0 0
        %3227 = vmatpush1.bf16.msra.mxu0 0
        %3228 = vmatprep.subr.bf16.mxu0 0
        %3229 = vmatpush1.bf16.msra.mxu0 0
        %3230 = vmatprep.subr.bf16.mxu0 0
        %3231 = vmatpush1.bf16.msra.mxu0 0
        %3232 = vmatprep.subr.bf16.mxu0 0
        %3233 = vmatpush1.bf16.msra.mxu0 0
        %3234 = vmatprep.subr.bf16.mxu0 0
        %3235 = vmatpush1.bf16.msra.mxu0 0
        %3236 = vmatprep.mubr.bf16.mxu0 0
        %3237 = vmatmul.mubr.bf16.gmra.mrb[0].mxu0 %v3199
        %v3238 = vpop.f32.mrb[0].mxu0
        %v3239 = vadd.f32 0.0, %v3238
        %v3240 = vpop.f32.mrb[0].mxu0
        %v3241 = vpop.f32.mrb[0].mxu0
        %v3242 = vadd.f32 0.0, %v3241
        %v3243 = vpop.f32.mrb[0].mxu0
        %3244 = vdwg.mxu0
        %v3247 = vrot.slane %v3239, 7
        %v3248 = vrot.slane %v3242, 7
        %v3249 = vsel %vm369, %v3247, %v3248
        %v3252 = vsel %vm369, 0.0, %v3247
        %v3253 = vrot.slane %v3239, 1
        %v3254 = vrot.slane %v3242, 1
        %v3255 = vsel %vm376, %v3253, %v3254
        %v3257 = vsel %vm376, %v3254, 0.0
        %3258 = vrot.lane.b32.xlu0 %v3239, 32
        %v3259 = vpop.permute.xlu0 %3258
        %3260 = vrot.lane.b32.xlu0 %v3242, 32
        %v3261 = vpop.permute.xlu0 %3260
        %3265 = vrot.lane.b32.xlu0 %v3255, 64
        %v3266 = vpop.permute.xlu0 %3265
        %3267 = vrot.lane.b32.xlu0 %v3257, 64
        %v3268 = vpop.permute.xlu0 %3267
        %v3271 = vsel %vm398, %v3252, %v3259
        %v3272 = vsel %vm398, %v3249, %v3261
        %v3273 = vsel %vm519, %v3271, %v3266
        %v3274 = vsel %vm519, %v3272, %v3268
        %v3275 = vpack.c.bf16 %v3274, %v3273
        %v3276 = vld [vmem:[%s1 + $0x328] sm:$0xf]
        %v3277 = vld [vmem:[%s1 + $0x32c] sm:$0xf]
        %v3278 = vld [vmem:[%s1 + $0x330] sm:$0xf]
        %v3279 = vld [vmem:[%s1 + $0x334] sm:$0xf]
        %v3280 = vld [vmem:[%s1 + $0x338] sm:$0xf]
        %v3281 = vld [vmem:[%s1 + $0x33c] sm:$0xf]
        %v3282 = vld [vmem:[%s1 + $0x340] sm:$0xf]
        %v3283 = vld [vmem:[%s1 + $0x344] sm:$0xf]
        %v3284 = vld [vmem:[%s1 + $0x348] sm:$0xf]
        %v3285 = vld [vmem:[%s1 + $0x34c] sm:$0xf]
        %v3286 = vld [vmem:[%s1 + $0x350] sm:$0xf]
        %v3287 = vld [vmem:[%s1 + $0x354] sm:$0xf]
        %v3288 = vld [vmem:[%s2 + $0x16] sm:$0x1]
        %v3289 = vlaneseq
        %v3290 = vshrl.u32 %v3289, 7
        %v3291 = vsub.s32 0, %v3290
        %v3292 = vrot.slane %v3288, %v3291
        %v3305 = vunpack.c.l.b16 %v3276
        %v3306 = vunpack.c.l.b16 %v3277
        %v3307 = vunpack.c.l.b16 %v3278
        %v3308 = vunpack.c.l.b16 %v3279
        %v3309 = vunpack.c.l.b16 %v3280
        %v3310 = vunpack.c.l.b16 %v3281
        %v3311 = vunpack.c.l.b16 %v3282
        %v3312 = vunpack.c.l.b16 %v3283
        %v3313 = vunpack.c.l.b16 %v3284
        %v3314 = vunpack.c.l.b16 %v3285
        %v3315 = vunpack.c.l.b16 %v3286
        %v3316 = vunpack.c.l.b16 %v3287
        %v3317 = vpack.c.b16 %v3306, %v3305
        %v3318 = vpack.c.b16 %v3308, %v3307
        %v3319 = vpack.c.b16 %v3310, %v3309
        %v3320 = vpack.c.b16 %v3312, %v3311
        %v3321 = vpack.c.b16 %v3314, %v3313
        %v3322 = vpack.c.b16 %v3316, %v3315
        %v3330 = vsel %vm522, %v3275, 0
        %3332 = vmatprep.subr.bf16.mxu0 0
        %3333 = vmatpush1.bf16.msra.mxu0 %v3317
        %3334 = vmatprep.subr.bf16.mxu0 0
        %3335 = vmatpush1.bf16.msra.mxu0 %v3318
        %3336 = vmatprep.subr.bf16.mxu0 0
        %3337 = vmatpush1.bf16.msra.mxu0 %v3319
        %3338 = vmatprep.subr.bf16.mxu0 0
        %3339 = vmatpush1.bf16.msra.mxu0 %v3320
        %3340 = vmatprep.subr.bf16.mxu0 0
        %3341 = vmatpush1.bf16.msra.mxu0 %v3321
        %3342 = vmatprep.subr.bf16.mxu0 0
        %3343 = vmatpush1.bf16.msra.mxu0 %v3322
        %3344 = vmatprep.subr.bf16.mxu0 0
        %3345 = vmatpush1.bf16.msra.mxu0 0
        %3346 = vmatprep.subr.bf16.mxu0 0
        %3347 = vmatpush1.bf16.msra.mxu0 0
        %3348 = vmatprep.subr.bf16.mxu0 0
        %3349 = vmatpush1.bf16.msra.mxu0 0
        %3350 = vmatprep.subr.bf16.mxu0 0
        %3351 = vmatpush1.bf16.msra.mxu0 0
        %3352 = vmatprep.subr.bf16.mxu0 0
        %3353 = vmatpush1.bf16.msra.mxu0 0
        %3354 = vmatprep.subr.bf16.mxu0 0
        %3355 = vmatpush1.bf16.msra.mxu0 0
        %3356 = vmatprep.subr.bf16.mxu0 0
        %3357 = vmatpush1.bf16.msra.mxu0 0
        %3358 = vmatprep.subr.bf16.mxu0 0
        %3359 = vmatpush1.bf16.msra.mxu0 0
        %3360 = vmatprep.subr.bf16.mxu0 0
        %3361 = vmatpush1.bf16.msra.mxu0 0
        %3362 = vmatprep.subr.bf16.mxu0 0
        %3363 = vmatpush1.bf16.msra.mxu0 0
        %3364 = vmatprep.mubr.bf16.mxu0 0
        %3365 = vmatmul.mubr.bf16.gmra.mrb[0].mxu0 %v3330
        %v3366 = vpop.f32.mrb[0].mxu0
        %v3367 = vadd.f32 %v3292, %v3366
        %v3368 = vpop.f32.mrb[0].mxu0
        %v3369 = vpop.f32.mrb[0].mxu0
        %v3370 = vadd.f32 %v3292, %v3369
        %v3371 = vpop.f32.mrb[0].mxu0
        %3372 = vdwg.mxu0
        %v3375 = vrot.slane %v3367, 7
        %v3376 = vrot.slane %v3370, 7
        %v3377 = vsel %vm369, %v3375, %v3376
        %v3380 = vsel %vm369, 0.0, %v3375
        %v3381 = vrot.slane %v3367, 1
        %v3382 = vrot.slane %v3370, 1
        %v3383 = vsel %vm376, %v3381, %v3382
        %v3385 = vsel %vm376, %v3382, 0.0
        %3386 = vrot.lane.b32.xlu0 %v3367, 32
        %v3387 = vpop.permute.xlu0 %3386
        %3388 = vrot.lane.b32.xlu0 %v3370, 32
        %v3389 = vpop.permute.xlu0 %3388
        %3393 = vrot.lane.b32.xlu0 %v3383, 64
        %v3394 = vpop.permute.xlu0 %3393
        %3395 = vrot.lane.b32.xlu0 %v3385, 64
        %v3396 = vpop.permute.xlu0 %3395
        %v3399 = vsel %vm398, %v3380, %v3387
        %v3400 = vsel %vm398, %v3377, %v3389
        %v3401 = vsel %vm519, %v3399, %v3394
        %v3402 = vsel %vm519, %v3400, %v3396
        %v3403 = vpack.c.bf16 %v3402, %v3401
        %v3404 = vld [vmem:[%s1 + $0x358] sm:$0xf]
        %v3405 = vld [vmem:[%s1 + $0x35c] sm:$0xf]
        %v3406 = vld [vmem:[%s1 + $0x360] sm:$0xf]
        %v3407 = vld [vmem:[%s1 + $0x364] sm:$0xf]
        %v3408 = vld [vmem:[%s1 + $0x368] sm:$0xf]
        %v3409 = vld [vmem:[%s1 + $0x36c] sm:$0xf]
        %v3410 = vld [vmem:[%s1 + $0x370] sm:$0xf]
        %v3411 = vld [vmem:[%s1 + $0x374] sm:$0xf]
        %v3412 = vld [vmem:[%s1 + $0x378] sm:$0xf]
        %v3413 = vld [vmem:[%s1 + $0x37c] sm:$0xf]
        %v3414 = vld [vmem:[%s1 + $0x380] sm:$0xf]
        %v3415 = vld [vmem:[%s1 + $0x384] sm:$0xf]
        %v3416 = vld [vmem:[%s2 + $0x17] sm:$0x1]
        %v3417 = vlaneseq
        %v3418 = vshrl.u32 %v3417, 7
        %v3419 = vsub.s32 0, %v3418
        %v3420 = vrot.slane %v3416, %v3419
        %v3433 = vunpack.c.l.b16 %v3404
        %v3434 = vunpack.c.l.b16 %v3405
        %v3435 = vunpack.c.l.b16 %v3406
        %v3436 = vunpack.c.l.b16 %v3407
        %v3437 = vunpack.c.l.b16 %v3408
        %v3438 = vunpack.c.l.b16 %v3409
        %v3439 = vunpack.c.l.b16 %v3410
        %v3440 = vunpack.c.l.b16 %v3411
        %v3441 = vunpack.c.l.b16 %v3412
        %v3442 = vunpack.c.l.b16 %v3413
        %v3443 = vunpack.c.l.b16 %v3414
        %v3444 = vunpack.c.l.b16 %v3415
        %v3445 = vpack.c.b16 %v3434, %v3433
        %v3446 = vpack.c.b16 %v3436, %v3435
        %v3447 = vpack.c.b16 %v3438, %v3437
        %v3448 = vpack.c.b16 %v3440, %v3439
        %v3449 = vpack.c.b16 %v3442, %v3441
        %v3450 = vpack.c.b16 %v3444, %v3443
        %v3458 = vsel %vm522, %v3403, 0
        %3460 = vmatprep.subr.bf16.mxu0 0
        %3461 = vmatpush1.bf16.msra.mxu0 %v3445
        %3462 = vmatprep.subr.bf16.mxu0 0
        %3463 = vmatpush1.bf16.msra.mxu0 %v3446
        %3464 = vmatprep.subr.bf16.mxu0 0
        %3465 = vmatpush1.bf16.msra.mxu0 %v3447
        %3466 = vmatprep.subr.bf16.mxu0 0
        %3467 = vmatpush1.bf16.msra.mxu0 %v3448
        %3468 = vmatprep.subr.bf16.mxu0 0
        %3469 = vmatpush1.bf16.msra.mxu0 %v3449
        %3470 = vmatprep.subr.bf16.mxu0 0
        %3471 = vmatpush1.bf16.msra.mxu0 %v3450
        %3472 = vmatprep.subr.bf16.mxu0 0
        %3473 = vmatpush1.bf16.msra.mxu0 0
        %3474 = vmatprep.subr.bf16.mxu0 0
        %3475 = vmatpush1.bf16.msra.mxu0 0
        %3476 = vmatprep.subr.bf16.mxu0 0
        %3477 = vmatpush1.bf16.msra.mxu0 0
        %3478 = vmatprep.subr.bf16.mxu0 0
        %3479 = vmatpush1.bf16.msra.mxu0 0
        %3480 = vmatprep.subr.bf16.mxu0 0
        %3481 = vmatpush1.bf16.msra.mxu0 0
        %3482 = vmatprep.subr.bf16.mxu0 0
        %3483 = vmatpush1.bf16.msra.mxu0 0
        %3484 = vmatprep.subr.bf16.mxu0 0
        %3485 = vmatpush1.bf16.msra.mxu0 0
        %3486 = vmatprep.subr.bf16.mxu0 0
        %3487 = vmatpush1.bf16.msra.mxu0 0
        %3488 = vmatprep.subr.bf16.mxu0 0
        %3489 = vmatpush1.bf16.msra.mxu0 0
        %3490 = vmatprep.subr.bf16.mxu0 0
        %3491 = vmatpush1.bf16.msra.mxu0 0
        %3492 = vmatprep.mubr.bf16.mxu0 0
        %3493 = vmatmul.mubr.bf16.gmra.mrb[0].mxu0 %v3458
        %v3494 = vpop.f32.mrb[0].mxu0
        %v3495 = vadd.f32 %v3420, %v3494
        %v3496 = vpop.f32.mrb[0].mxu0
        %v3497 = vpop.f32.mrb[0].mxu0
        %v3498 = vadd.f32 %v3420, %v3497
        %v3499 = vpop.f32.mrb[0].mxu0
        %3500 = vdwg.mxu0
        %v3501 = vmax.f32 %v3495, 0.0
        %v3502 = vmax.f32 %v3498, 0.0
        %v3505 = vrot.slane %v3501, 7
        %v3506 = vrot.slane %v3502, 7
        %v3507 = vsel %vm369, %v3505, %v3506
        %v3510 = vsel %vm369, 0.0, %v3505
        %v3511 = vrot.slane %v3501, 1
        %v3512 = vrot.slane %v3502, 1
        %v3513 = vsel %vm376, %v3511, %v3512
        %v3515 = vsel %vm376, %v3512, 0.0
        %3516 = vrot.lane.b32.xlu0 %v3501, 32
        %v3517 = vpop.permute.xlu0 %3516
        %3518 = vrot.lane.b32.xlu0 %v3502, 32
        %v3519 = vpop.permute.xlu0 %3518
        %3523 = vrot.lane.b32.xlu0 %v3513, 64
        %v3524 = vpop.permute.xlu0 %3523
        %3525 = vrot.lane.b32.xlu0 %v3515, 64
        %v3526 = vpop.permute.xlu0 %3525
        %v3529 = vsel %vm398, %v3510, %v3517
        %v3530 = vsel %vm398, %v3507, %v3519
        %v3531 = vsel %vm519, %v3529, %v3524
        %v3532 = vsel %vm519, %v3530, %v3526
        %v3533 = vpack.c.bf16 %v3532, %v3531
        %v3534 = vld [vmem:[%s1 + $0x388] sm:$0xf]
        %v3535 = vld [vmem:[%s1 + $0x38c] sm:$0xf]
        %v3536 = vld [vmem:[%s1 + $0x390] sm:$0xf]
        %v3537 = vld [vmem:[%s1 + $0x394] sm:$0xf]
        %v3538 = vld [vmem:[%s1 + $0x398] sm:$0xf]
        %v3539 = vld [vmem:[%s1 + $0x39c] sm:$0xf]
        %v3540 = vld [vmem:[%s1 + $0x3a0] sm:$0xf]
        %v3541 = vld [vmem:[%s1 + $0x3a4] sm:$0xf]
        %v3542 = vld [vmem:[%s1 + $0x3a8] sm:$0xf]
        %v3543 = vld [vmem:[%s1 + $0x3ac] sm:$0xf]
        %v3544 = vld [vmem:[%s1 + $0x3b0] sm:$0xf]
        %v3545 = vld [vmem:[%s1 + $0x3b4] sm:$0xf]
        %v3546 = vld [vmem:[%s2 + $0x18] sm:$0x1]
        %v3547 = vlaneseq
        %v3548 = vshrl.u32 %v3547, 7
        %v3549 = vsub.s32 0, %v3548
        %v3550 = vrot.slane %v3546, %v3549
        %v3563 = vunpack.c.l.b16 %v3534
        %v3564 = vunpack.c.l.b16 %v3535
        %v3565 = vunpack.c.l.b16 %v3536
        %v3566 = vunpack.c.l.b16 %v3537
        %v3567 = vunpack.c.l.b16 %v3538
        %v3568 = vunpack.c.l.b16 %v3539
        %v3569 = vunpack.c.l.b16 %v3540
        %v3570 = vunpack.c.l.b16 %v3541
        %v3571 = vunpack.c.l.b16 %v3542
        %v3572 = vunpack.c.l.b16 %v3543
        %v3573 = vunpack.c.l.b16 %v3544
        %v3574 = vunpack.c.l.b16 %v3545
        %v3575 = vpack.c.b16 %v3564, %v3563
        %v3576 = vpack.c.b16 %v3566, %v3565
        %v3577 = vpack.c.b16 %v3568, %v3567
        %v3578 = vpack.c.b16 %v3570, %v3569
        %v3579 = vpack.c.b16 %v3572, %v3571
        %v3580 = vpack.c.b16 %v3574, %v3573
        %v3588 = vsel %vm522, %v3533, 0
        %3590 = vmatprep.subr.bf16.mxu0 0
        %3591 = vmatpush1.bf16.msra.mxu0 %v3575
        %3592 = vmatprep.subr.bf16.mxu0 0
        %3593 = vmatpush1.bf16.msra.mxu0 %v3576
        %3594 = vmatprep.subr.bf16.mxu0 0
        %3595 = vmatpush1.bf16.msra.mxu0 %v3577
        %3596 = vmatprep.subr.bf16.mxu0 0
        %3597 = vmatpush1.bf16.msra.mxu0 %v3578
        %3598 = vmatprep.subr.bf16.mxu0 0
        %3599 = vmatpush1.bf16.msra.mxu0 %v3579
        %3600 = vmatprep.subr.bf16.mxu0 0
        %3601 = vmatpush1.bf16.msra.mxu0 %v3580
        %3602 = vmatprep.subr.bf16.mxu0 0
        %3603 = vmatpush1.bf16.msra.mxu0 0
        %3604 = vmatprep.subr.bf16.mxu0 0
        %3605 = vmatpush1.bf16.msra.mxu0 0
        %3606 = vmatprep.subr.bf16.mxu0 0
        %3607 = vmatpush1.bf16.msra.mxu0 0
        %3608 = vmatprep.subr.bf16.mxu0 0
        %3609 = vmatpush1.bf16.msra.mxu0 0
        %3610 = vmatprep.subr.bf16.mxu0 0
        %3611 = vmatpush1.bf16.msra.mxu0 0
        %3612 = vmatprep.subr.bf16.mxu0 0
        %3613 = vmatpush1.bf16.msra.mxu0 0
        %3614 = vmatprep.subr.bf16.mxu0 0
        %3615 = vmatpush1.bf16.msra.mxu0 0
        %3616 = vmatprep.subr.bf16.mxu0 0
        %3617 = vmatpush1.bf16.msra.mxu0 0
        %3618 = vmatprep.subr.bf16.mxu0 0
        %3619 = vmatpush1.bf16.msra.mxu0 0
        %3620 = vmatprep.subr.bf16.mxu0 0
        %3621 = vmatpush1.bf16.msra.mxu0 0
        %3622 = vmatprep.mubr.bf16.mxu0 0
        %3623 = vmatmul.mubr.bf16.gmra.mrb[0].mxu0 %v3588
        %v3624 = vpop.f32.mrb[0].mxu0
        %v3625 = vadd.f32 %v3550, %v3624
        %v3626 = vpop.f32.mrb[0].mxu0
        %v3627 = vpop.f32.mrb[0].mxu0
        %v3628 = vadd.f32 %v3550, %v3627
        %v3629 = vpop.f32.mrb[0].mxu0
        %3630 = vdwg.mxu0
        %vm3631 = vcmask 97280
        %3632 = vst.msk [vmem:[%s355] sm:$0xff] %vm3631, %v3625
        %3633 = vst.msk [vmem:[%s355 + $0x8] sm:$0xff] %vm3631, %v3628
        %p3634 = scmp.lt.s32.totalorder %s24, 1
        %s3635 = scalar_select %p3634, %s24, 1
        %s3636 = smul.addr %s3635, 2
        %s3637 = smul.addr %s3636, 8
        %s3638 = scalar_lea.vmem %s6, %s3637
        %s3639 = sand.u32 %s189, 1
        %s3640 = scalar_lea.sflag [#allocation3], %s3639
        %s3641 = sand.u32 %s189, 1
        %s3642 = smul.addr %s3641, 2
        %s3643 = scalar_lea.vmem [#allocation2], %s3642
        %p3644 = scmp.lt.s32.totalorder %s24, 1
        %s3645 = scalar_select %p3644, %s24, 1
        %s3646 = smul.addr %s3645, 2
        %s3647 = scalar_lea.vmem %s8, %s3646
        %p3648 = scmp.lt.s32.totalorder %s24, 1
        %s3649 = scalar_select %p3648, %s24, 1
        %s3650 = smul.addr %s3649, 2
        %s3651 = scalar_lea.vmem %s9, %s3650
        // Predicated region
        $region45: #{rvqvae_forward.1} parent=43 // pred_check
          %p3652 = pneg %p173
        $region46: #{rvqvae_forward.1} parent=43 // pred_check_branch
          %3654 = sbr.rel (%p3652) target = $region48
        $region47: #{rvqvae_forward.1} parent=43 // pred_region
          _
        $region48: #{rvqvae_forward.1} parent=43 // pred_fallthru
          _
        // Predicated region
        $region49: #{rvqvae_forward.1} parent=43 // pred_check
          %p3655 = pneg %p199
        $region50: #{rvqvae_forward.1} parent=43 // pred_check_branch
          %3657 = sbr.rel (%p3655) target = $region52
        $region51: #{rvqvae_forward.1} parent=43 // pred_region
          %s3659 = ssub.s32 32, 32
          %3660 = vsyncadd %s3640, %s3659
          %s3661 = smul.addr %s24, 32
          %s3662 = scalar_lea.hbm %s7, %s3661
          %s3664 = sshll.u32 %s3643, 4
          %s3665 = int_to_ptr.vmem [resolvable:$true] %s3664
          %3667 = dma.vmem_to_hbm [thread:$0]  %s3665, 32, %s3662, %s3640
        $region52: #{rvqvae_forward.1} parent=43 // pred_fallthru
          _
        // Predicated region
        $region53: #{rvqvae_forward.1} parent=43 // pred_check
          %p3668 = pneg %p225
        $region54: #{rvqvae_forward.1} parent=43 // pred_check_branch
          %3670 = sbr.rel (%p3668) target = $region56
        $region55: #{rvqvae_forward.1} parent=43 // pred_region
          _
        $region56: #{rvqvae_forward.1} parent=43 // pred_fallthru
          _
        // Predicated region
        $region57: #{rvqvae_forward.1} parent=43 // pred_check
          %p3671 = pneg %p251
        $region58: #{rvqvae_forward.1} parent=43 // pred_check_branch
          %3673 = sbr.rel (%p3671) target = $region60
        $region59: #{rvqvae_forward.1} parent=43 // pred_region
          _
        $region60: #{rvqvae_forward.1} parent=43 // pred_fallthru
          _
      $region44: #{rvqvae_forward.1} parent=5 // pred_fallthru
        _
      %p3674 = scmp.le.s32.totalorder 2, %s19
      // Predicated region
      $region61: #{rvqvae_forward.1} parent=5 // pred_check
        %p3675 = pneg %p3674
      $region62: #{rvqvae_forward.1} parent=5 // pred_check_branch
        %3677 = sbr.rel (%p3675) target = $region64
      $region63: #{rvqvae_forward.1} parent=5 // pred_region
        %s3678 = ssub.s32 %s19, 2
        // Predicated region
        $region65: #{rvqvae_forward.1} parent=63 // pred_check
          %p3679 = pneg %p179
        $region66: #{rvqvae_forward.1} parent=63 // pred_check_branch
          %3681 = sbr.rel (%p3679) target = $region68
        $region67: #{rvqvae_forward.1} parent=63 // pred_region
          %p3682 = scmp.lt.s32.totalorder %s25, 1
          %s3683 = scalar_select %p3682, %s25, 1
          %s3684 = smul.addr %s3683, 2
          %s3685 = smul.addr %s3684, 8
          %s3686 = scalar_lea.vmem %s6, %s3685
        $region68: #{rvqvae_forward.1} parent=63 // pred_fallthru
          _
        // Predicated region
        $region69: #{rvqvae_forward.1} parent=63 // pred_check
          %p3687 = pneg %p205
        $region70: #{rvqvae_forward.1} parent=63 // pred_check_branch
          %3689 = sbr.rel (%p3687) target = $region72
        $region71: #{rvqvae_forward.1} parent=63 // pred_region
          %s3690 = sand.u32 %s190, 1
          %s3691 = scalar_lea.sflag [#allocation3], %s3690
          %s3692 = sand.u32 %s190, 1
          %s3693 = smul.addr %s3692, 2
          %s3694 = scalar_lea.vmem [#allocation2], %s3693
          %3695 = dma.done %s3691, 32
        $region72: #{rvqvae_forward.1} parent=63 // pred_fallthru
          _
        // Predicated region
        $region73: #{rvqvae_forward.1} parent=63 // pred_check
          %p3696 = pneg %p231
        $region74: #{rvqvae_forward.1} parent=63 // pred_check_branch
          %3698 = sbr.rel (%p3696) target = $region76
        $region75: #{rvqvae_forward.1} parent=63 // pred_region
          %p3699 = scmp.lt.s32.totalorder %s25, 1
          %s3700 = scalar_select %p3699, %s25, 1
          %s3701 = smul.addr %s3700, 2
          %s3702 = scalar_lea.vmem %s8, %s3701
        $region76: #{rvqvae_forward.1} parent=63 // pred_fallthru
          _
        // Predicated region
        $region77: #{rvqvae_forward.1} parent=63 // pred_check
          %p3703 = pneg %p257
        $region78: #{rvqvae_forward.1} parent=63 // pred_check_branch
          %3705 = sbr.rel (%p3703) target = $region80
        $region79: #{rvqvae_forward.1} parent=63 // pred_region
          %p3706 = scmp.lt.s32.totalorder %s25, 1
          %s3707 = scalar_select %p3706, %s25, 1
          %s3708 = smul.addr %s3707, 2
          %s3709 = scalar_lea.vmem %s9, %s3708
        $region80: #{rvqvae_forward.1} parent=63 // pred_fallthru
          _
      $region64: #{rvqvae_forward.1} parent=5 // pred_fallthru
        _
    $region6: #{rvqvae_forward.1} parent=1 // loop_footer
      %s23 = sadd.s32 1, %s19
    $region7: #{rvqvae_forward.1} parent=1 // loop_footer_branch
      %18 = sbr.rel target = $region3
    $region8: #{rvqvae_forward.1} parent=1 // loop_exit
      _
    %3710 = vsyncpa [#allocation3], 1
    %s3711 = scalar_lea.sflag [#allocation3], 1
    %3712 = vsyncpa %s3711, 1

</llo_original>
